<compile_context>
chip_gen: v6e
topology: v6e:2x2x1
jax: 0.10.0
libtpu: 0.0.40
codegen_flags: <defaults>
</compile_context>

<pallas_src>
import functools

import jax
import jax.numpy as jnp
import numpy as np
from jax.experimental import pallas as pl
from jax.experimental.pallas import tpu as pltpu

_PAD_TOP = 8  # top padding rows in spatial scratch; multiple of the f32 sublane tile (8)


# ----------------------------------------------------------------------------
# Fused kernel: s1 -> s2 -> t1 -> t2, all conv+BN(shift)+ReLU, one batch element
# per grid step.  All intermediates stay in VMEM.
# ----------------------------------------------------------------------------
def _visual_block_kernel(x_ref, ws1_ref, ws2_ref, wt1_ref, wt2_ref,
                         b1_ref, b2_ref, b3_ref, b4_ref, o_ref,
                         ps1_ref, ps2_ref, pt1_ref, pt2_ref,
                         *, k1, k2, p1, p2, T, H, H1, h_stride):
    f32 = jnp.float32
    bf16 = jnp.bfloat16

    def spatial_stage(pad_ref, w_ref, b_ref, k, p, h_out, stride):
        # pad_ref: (T, Hp, Wi*Ci) f32, interior rows at [_PAD_TOP, _PAD_TOP+H_in)
        # w_ref:   (k, Wi*Ci, Wo*Co) bf16 banded matrices (one per dy; W-conv,
        #          W-padding and W-stride baked in, BN scale folded in)
        n_out = w_ref.shape[-1]
        acc = None
        for dy in range(k):
            r0 = _PAD_TOP - p + dy
            if stride == 1:
                slab = pad_ref[:, r0:r0 + h_out, :]
            else:  # stride-2 H (is_down): read every other padded row directly
                slab = pad_ref[:, pl.ds(r0, h_out, stride), :]
            a = slab.reshape(T * h_out, slab.shape[-1]).astype(bf16)
            term = jnp.dot(a, w_ref[dy], preferred_element_type=f32)
            acc = term if acc is None else acc + term
        return jnp.maximum(acc + b_ref[...], 0.0)          # (T*h_out, n_out) f32

    def temporal_stage(pad_ref, w_ref, b_ref, k):
        # pad_ref: (T+2p, H1, W1*C) bf16, interior at [p, p+T) along the major axis
        # w_ref:   (k, W1*C, W1*C) bf16 block-diagonal matrices
        n = w_ref.shape[-1]
        acc = None
        for dt in range(k):
            a = pad_ref[dt:dt + T].reshape(T * H1, n)       # already bf16
            term = jnp.dot(a, w_ref[dt], preferred_element_type=f32)
            acc = term if acc is None else acc + term
        return jnp.maximum(acc + b_ref[...], 0.0)

    lanes_in = x_ref.shape[-1]      # W * Cin
    n1 = ws1_ref.shape[-1]          # W1 * C1
    n2 = ws2_ref.shape[-1]          # W1 * C2

    # ---- s_1 : spatial conv (1,k1,k1), optional stride (1,2,2), + BN + ReLU ----
    # zero only the H-pad slabs (W padding is folded into the band weights)
    ps1_ref[:, 0:_PAD_TOP, :] = jnp.zeros((T, _PAD_TOP, lanes_in), f32)
    ps1_ref[:, _PAD_TOP + H:, :] = jnp.zeros((T, _PAD_TOP, lanes_in), f32)
    ps1_ref[:, _PAD_TOP:_PAD_TOP + H, :] = x_ref[0]
    y = spatial_stage(ps1_ref, ws1_ref, b1_ref, k1, p1, H1, h_stride)

    # ---- s_2 : spatial conv (1,k2,k2) + BN + ReLU ----
    ps2_ref[:, 0:_PAD_TOP, :] = jnp.zeros((T, _PAD_TOP, n1), f32)
    ps2_ref[:, _PAD_TOP + H1:, :] = jnp.zeros((T, _PAD_TOP, n1), f32)
    ps2_ref[:, _PAD_TOP:_PAD_TOP + H1, :] = y.reshape(T, H1, n1)
    y = spatial_stage(ps2_ref, ws2_ref, b2_ref, k2, p2, H1, 1)

    # ---- t_1 : temporal conv (k1,1,1) + BN + ReLU ----
    if p1 > 0:
        pt1_ref[:p1] = jnp.zeros((p1, H1, n2), bf16)
        pt1_ref[p1 + T:] = jnp.zeros((p1, H1, n2), bf16)
    pt1_ref[p1:p1 + T] = y.reshape(T, H1, n2).astype(bf16)
    y = temporal_stage(pt1_ref, wt1_ref, b3_ref, k1)

    # ---- t_2 : temporal conv (k2,1,1) + BN + ReLU ----
    if p2 > 0:
        pt2_ref[:p2] = jnp.zeros((p2, H1, n2), bf16)
        pt2_ref[p2 + T:] = jnp.zeros((p2, H1, n2), bf16)
    pt2_ref[p2:p2 + T] = y.reshape(T, H1, n2).astype(bf16)
    y = temporal_stage(pt2_ref, wt2_ref, b4_ref, k2)

    # lane-dense output: last dim = W1*Cout (e.g. 256)
    o_ref[0] = y.reshape(T, H1, n2)


# ----------------------------------------------------------------------------
# Wrapper-side weight re-packing (pure XLA, tiny, done once per call)
# ----------------------------------------------------------------------------
def _spatial_band_weights(w, scale, w_in, w_out, stride, pad):
    """w: (k, k, Ci, Co).  Returns (k, w_in*Ci, w_out*Co) bf16 banded matrices,
    one per dy, with BN scale folded and W-padding/stride baked into the band."""
    k, _, ci, co = w.shape
    w = w * scale[None, None, None, :]
    xi = jnp.arange(w_in)[:, None]
    xo = jnp.arange(w_out)[None, :]
    dx = xi - (xo * stride - pad)                   # (w_in, w_out) kernel tap index
    valid = (dx >= 0) & (dx < k)
    dxc = jnp.clip(dx, 0, k - 1)
    mats = []
    for dy in range(k):
        g = w[dy][dxc]                              # (w_in, w_out, Ci, Co)
        g = g * valid[:, :, None, None]
        mats.append(jnp.transpose(g, (0, 2, 1, 3)).reshape(w_in * ci, w_out * co))
    return jnp.stack(mats, axis=0).astype(jnp.bfloat16)


def _temporal_blockdiag_weights(w, scale, w1):
    """w: (k, 1, Ci, Co).  Returns (k, w1*Ci, w1*Co) bf16 block-diagonal matrices."""
    k, _, ci, co = w.shape
    w = (w * scale[None, None, None, :])[:, 0]      # (k, Ci, Co)
    eye = jnp.eye(w1, dtype=w.dtype)
    m = eye[None, :, None, :, None] * w[:, None, :, None, :]   # (k, w1, Ci, w1, Co)
    return m.reshape(k, w1 * ci, w1 * co).astype(jnp.bfloat16)


# ----------------------------------------------------------------------------
# Visual_Block forward (PyTorch semantics, eval-mode BatchNorm folded)
# ----------------------------------------------------------------------------
def visual_block_forward(x, params, *, kernel_1, kernel_2, is_down=False):
    """x: (B, Cin, T, H, W) float32 (NCDHW).  Returns (B, Cout, T, H', W')."""
    B, Cin, T, H, W = x.shape
    k1, k2 = kernel_1, kernel_2
    p1, p2 = (k1 - 1) // 2, (k2 - 1) // 2
    C1 = params['s1_w'].shape[-1]
    C2 = params['s2_w'].shape[-1]
    s = 2 if is_down else 1
    H1 = (H + 2 * p1 - k1) // s + 1
    W1 = (W + 2 * p1 - k1) // s + 1

    # channels-last with W folded into the lane dim: (B, T, H, W*Cin)
    xcl = jnp.transpose(x, (0, 2, 3, 4, 1)).reshape(B, T, H, W * Cin).astype(jnp.float32)

    ws1 = _spatial_band_weights(params['s1_w'], params['s1_scale'], W, W1, s, p1)
    ws2 = _spatial_band_weights(params['s2_w'], params['s2_scale'], W1, W1, 1, p2)
    wt1 = _temporal_blockdiag_weights(params['t1_w'], params['t1_scale'], W1)
    wt2 = _temporal_blockdiag_weights(params['t2_w'], params['t2_scale'], W1)
    b1 = jnp.tile(params['s1_shift'], W1).reshape(1, W1 * C1).astype(jnp.float32)
    b2 = jnp.tile(params['s2_shift'], W1).reshape(1, W1 * C2).astype(jnp.float32)
    b3 = jnp.tile(params['t1_shift'], W1).reshape(1, W1 * C2).astype(jnp.float32)
    b4 = jnp.tile(params['t2_shift'], W1).reshape(1, W1 * C2).astype(jnp.float32)

    kernel = functools.partial(_visual_block_kernel, k1=k1, k2=k2, p1=p1, p2=p2,
                               T=T, H=H, H1=H1, h_stride=s)

    out = pl.pallas_call(
        kernel,
        out_shape=jax.ShapeDtypeStruct((B, T, H1, W1 * C2), jnp.float32),
        grid=(B,),
        in_specs=[
            pl.BlockSpec((1, T, H, W * Cin), lambda b: (b, 0, 0, 0)),
            pl.BlockSpec(ws1.shape, lambda b: (0, 0, 0)),
            pl.BlockSpec(ws2.shape, lambda b: (0, 0, 0)),
            pl.BlockSpec(wt1.shape, lambda b: (0, 0, 0)),
            pl.BlockSpec(wt2.shape, lambda b: (0, 0, 0)),
            pl.BlockSpec(b1.shape, lambda b: (0, 0)),
            pl.BlockSpec(b2.shape, lambda b: (0, 0)),
            pl.BlockSpec(b3.shape, lambda b: (0, 0)),
            pl.BlockSpec(b4.shape, lambda b: (0, 0)),
        ],
        out_specs=pl.BlockSpec((1, T, H1, W1 * C2), lambda b: (b, 0, 0, 0)),
        scratch_shapes=[
            pltpu.VMEM((T, H + 2 * _PAD_TOP, W * Cin), jnp.float32),    # s1 H-padded input
            pltpu.VMEM((T, H1 + 2 * _PAD_TOP, W1 * C1), jnp.float32),   # s2 H-padded input
            pltpu.VMEM((T + 2 * p1, H1, W1 * C2), jnp.bfloat16),        # t1 T-padded input
            pltpu.VMEM((T + 2 * p2, H1, W1 * C2), jnp.bfloat16),        # t2 T-padded input
        ],
        compiler_params=pltpu.CompilerParams(
            dimension_semantics=("parallel",),
            vmem_limit_bytes=32 * 1024 * 1024),
    )(xcl, ws1, ws2, wt1, wt2, b1, b2, b3, b4)

    out = out.reshape(B, T, H1, W1, C2)
    return jnp.transpose(out, (0, 4, 1, 2, 3))  # back to NCDHW


# ----------------------------------------------------------------------------
# Deterministic parameter init (synthetic; BN folded to per-channel scale/shift)
# ----------------------------------------------------------------------------
def _bn_fold(key, c, eps=0.001):
    k1, k2, k3, k4 = jax.random.split(key, 4)
    gamma = 1.0 + 0.1 * jax.random.normal(k1, (c,), jnp.float32)
    beta = 0.1 * jax.random.normal(k2, (c,), jnp.float32)
    mean = 0.1 * jax.random.normal(k3, (c,), jnp.float32)
    var = jnp.abs(jax.random.normal(k4, (c,), jnp.float32)) + 0.5
    scale = gamma / jnp.sqrt(var + eps)
    shift = beta - mean * scale
    return scale, shift


def init_params(key, in_channels, out_channels, kernel_1, kernel_2):
    c_half = out_channels // 2
    ks = jax.random.split(key, 8)
    conv = lambda k, kh, kw, ci, co: 0.1 * jax.random.normal(k, (kh, kw, ci, co), jnp.float32)
    p = {}
    p['s1_w'] = conv(ks[0], kernel_1, kernel_1, in_channels, c_half)
    p['s1_scale'], p['s1_shift'] = _bn_fold(ks[1], c_half)
    p['s2_w'] = conv(ks[2], kernel_2, kernel_2, c_half, out_channels)
    p['s2_scale'], p['s2_shift'] = _bn_fold(ks[3], out_channels)
    p['t1_w'] = conv(ks[4], kernel_1, 1, out_channels, out_channels)
    p['t1_scale'], p['t1_shift'] = _bn_fold(ks[5], out_channels)
    p['t2_w'] = conv(ks[6], kernel_2, 1, out_channels, out_channels)
    p['t2_scale'], p['t2_shift'] = _bn_fold(ks[7], out_channels)
    return p


# ----------------------------------------------------------------------------
# Plain-JAX reference (lax.conv, NCDHW), for correctness checking
# ----------------------------------------------------------------------------
def ref_forward(x, params, kernel_1, kernel_2, is_down):
    p1 = (kernel_1 - 1) // 2
    p2 = (kernel_2 - 1) // 2
    s1_stride = (1, 2, 2) if is_down else (1, 1, 1)

    def spat_w(w):   # (kh,kw,Cin,Cout) -> (Cout,Cin,1,kh,kw)
        return jnp.transpose(w, (3, 2, 0, 1))[:, :, None, :, :]

    def temp_w(w):   # (kt,1,Cin,Cout) -> (Cout,Cin,kt,1,1)
        return jnp.transpose(w, (3, 2, 0, 1))[:, :, :, :, None]

    def cbr(x, w5, scale, shift, stride, pad3):
        y = jax.lax.conv_general_dilated(
            x, w5, window_strides=stride, padding=pad3,
            dimension_numbers=('NCDHW', 'OIDHW', 'NCDHW'),
            precision=jax.lax.Precision.HIGHEST)
        y = y * scale[None, :, None, None, None] + shift[None, :, None, None, None]
        return jnp.maximum(y, 0.0)

    y = cbr(x, spat_w(params['s1_w']), params['s1_scale'], params['s1_shift'],
            s1_stride, [(0, 0), (p1, p1), (p1, p1)])
    y = cbr(y, spat_w(params['s2_w']), params['s2_scale'], params['s2_shift'],
            (1, 1, 1), [(0, 0), (p2, p2), (p2, p2)])
    y = cbr(y, temp_w(params['t1_w']), params['t1_scale'], params['t1_shift'],
            (1, 1, 1), [(p1, p1), (0, 0), (0, 0)])
    y = cbr(y, temp_w(params['t2_w']), params['t2_scale'], params['t2_shift'],
            (1, 1, 1), [(p2, p2), (0, 0), (0, 0)])
    return y


if __name__ == "__main__":
    key = jax.random.PRNGKey(0)
    k_x, k_p = jax.random.split(key)

    # small shapes consistent with the module's forward
    B, Cin, T, H, W = 2, 4, 8, 16, 16
    out_channels = 16
    kernel_1, kernel_2 = 3, 3
    is_down = False

    x = jax.random.normal(k_x, (B, Cin, T, H, W), jnp.float32)
    params = init_params(k_p, Cin, out_channels, kernel_1, kernel_2)

    out = visual_block_forward(x, params, kernel_1=kernel_1, kernel_2=kernel_2,
                               is_down=is_down)
    out = jax.block_until_ready(out)

    ref = jax.block_until_ready(ref_forward(x, params, kernel_1, kernel_2, is_down))

    assert out.shape == (B, out_channels, T, H, W), out.shape
    np.testing.assert_allclose(np.asarray(out), np.asarray(ref), rtol=5e-2, atol=5e-2)

    print("KERNEL_OK")
</pallas_src>

<mosaic_0001>
module attributes {stable_mosaic.version = 11 : i64} {
  func.func @_visual_block_kernel(%arg0: i32, %arg1: memref<1x8x16x64xf32, #tpu.memory_space<vmem>>, %arg2: memref<3x64x128xbf16, #tpu.memory_space<vmem>>, %arg3: memref<3x128x256xbf16, #tpu.memory_space<vmem>>, %arg4: memref<3x256x256xbf16, #tpu.memory_space<vmem>>, %arg5: memref<3x256x256xbf16, #tpu.memory_space<vmem>>, %arg6: memref<1x128xf32, #tpu.memory_space<vmem>>, %arg7: memref<1x256xf32, #tpu.memory_space<vmem>>, %arg8: memref<1x256xf32, #tpu.memory_space<vmem>>, %arg9: memref<1x256xf32, #tpu.memory_space<vmem>>, %arg10: memref<1x8x16x256xf32, #tpu.memory_space<vmem>>, %arg11: memref<8x32x64xf32, #tpu.memory_space<vmem>>, %arg12: memref<8x32x128xf32, #tpu.memory_space<vmem>>, %arg13: memref<10x16x256xbf16, #tpu.memory_space<vmem>>, %arg14: memref<10x16x256xbf16, #tpu.memory_space<vmem>>) attributes {dimension_semantics = [#tpu.dimension_semantics<parallel>], iteration_bounds = array<i64: 2>, scalar_prefetch = 0 : i64, scratch_operands = 4 : i64, tpu.core_type = #tpu.core_type<tc>, window_params = [{transform_indices = @transform_0, window_bounds = array<i64: 1, 8, 16, 64>}, {pipeline_mode = #tpu.pipeline_mode<synchronous>, transform_indices = @transform_1, window_bounds = array<i64: 3, 64, 128>}, {pipeline_mode = #tpu.pipeline_mode<synchronous>, transform_indices = @transform_2, window_bounds = array<i64: 3, 128, 256>}, {pipeline_mode = #tpu.pipeline_mode<synchronous>, transform_indices = @transform_3, window_bounds = array<i64: 3, 256, 256>}, {pipeline_mode = #tpu.pipeline_mode<synchronous>, transform_indices = @transform_4, window_bounds = array<i64: 3, 256, 256>}, {pipeline_mode = #tpu.pipeline_mode<synchronous>, transform_indices = @transform_5, window_bounds = array<i64: 1, 128>}, {pipeline_mode = #tpu.pipeline_mode<synchronous>, transform_indices = @transform_6, window_bounds = array<i64: 1, 256>}, {pipeline_mode = #tpu.pipeline_mode<synchronous>, transform_indices = @transform_7, window_bounds = array<i64: 1, 256>}, {pipeline_mode = #tpu.pipeline_mode<synchronous>, transform_indices = @transform_8, window_bounds = array<i64: 1, 256>}, {transform_indices = @transform_9, window_bounds = array<i64: 1, 8, 16, 256>}]} {
    %cst = arith.constant 0.000000e+00 : f32
    %0 = vector.broadcast %cst : f32 to vector<8x8x64xf32>
    %c0 = arith.constant 0 : index
    %c0_0 = arith.constant 0 : index
    %c0_1 = arith.constant 0 : index
    %1 = vector.load %arg11[%c0, %c0_0, %c0_1] : memref<8x32x64xf32, #tpu.memory_space<vmem>>, vector<8x8x64xf32>
    tpu.vector_store %arg11[%c0, %c0_0, %c0_1], %0 {strides = array<i32>} : memref<8x32x64xf32, #tpu.memory_space<vmem>>, vector<8x8x64xf32>,
    %cst_2 = arith.constant 0.000000e+00 : f32
    %2 = vector.broadcast %cst_2 : f32 to vector<8x8x64xf32>
    %c0_3 = arith.constant 0 : index
    %c24 = arith.constant 24 : index
    %c0_4 = arith.constant 0 : index
    %3 = vector.load %arg11[%c0_3, %c24, %c0_4] : memref<8x32x64xf32, #tpu.memory_space<vmem>>, vector<8x8x64xf32>
    tpu.vector_store %arg11[%c0_3, %c24, %c0_4], %2 {strides = array<i32>} : memref<8x32x64xf32, #tpu.memory_space<vmem>>, vector<8x8x64xf32>,
    %c0_5 = arith.constant 0 : index
    %c0_6 = arith.constant 0 : index
    %c0_7 = arith.constant 0 : index
    %c0_8 = arith.constant 0 : index
    %4 = vector.load %arg1[%c0_5, %c0_6, %c0_7, %c0_8] : memref<1x8x16x64xf32, #tpu.memory_space<vmem>>, vector<1x8x16x64xf32>
    %5 = vector.shape_cast %4 : vector<1x8x16x64xf32> to vector<8x16x64xf32>
    %c0_9 = arith.constant 0 : index
    %c8 = arith.constant 8 : index
    %c0_10 = arith.constant 0 : index
    %6 = vector.load %arg11[%c0_9, %c8, %c0_10] : memref<8x32x64xf32, #tpu.memory_space<vmem>>, vector<8x16x64xf32>
    tpu.vector_store %arg11[%c0_9, %c8, %c0_10], %5 {strides = array<i32>} : memref<8x32x64xf32, #tpu.memory_space<vmem>>, vector<8x16x64xf32>,
    %c0_11 = arith.constant 0 : index
    %c7 = arith.constant 7 : index
    %c0_12 = arith.constant 0 : index
    %7 = vector.load %arg11[%c0_11, %c7, %c0_12] : memref<8x32x64xf32, #tpu.memory_space<vmem>>, vector<8x16x64xf32>
    %8 = vector.shape_cast %7 : vector<8x16x64xf32> to vector<128x64xf32>
    %9 = arith.truncf %8 : vector<128x64xf32> to vector<128x64xbf16>
    %c0_13 = arith.constant 0 : index
    %c0_14 = arith.constant 0 : index
    %c0_15 = arith.constant 0 : index
    %10 = vector.load %arg2[%c0_13, %c0_14, %c0_15] : memref<3x64x128xbf16, #tpu.memory_space<vmem>>, vector<1x64x128xbf16>
    %11 = vector.shape_cast %10 : vector<1x64x128xbf16> to vector<64x128xbf16>
    %cst_16 = arith.constant dense<0.000000e+00> : vector<128x128xf32>
    %12 = tpu.matmul %9, %11, %cst_16 {dimension_numbers = #tpu.dot_dimension_numbers<[1], [0], [0], [1], [0, 0, 1, 1], [], []>} : vector<128x64xbf16>, vector<64x128xbf16>, vector<128x128xf32> -> vector<128x128xf32>
    %c0_17 = arith.constant 0 : index
    %c8_18 = arith.constant 8 : index
    %c0_19 = arith.constant 0 : index
    %13 = vector.load %arg11[%c0_17, %c8_18, %c0_19] : memref<8x32x64xf32, #tpu.memory_space<vmem>>, vector<8x16x64xf32>
    %14 = vector.shape_cast %13 : vector<8x16x64xf32> to vector<128x64xf32>
    %15 = arith.truncf %14 : vector<128x64xf32> to vector<128x64xbf16>
    %c1 = arith.constant 1 : index
    %c0_20 = arith.constant 0 : index
    %c0_21 = arith.constant 0 : index
    %16 = vector.load %arg2[%c1, %c0_20, %c0_21] : memref<3x64x128xbf16, #tpu.memory_space<vmem>>, vector<1x64x128xbf16>
    %17 = vector.shape_cast %16 : vector<1x64x128xbf16> to vector<64x128xbf16>
    %cst_22 = arith.constant dense<0.000000e+00> : vector<128x128xf32>
    %18 = tpu.matmul %15, %17, %cst_22 {dimension_numbers = #tpu.dot_dimension_numbers<[1], [0], [0], [1], [0, 0, 1, 1], [], []>} : vector<128x64xbf16>, vector<64x128xbf16>, vector<128x128xf32> -> vector<128x128xf32>
    %19 = arith.addf %12, %18 : vector<128x128xf32>
    %c0_23 = arith.constant 0 : index
    %c9 = arith.constant 9 : index
    %c0_24 = arith.constant 0 : index
    %20 = vector.load %arg11[%c0_23, %c9, %c0_24] : memref<8x32x64xf32, #tpu.memory_space<vmem>>, vector<8x16x64xf32>
    %21 = vector.shape_cast %20 : vector<8x16x64xf32> to vector<128x64xf32>
    %22 = arith.truncf %21 : vector<128x64xf32> to vector<128x64xbf16>
    %c2 = arith.constant 2 : index
    %c0_25 = arith.constant 0 : index
    %c0_26 = arith.constant 0 : index
    %23 = vector.load %arg2[%c2, %c0_25, %c0_26] : memref<3x64x128xbf16, #tpu.memory_space<vmem>>, vector<1x64x128xbf16>
    %24 = vector.shape_cast %23 : vector<1x64x128xbf16> to vector<64x128xbf16>
    %cst_27 = arith.constant dense<0.000000e+00> : vector<128x128xf32>
    %25 = tpu.matmul %22, %24, %cst_27 {dimension_numbers = #tpu.dot_dimension_numbers<[1], [0], [0], [1], [0, 0, 1, 1], [], []>} : vector<128x64xbf16>, vector<64x128xbf16>, vector<128x128xf32> -> vector<128x128xf32>
    %26 = arith.addf %19, %25 : vector<128x128xf32>
    %c0_28 = arith.constant 0 : index
    %c0_29 = arith.constant 0 : index
    %27 = vector.load %arg6[%c0_28, %c0_29] : memref<1x128xf32, #tpu.memory_space<vmem>>, vector<1x128xf32>
    %28 = vector.broadcast %27 : vector<1x128xf32> to vector<128x128xf32>
    %29 = arith.addf %26, %28 : vector<128x128xf32>
    %cst_30 = arith.constant 0.000000e+00 : f32
    %30 = vector.broadcast %cst_30 : f32 to vector<128x128xf32>
    %31 = arith.maximumf %29, %30 : vector<128x128xf32>
    %cst_31 = arith.constant 0.000000e+00 : f32
    %32 = vector.broadcast %cst_31 : f32 to vector<8x8x128xf32>
    %c0_32 = arith.constant 0 : index
    %c0_33 = arith.constant 0 : index
    %c0_34 = arith.constant 0 : index
    %33 = vector.load %arg12[%c0_32, %c0_33, %c0_34] : memref<8x32x128xf32, #tpu.memory_space<vmem>>, vector<8x8x128xf32>
    tpu.vector_store %arg12[%c0_32, %c0_33, %c0_34], %32 {strides = array<i32>} : memref<8x32x128xf32, #tpu.memory_space<vmem>>, vector<8x8x128xf32>,
    %cst_35 = arith.constant 0.000000e+00 : f32
    %34 = vector.broadcast %cst_35 : f32 to vector<8x8x128xf32>
    %c0_36 = arith.constant 0 : index
    %c24_37 = arith.constant 24 : index
    %c0_38 = arith.constant 0 : index
    %35 = vector.load %arg12[%c0_36, %c24_37, %c0_38] : memref<8x32x128xf32, #tpu.memory_space<vmem>>, vector<8x8x128xf32>
    tpu.vector_store %arg12[%c0_36, %c24_37, %c0_38], %34 {strides = array<i32>} : memref<8x32x128xf32, #tpu.memory_space<vmem>>, vector<8x8x128xf32>,
    %36 = vector.shape_cast %31 : vector<128x128xf32> to vector<8x16x128xf32>
    %c0_39 = arith.constant 0 : index
    %c8_40 = arith.constant 8 : index
    %c0_41 = arith.constant 0 : index
    %37 = vector.load %arg12[%c0_39, %c8_40, %c0_41] : memref<8x32x128xf32, #tpu.memory_space<vmem>>, vector<8x16x128xf32>
    tpu.vector_store %arg12[%c0_39, %c8_40, %c0_41], %36 {strides = array<i32>} : memref<8x32x128xf32, #tpu.memory_space<vmem>>, vector<8x16x128xf32>,
    %c0_42 = arith.constant 0 : index
    %c7_43 = arith.constant 7 : index
    %c0_44 = arith.constant 0 : index
    %38 = vector.load %arg12[%c0_42, %c7_43, %c0_44] : memref<8x32x128xf32, #tpu.memory_space<vmem>>, vector<8x16x128xf32>
    %39 = vector.shape_cast %38 : vector<8x16x128xf32> to vector<128x128xf32>
    %40 = arith.truncf %39 : vector<128x128xf32> to vector<128x128xbf16>
    %c0_45 = arith.constant 0 : index
    %c0_46 = arith.constant 0 : index
    %c0_47 = arith.constant 0 : index
    %41 = vector.load %arg3[%c0_45, %c0_46, %c0_47] : memref<3x128x256xbf16, #tpu.memory_space<vmem>>, vector<1x128x256xbf16>
    %42 = vector.shape_cast %41 : vector<1x128x256xbf16> to vector<128x256xbf16>
    %cst_48 = arith.constant dense<0.000000e+00> : vector<128x256xf32>
    %43 = tpu.matmul %40, %42, %cst_48 {dimension_numbers = #tpu.dot_dimension_numbers<[1], [0], [0], [1], [0, 0, 1, 1], [], []>} : vector<128x128xbf16>, vector<128x256xbf16>, vector<128x256xf32> -> vector<128x256xf32>
    %c0_49 = arith.constant 0 : index
    %c8_50 = arith.constant 8 : index
    %c0_51 = arith.constant 0 : index
    %44 = vector.load %arg12[%c0_49, %c8_50, %c0_51] : memref<8x32x128xf32, #tpu.memory_space<vmem>>, vector<8x16x128xf32>
    %45 = vector.shape_cast %44 : vector<8x16x128xf32> to vector<128x128xf32>
    %46 = arith.truncf %45 : vector<128x128xf32> to vector<128x128xbf16>
    %c1_52 = arith.constant 1 : index
    %c0_53 = arith.constant 0 : index
    %c0_54 = arith.constant 0 : index
    %47 = vector.load %arg3[%c1_52, %c0_53, %c0_54] : memref<3x128x256xbf16, #tpu.memory_space<vmem>>, vector<1x128x256xbf16>
    %48 = vector.shape_cast %47 : vector<1x128x256xbf16> to vector<128x256xbf16>
    %cst_55 = arith.constant dense<0.000000e+00> : vector<128x256xf32>
    %49 = tpu.matmul %46, %48, %cst_55 {dimension_numbers = #tpu.dot_dimension_numbers<[1], [0], [0], [1], [0, 0, 1, 1], [], []>} : vector<128x128xbf16>, vector<128x256xbf16>, vector<128x256xf32> -> vector<128x256xf32>
    %50 = arith.addf %43, %49 : vector<128x256xf32>
    %c0_56 = arith.constant 0 : index
    %c9_57 = arith.constant 9 : index
    %c0_58 = arith.constant 0 : index
    %51 = vector.load %arg12[%c0_56, %c9_57, %c0_58] : memref<8x32x128xf32, #tpu.memory_space<vmem>>, vector<8x16x128xf32>
    %52 = vector.shape_cast %51 : vector<8x16x128xf32> to vector<128x128xf32>
    %53 = arith.truncf %52 : vector<128x128xf32> to vector<128x128xbf16>
    %c2_59 = arith.constant 2 : index
    %c0_60 = arith.constant 0 : index
    %c0_61 = arith.constant 0 : index
    %54 = vector.load %arg3[%c2_59, %c0_60, %c0_61] : memref<3x128x256xbf16, #tpu.memory_space<vmem>>, vector<1x128x256xbf16>
    %55 = vector.shape_cast %54 : vector<1x128x256xbf16> to vector<128x256xbf16>
    %cst_62 = arith.constant dense<0.000000e+00> : vector<128x256xf32>
    %56 = tpu.matmul %53, %55, %cst_62 {dimension_numbers = #tpu.dot_dimension_numbers<[1], [0], [0], [1], [0, 0, 1, 1], [], []>} : vector<128x128xbf16>, vector<128x256xbf16>, vector<128x256xf32> -> vector<128x256xf32>
    %57 = arith.addf %50, %56 : vector<128x256xf32>
    %c0_63 = arith.constant 0 : index
    %c0_64 = arith.constant 0 : index
    %58 = vector.load %arg7[%c0_63, %c0_64] : memref<1x256xf32, #tpu.memory_space<vmem>>, vector<1x256xf32>
    %59 = vector.broadcast %58 : vector<1x256xf32> to vector<128x256xf32>
    %60 = arith.addf %57, %59 : vector<128x256xf32>
    %cst_65 = arith.constant 0.000000e+00 : f32
    %61 = vector.broadcast %cst_65 : f32 to vector<128x256xf32>
    %62 = arith.maximumf %60, %61 : vector<128x256xf32>
    %cst_66 = arith.constant 0.000000e+00 : bf16
    %63 = vector.broadcast %cst_66 : bf16 to vector<1x16x256xbf16>
    %c0_67 = arith.constant 0 : index
    %c0_68 = arith.constant 0 : index
    %c0_69 = arith.constant 0 : index
    %64 = vector.load %arg13[%c0_67, %c0_68, %c0_69] : memref<10x16x256xbf16, #tpu.memory_space<vmem>>, vector<1x16x256xbf16>
    tpu.vector_store %arg13[%c0_67, %c0_68, %c0_69], %63 {strides = array<i32>} : memref<10x16x256xbf16, #tpu.memory_space<vmem>>, vector<1x16x256xbf16>,
    %cst_70 = arith.constant 0.000000e+00 : bf16
    %65 = vector.broadcast %cst_70 : bf16 to vector<1x16x256xbf16>
    %c9_71 = arith.constant 9 : index
    %c0_72 = arith.constant 0 : index
    %c0_73 = arith.constant 0 : index
    %66 = vector.load %arg13[%c9_71, %c0_72, %c0_73] : memref<10x16x256xbf16, #tpu.memory_space<vmem>>, vector<1x16x256xbf16>
    tpu.vector_store %arg13[%c9_71, %c0_72, %c0_73], %65 {strides = array<i32>} : memref<10x16x256xbf16, #tpu.memory_space<vmem>>, vector<1x16x256xbf16>,
    %67 = vector.shape_cast %62 : vector<128x256xf32> to vector<8x16x256xf32>
    %68 = arith.truncf %67 : vector<8x16x256xf32> to vector<8x16x256xbf16>
    %c1_74 = arith.constant 1 : index
    %c0_75 = arith.constant 0 : index
    %c0_76 = arith.constant 0 : index
    %69 = vector.load %arg13[%c1_74, %c0_75, %c0_76] : memref<10x16x256xbf16, #tpu.memory_space<vmem>>, vector<8x16x256xbf16>
    tpu.vector_store %arg13[%c1_74, %c0_75, %c0_76], %68 {strides = array<i32>} : memref<10x16x256xbf16, #tpu.memory_space<vmem>>, vector<8x16x256xbf16>,
    %c0_77 = arith.constant 0 : index
    %c0_78 = arith.constant 0 : index
    %c0_79 = arith.constant 0 : index
    %70 = vector.load %arg13[%c0_77, %c0_78, %c0_79] : memref<10x16x256xbf16, #tpu.memory_space<vmem>>, vector<8x16x256xbf16>
    %71 = vector.shape_cast %70 : vector<8x16x256xbf16> to vector<128x256xbf16>
    %c0_80 = arith.constant 0 : index
    %c0_81 = arith.constant 0 : index
    %c0_82 = arith.constant 0 : index
    %72 = vector.load %arg4[%c0_80, %c0_81, %c0_82] : memref<3x256x256xbf16, #tpu.memory_space<vmem>>, vector<1x256x256xbf16>
    %73 = vector.shape_cast %72 : vector<1x256x256xbf16> to vector<256x256xbf16>
    %cst_83 = arith.constant dense<0.000000e+00> : vector<128x256xf32>
    %74 = tpu.matmul %71, %73, %cst_83 {dimension_numbers = #tpu.dot_dimension_numbers<[1], [0], [0], [1], [0, 0, 1, 1], [], []>} : vector<128x256xbf16>, vector<256x256xbf16>, vector<128x256xf32> -> vector<128x256xf32>
    %c1_84 = arith.constant 1 : index
    %c0_85 = arith.constant 0 : index
    %c0_86 = arith.constant 0 : index
    %75 = vector.load %arg13[%c1_84, %c0_85, %c0_86] : memref<10x16x256xbf16, #tpu.memory_space<vmem>>, vector<8x16x256xbf16>
    %76 = vector.shape_cast %75 : vector<8x16x256xbf16> to vector<128x256xbf16>
    %c1_87 = arith.constant 1 : index
    %c0_88 = arith.constant 0 : index
    %c0_89 = arith.constant 0 : index
    %77 = vector.load %arg4[%c1_87, %c0_88, %c0_89] : memref<3x256x256xbf16, #tpu.memory_space<vmem>>, vector<1x256x256xbf16>
    %78 = vector.shape_cast %77 : vector<1x256x256xbf16> to vector<256x256xbf16>
    %cst_90 = arith.constant dense<0.000000e+00> : vector<128x256xf32>
    %79 = tpu.matmul %76, %78, %cst_90 {dimension_numbers = #tpu.dot_dimension_numbers<[1], [0], [0], [1], [0, 0, 1, 1], [], []>} : vector<128x256xbf16>, vector<256x256xbf16>, vector<128x256xf32> -> vector<128x256xf32>
    %80 = arith.addf %74, %79 : vector<128x256xf32>
    %c2_91 = arith.constant 2 : index
    %c0_92 = arith.constant 0 : index
    %c0_93 = arith.constant 0 : index
    %81 = vector.load %arg13[%c2_91, %c0_92, %c0_93] : memref<10x16x256xbf16, #tpu.memory_space<vmem>>, vector<8x16x256xbf16>
    %82 = vector.shape_cast %81 : vector<8x16x256xbf16> to vector<128x256xbf16>
    %c2_94 = arith.constant 2 : index
    %c0_95 = arith.constant 0 : index
    %c0_96 = arith.constant 0 : index
    %83 = vector.load %arg4[%c2_94, %c0_95, %c0_96] : memref<3x256x256xbf16, #tpu.memory_space<vmem>>, vector<1x256x256xbf16>
    %84 = vector.shape_cast %83 : vector<1x256x256xbf16> to vector<256x256xbf16>
    %cst_97 = arith.constant dense<0.000000e+00> : vector<128x256xf32>
    %85 = tpu.matmul %82, %84, %cst_97 {dimension_numbers = #tpu.dot_dimension_numbers<[1], [0], [0], [1], [0, 0, 1, 1], [], []>} : vector<128x256xbf16>, vector<256x256xbf16>, vector<128x256xf32> -> vector<128x256xf32>
    %86 = arith.addf %80, %85 : vector<128x256xf32>
    %c0_98 = arith.constant 0 : index
    %c0_99 = arith.constant 0 : index
    %87 = vector.load %arg8[%c0_98, %c0_99] : memref<1x256xf32, #tpu.memory_space<vmem>>, vector<1x256xf32>
    %88 = vector.broadcast %87 : vector<1x256xf32> to vector<128x256xf32>
    %89 = arith.addf %86, %88 : vector<128x256xf32>
    %cst_100 = arith.constant 0.000000e+00 : f32
    %90 = vector.broadcast %cst_100 : f32 to vector<128x256xf32>
    %91 = arith.maximumf %89, %90 : vector<128x256xf32>
    %cst_101 = arith.constant 0.000000e+00 : bf16
    %92 = vector.broadcast %cst_101 : bf16 to vector<1x16x256xbf16>
    %c0_102 = arith.constant 0 : index
    %c0_103 = arith.constant 0 : index
    %c0_104 = arith.constant 0 : index
    %93 = vector.load %arg14[%c0_102, %c0_103, %c0_104] : memref<10x16x256xbf16, #tpu.memory_space<vmem>>, vector<1x16x256xbf16>
    tpu.vector_store %arg14[%c0_102, %c0_103, %c0_104], %92 {strides = array<i32>} : memref<10x16x256xbf16, #tpu.memory_space<vmem>>, vector<1x16x256xbf16>,
    %cst_105 = arith.constant 0.000000e+00 : bf16
    %94 = vector.broadcast %cst_105 : bf16 to vector<1x16x256xbf16>
    %c9_106 = arith.constant 9 : index
    %c0_107 = arith.constant 0 : index
    %c0_108 = arith.constant 0 : index
    %95 = vector.load %arg14[%c9_106, %c0_107, %c0_108] : memref<10x16x256xbf16, #tpu.memory_space<vmem>>, vector<1x16x256xbf16>
    tpu.vector_store %arg14[%c9_106, %c0_107, %c0_108], %94 {strides = array<i32>} : memref<10x16x256xbf16, #tpu.memory_space<vmem>>, vector<1x16x256xbf16>,
    %96 = vector.shape_cast %91 : vector<128x256xf32> to vector<8x16x256xf32>
    %97 = arith.truncf %96 : vector<8x16x256xf32> to vector<8x16x256xbf16>
    %c1_109 = arith.constant 1 : index
    %c0_110 = arith.constant 0 : index
    %c0_111 = arith.constant 0 : index
    %98 = vector.load %arg14[%c1_109, %c0_110, %c0_111] : memref<10x16x256xbf16, #tpu.memory_space<vmem>>, vector<8x16x256xbf16>
    tpu.vector_store %arg14[%c1_109, %c0_110, %c0_111], %97 {strides = array<i32>} : memref<10x16x256xbf16, #tpu.memory_space<vmem>>, vector<8x16x256xbf16>,
    %c0_112 = arith.constant 0 : index
    %c0_113 = arith.constant 0 : index
    %c0_114 = arith.constant 0 : index
    %99 = vector.load %arg14[%c0_112, %c0_113, %c0_114] : memref<10x16x256xbf16, #tpu.memory_space<vmem>>, vector<8x16x256xbf16>
    %100 = vector.shape_cast %99 : vector<8x16x256xbf16> to vector<128x256xbf16>
    %c0_115 = arith.constant 0 : index
    %c0_116 = arith.constant 0 : index
    %c0_117 = arith.constant 0 : index
    %101 = vector.load %arg5[%c0_115, %c0_116, %c0_117] : memref<3x256x256xbf16, #tpu.memory_space<vmem>>, vector<1x256x256xbf16>
    %102 = vector.shape_cast %101 : vector<1x256x256xbf16> to vector<256x256xbf16>
    %cst_118 = arith.constant dense<0.000000e+00> : vector<128x256xf32>
    %103 = tpu.matmul %100, %102, %cst_118 {dimension_numbers = #tpu.dot_dimension_numbers<[1], [0], [0], [1], [0, 0, 1, 1], [], []>} : vector<128x256xbf16>, vector<256x256xbf16>, vector<128x256xf32> -> vector<128x256xf32>
    %c1_119 = arith.constant 1 : index
    %c0_120 = arith.constant 0 : index
    %c0_121 = arith.constant 0 : index
    %104 = vector.load %arg14[%c1_119, %c0_120, %c0_121] : memref<10x16x256xbf16, #tpu.memory_space<vmem>>, vector<8x16x256xbf16>
    %105 = vector.shape_cast %104 : vector<8x16x256xbf16> to vector<128x256xbf16>
    %c1_122 = arith.constant 1 : index
    %c0_123 = arith.constant 0 : index
    %c0_124 = arith.constant 0 : index
    %106 = vector.load %arg5[%c1_122, %c0_123, %c0_124] : memref<3x256x256xbf16, #tpu.memory_space<vmem>>, vector<1x256x256xbf16>
    %107 = vector.shape_cast %106 : vector<1x256x256xbf16> to vector<256x256xbf16>
    %cst_125 = arith.constant dense<0.000000e+00> : vector<128x256xf32>
    %108 = tpu.matmul %105, %107, %cst_125 {dimension_numbers = #tpu.dot_dimension_numbers<[1], [0], [0], [1], [0, 0, 1, 1], [], []>} : vector<128x256xbf16>, vector<256x256xbf16>, vector<128x256xf32> -> vector<128x256xf32>
    %109 = arith.addf %103, %108 : vector<128x256xf32>
    %c2_126 = arith.constant 2 : index
    %c0_127 = arith.constant 0 : index
    %c0_128 = arith.constant 0 : index
    %110 = vector.load %arg14[%c2_126, %c0_127, %c0_128] : memref<10x16x256xbf16, #tpu.memory_space<vmem>>, vector<8x16x256xbf16>
    %111 = vector.shape_cast %110 : vector<8x16x256xbf16> to vector<128x256xbf16>
    %c2_129 = arith.constant 2 : index
    %c0_130 = arith.constant 0 : index
    %c0_131 = arith.constant 0 : index
    %112 = vector.load %arg5[%c2_129, %c0_130, %c0_131] : memref<3x256x256xbf16, #tpu.memory_space<vmem>>, vector<1x256x256xbf16>
    %113 = vector.shape_cast %112 : vector<1x256x256xbf16> to vector<256x256xbf16>
    %cst_132 = arith.constant dense<0.000000e+00> : vector<128x256xf32>
    %114 = tpu.matmul %111, %113, %cst_132 {dimension_numbers = #tpu.dot_dimension_numbers<[1], [0], [0], [1], [0, 0, 1, 1], [], []>} : vector<128x256xbf16>, vector<256x256xbf16>, vector<128x256xf32> -> vector<128x256xf32>
    %115 = arith.addf %109, %114 : vector<128x256xf32>
    %c0_133 = arith.constant 0 : index
    %c0_134 = arith.constant 0 : index
    %116 = vector.load %arg9[%c0_133, %c0_134] : memref<1x256xf32, #tpu.memory_space<vmem>>, vector<1x256xf32>
    %117 = vector.broadcast %116 : vector<1x256xf32> to vector<128x256xf32>
    %118 = arith.addf %115, %117 : vector<128x256xf32>
    %cst_135 = arith.constant 0.000000e+00 : f32
    %119 = vector.broadcast %cst_135 : f32 to vector<128x256xf32>
    %120 = arith.maximumf %118, %119 : vector<128x256xf32>
    %121 = vector.shape_cast %120 : vector<128x256xf32> to vector<8x16x256xf32>
    %c0_136 = arith.constant 0 : index
    %c0_137 = arith.constant 0 : index
    %c0_138 = arith.constant 0 : index
    %c0_139 = arith.constant 0 : index
    %122 = vector.load %arg10[%c0_136, %c0_137, %c0_138, %c0_139] : memref<1x8x16x256xf32, #tpu.memory_space<vmem>>, vector<1x8x16x256xf32>
    %123 = vector.shape_cast %122 : vector<1x8x16x256xf32> to vector<8x16x256xf32>
    %124 = vector.shape_cast %121 : vector<8x16x256xf32> to vector<1x8x16x256xf32>
    tpu.vector_store %arg10[%c0_136, %c0_137, %c0_138, %c0_139], %124 {strides = array<i32>} : memref<1x8x16x256xf32, #tpu.memory_space<vmem>>, vector<1x8x16x256xf32>,
    return
  }
  func.func @transform_0(%arg0: i32) -> (i32, i32, i32, i32) {
    %c0_i32 = arith.constant 0 : i32
    %c0_i32_0 = arith.constant 0 : i32
    %c0_i32_1 = arith.constant 0 : i32
    %c0_i32_2 = arith.constant 0 : i32
    return %arg0, %c0_i32, %c0_i32_0, %c0_i32_1 : i32, i32, i32, i32
  }
  func.func @transform_1(%arg0: i32) -> (i32, i32, i32) {
    %c0_i32 = arith.constant 0 : i32
    %c0_i32_0 = arith.constant 0 : i32
    %c0_i32_1 = arith.constant 0 : i32
    %c0_i32_2 = arith.constant 0 : i32
    return %c0_i32, %c0_i32_0, %c0_i32_1 : i32, i32, i32
  }
  func.func @transform_2(%arg0: i32) -> (i32, i32, i32) {
    %c0_i32 = arith.constant 0 : i32
    %c0_i32_0 = arith.constant 0 : i32
    %c0_i32_1 = arith.constant 0 : i32
    %c0_i32_2 = arith.constant 0 : i32
    return %c0_i32, %c0_i32_0, %c0_i32_1 : i32, i32, i32
  }
  func.func @transform_3(%arg0: i32) -> (i32, i32, i32) {
    %c0_i32 = arith.constant 0 : i32
    %c0_i32_0 = arith.constant 0 : i32
    %c0_i32_1 = arith.constant 0 : i32
    %c0_i32_2 = arith.constant 0 : i32
    return %c0_i32, %c0_i32_0, %c0_i32_1 : i32, i32, i32
  }
  func.func @transform_4(%arg0: i32) -> (i32, i32, i32) {
    %c0_i32 = arith.constant 0 : i32
    %c0_i32_0 = arith.constant 0 : i32
    %c0_i32_1 = arith.constant 0 : i32
    %c0_i32_2 = arith.constant 0 : i32
    return %c0_i32, %c0_i32_0, %c0_i32_1 : i32, i32, i32
  }
  func.func @transform_5(%arg0: i32) -> (i32, i32) {
    %c0_i32 = arith.constant 0 : i32
    %c0_i32_0 = arith.constant 0 : i32
    %c0_i32_1 = arith.constant 0 : i32
    return %c0_i32, %c0_i32_0 : i32, i32
  }
  func.func @transform_6(%arg0: i32) -> (i32, i32) {
    %c0_i32 = arith.constant 0 : i32
    %c0_i32_0 = arith.constant 0 : i32
    %c0_i32_1 = arith.constant 0 : i32
    return %c0_i32, %c0_i32_0 : i32, i32
  }
  func.func @transform_7(%arg0: i32) -> (i32, i32) {
    %c0_i32 = arith.constant 0 : i32
    %c0_i32_0 = arith.constant 0 : i32
    %c0_i32_1 = arith.constant 0 : i32
    return %c0_i32, %c0_i32_0 : i32, i32
  }
  func.func @transform_8(%arg0: i32) -> (i32, i32) {
    %c0_i32 = arith.constant 0 : i32
    %c0_i32_0 = arith.constant 0 : i32
    %c0_i32_1 = arith.constant 0 : i32
    return %c0_i32, %c0_i32_0 : i32, i32
  }
  func.func @transform_9(%arg0: i32) -> (i32, i32, i32, i32) {
    %c0_i32 = arith.constant 0 : i32
    %c0_i32_0 = arith.constant 0 : i32
    %c0_i32_1 = arith.constant 0 : i32
    %c0_i32_2 = arith.constant 0 : i32
    return %arg0, %c0_i32, %c0_i32_0, %c0_i32_1 : i32, i32, i32, i32
  }
}

</mosaic_0001>

<llo_original>
// kernel: tpu_custom_call.1
$region0: #{tpu_custom_call.1}
  #allocation0 [shape = 'u32[]', space=smem, size = 0x4, offset = 0x4, fixed_abs, tag = 'smem constant byte address 0x4 - core index']
  #allocation1 [shape = 'u32[144,128]{1,0:T(1,128)}', space=vmem, size = 0x12000, scoped, tag = 'internal scratch']
  #allocation2 [shape = 'f32[8,32,64]{2,1,0:T(8,128)}', space=vmem, size = 0x20000, scoped, tag = 'scratch operand']
  #allocation3 [shape = 'f32[8,32,128]{2,1,0:T(8,128)}', space=vmem, size = 0x20000, scoped, tag = 'scratch operand']
  #allocation4 [shape = 'bf16[10,16,256]{2,1,0:T(8,128)(2,1)}', space=vmem, size = 0x14000, scoped, tag = 'scratch operand']
  #allocation5 [shape = 'bf16[10,16,256]{2,1,0:T(8,128)(2,1)}', space=vmem, size = 0x14000, scoped, tag = 'scratch operand']
  %s0 = inlined_call_operand.hbm [shape: f32[2,8,16,64], index: 0, kind: input, shape index: {}]
  %s1 = inlined_call_operand.hbm [shape: bf16[3,64,128], index: 1, kind: input, shape index: {}]
  %s2 = inlined_call_operand.hbm [shape: bf16[3,128,256], index: 2, kind: input, shape index: {}]
  %s3 = inlined_call_operand.hbm [shape: bf16[3,256,256], index: 3, kind: input, shape index: {}]
  %s4 = inlined_call_operand.hbm [shape: bf16[3,256,256], index: 4, kind: input, shape index: {}]
  %s5 = inlined_call_operand.vmem [shape: f32[1,128], index: 5, kind: input, shape index: {}]
  %s6 = inlined_call_operand.vmem [shape: f32[1,256], index: 6, kind: input, shape index: {}]
  %s7 = inlined_call_operand.vmem [shape: f32[1,256], index: 7, kind: input, shape index: {}]
  %s8 = inlined_call_operand.vmem [shape: f32[1,256], index: 8, kind: input, shape index: {}]
  %s9 = inlined_call_operand.hbm [shape: f32[2,8,16,256], index: 9, kind: output, shape index: {}]
  %s10 = sld [smem:[#allocation0]]
  $region89: #{tpu_custom_call.1} parent=0
    _
  %s12 = ssub.s32 1, %s10
  %s13 = scalar_select 0, %s12, %s10
  $region1: #{tpu_custom_call.1} parent=0
    #allocation6 [shape = 'u8[131072]{0}', space=vmem, size = 0x20000, scoped, tag = 'input window, operand 0']
    #allocation7 [shape = 's32[2]{0}', space=sflag, size = 0x8, scoped, tag = 'scoped memory for tpu_custom_call.1']
    #allocation8 [shape = 's32[2]{0}', space=sflag, size = 0x8, scoped, tag = 'scoped memory for tpu_custom_call.1']
    #allocation9 [shape = 'u8[49152]{0}', space=vmem, size = 0xc000, scoped, tag = 'input window, operand 1, single buffered']
    #allocation10 [shape = 's32[1]{0}', space=sflag, size = 0x4, scoped, tag = 'scoped memory for tpu_custom_call.1']
    #allocation11 [shape = 'u8[196608]{0}', space=vmem, size = 0x30000, scoped, tag = 'input window, operand 2, single buffered']
    #allocation12 [shape = 'u8[393216]{0}', space=vmem, size = 0x60000, scoped, tag = 'input window, operand 3, single buffered']
    #allocation13 [shape = 's32[1]{0}', space=sflag, size = 0x4, scoped, tag = 'scoped memory for tpu_custom_call.1']
    #allocation14 [shape = 'u8[393216]{0}', space=vmem, size = 0x60000, scoped, tag = 'input window, operand 4, single buffered']
    #allocation15 [shape = 'u8[262144]{0}', space=vmem, size = 0x40000, scoped, tag = 'output window, operand 0']
    %14 = vsyncpa [#allocation7], 0
    %s15 = scalar_lea.sflag [#allocation7], 1
    %16 = vsyncpa %s15, 0
    %17 = vsyncpa [#allocation10], 0
    %18 = vsyncpa [#allocation13], 0
    %19 = vsyncpa [#allocation8], 0
    %s20 = scalar_lea.sflag [#allocation8], 1
    %21 = vsyncpa %s20, 0
    loop: start=0, step=1, limit=4
    $region2: #{tpu_custom_call.1} parent=1 // loop_pre_header
      _
    $region3: #{tpu_custom_call.1} parent=1 // loop_header
      %s23 = sphi 0, %s27
      %p24 = scmp.ge.s32.totalorder %s23, 4
      %s33 = sphi 0, %s35
      %s36 = sphi 0, %s33
      %s37 = sphi 0, %s36
      %s53 = sphi 0, %s37
      %s57 = sphi 0, %s57
      %s59 = sphi 0, %s57
      %s60 = sphi 0, %s59
      %s74 = sphi 0, %s60
      %s78 = sphi 0, %s78
      %s80 = sphi 0, %s78
      %s81 = sphi 0, %s80
      %s95 = sphi 0, %s81
      %s99 = sphi 0, %s99
      %s101 = sphi 0, %s99
      %s102 = sphi 0, %s101
      %s116 = sphi 0, %s102
      %s120 = sphi 0, %s120
      %s122 = sphi 0, %s120
      %s123 = sphi 0, %s122
      %s137 = sphi 0, %s123
      %s141 = sphi 0, %s141
      %s143 = sphi 0, %s141
      %s144 = sphi 0, %s143
      %s158 = sphi 0, %s144
      %s162 = sphi 0, %s162
      %s164 = sphi 0, %s162
      %s165 = sphi 0, %s164
      %s179 = sphi 0, %s165
      %s183 = sphi 0, %s183
      %s185 = sphi 0, %s183
      %s186 = sphi 0, %s185
      %s200 = sphi 0, %s186
      %s204 = sphi 0, %s204
      %s206 = sphi 0, %s204
      %s207 = sphi 0, %s206
      %s221 = sphi 0, %s207
      %s227 = sphi 0, %s229
      %s230 = sphi 0, %s227
      %s231 = sphi 0, %s230
      %s247 = sphi 0, %s231
    $region4: #{tpu_custom_call.1} parent=1 // loop_header_branch
      %26 = sbr.rel (%p24) target = $region8
    $region5: #{tpu_custom_call.1} parent=1 // loop_body
      %s28 = ssub.s32 %s23, 1
      %s29 = ssub.s32 %s23, 2
      %s30 = sadd.s32 %s23, 1
      %s31 = ssub.s32 %s23, %s30
      %p32 = scmp.eq.s32.totalorder %s31, 0
      %s34 = sadd.s32 %s33, 1
      %s35 = scalar_select %p32, %s33, %s34
      %p38 = pneg %p32
      %p39 = scmp.eq.s32.totalorder %s23, 1
      %p40 = por %p38, %p39
      %p41 = scmp.ne.s32.totalorder %s33, %s36
      %p42 = scmp.eq.s32.totalorder %s23, 0
      %p43 = por %p41, %p42
      %p44 = scmp.ne.s32.totalorder %s33, %s36
      %p45 = scmp.eq.s32.totalorder %s28, 1
      %p46 = por %p44, %p45
      %p47 = scmp.ne.s32.totalorder %s36, %s37
      %p48 = scmp.eq.s32.totalorder %s28, 0
      %p49 = por %p47, %p48
      %p50 = scmp.ne.s32.totalorder %s36, %s37
      %p51 = scmp.eq.s32.totalorder %s29, 1
      %p52 = por %p50, %p51
      %p54 = scmp.ne.s32.totalorder %s37, %s53
      %p55 = scmp.eq.s32.totalorder %s29, 0
      %p56 = por %p54, %p55
      %s58 = sadd.s32 %s57, 1
      %p61 = scmp.eq.s32.totalorder %s23, 1
      %p62 = scmp.ne.s32.totalorder %s57, %s59
      %p63 = scmp.eq.s32.totalorder %s23, 0
      %p64 = por %p62, %p63
      %p65 = scmp.ne.s32.totalorder %s57, %s59
      %p66 = scmp.eq.s32.totalorder %s28, 1
      %p67 = por %p65, %p66
      %p68 = scmp.ne.s32.totalorder %s59, %s60
      %p69 = scmp.eq.s32.totalorder %s28, 0
      %p70 = por %p68, %p69
      %p71 = scmp.ne.s32.totalorder %s59, %s60
      %p72 = scmp.eq.s32.totalorder %s29, 1
      %p73 = por %p71, %p72
      %p75 = scmp.ne.s32.totalorder %s60, %s74
      %p76 = scmp.eq.s32.totalorder %s29, 0
      %p77 = por %p75, %p76
      %s79 = sadd.s32 %s78, 1
      %p82 = scmp.eq.s32.totalorder %s23, 1
      %p83 = scmp.ne.s32.totalorder %s78, %s80
      %p84 = scmp.eq.s32.totalorder %s23, 0
      %p85 = por %p83, %p84
      %p86 = scmp.ne.s32.totalorder %s78, %s80
      %p87 = scmp.eq.s32.totalorder %s28, 1
      %p88 = por %p86, %p87
      %p89 = scmp.ne.s32.totalorder %s80, %s81
      %p90 = scmp.eq.s32.totalorder %s28, 0
      %p91 = por %p89, %p90
      %p92 = scmp.ne.s32.totalorder %s80, %s81
      %p93 = scmp.eq.s32.totalorder %s29, 1
      %p94 = por %p92, %p93
      %p96 = scmp.ne.s32.totalorder %s81, %s95
      %p97 = scmp.eq.s32.totalorder %s29, 0
      %p98 = por %p96, %p97
      %s100 = sadd.s32 %s99, 1
      %p103 = scmp.eq.s32.totalorder %s23, 1
      %p104 = scmp.ne.s32.totalorder %s99, %s101
      %p105 = scmp.eq.s32.totalorder %s23, 0
      %p106 = por %p104, %p105
      %p107 = scmp.ne.s32.totalorder %s99, %s101
      %p108 = scmp.eq.s32.totalorder %s28, 1
      %p109 = por %p107, %p108
      %p110 = scmp.ne.s32.totalorder %s101, %s102
      %p111 = scmp.eq.s32.totalorder %s28, 0
      %p112 = por %p110, %p111
      %p113 = scmp.ne.s32.totalorder %s101, %s102
      %p114 = scmp.eq.s32.totalorder %s29, 1
      %p115 = por %p113, %p114
      %p117 = scmp.ne.s32.totalorder %s102, %s116
      %p118 = scmp.eq.s32.totalorder %s29, 0
      %p119 = por %p117, %p118
      %s121 = sadd.s32 %s120, 1
      %p124 = scmp.eq.s32.totalorder %s23, 1
      %p125 = scmp.ne.s32.totalorder %s120, %s122
      %p126 = scmp.eq.s32.totalorder %s23, 0
      %p127 = por %p125, %p126
      %p128 = scmp.ne.s32.totalorder %s120, %s122
      %p129 = scmp.eq.s32.totalorder %s28, 1
      %p130 = por %p128, %p129
      %p131 = scmp.ne.s32.totalorder %s122, %s123
      %p132 = scmp.eq.s32.totalorder %s28, 0
      %p133 = por %p131, %p132
      %p134 = scmp.ne.s32.totalorder %s122, %s123
      %p135 = scmp.eq.s32.totalorder %s29, 1
      %p136 = por %p134, %p135
      %p138 = scmp.ne.s32.totalorder %s123, %s137
      %p139 = scmp.eq.s32.totalorder %s29, 0
      %p140 = por %p138, %p139
      %s142 = sadd.s32 %s141, 1
      %p145 = scmp.eq.s32.totalorder %s23, 1
      %p146 = scmp.ne.s32.totalorder %s141, %s143
      %p147 = scmp.eq.s32.totalorder %s23, 0
      %p148 = por %p146, %p147
      %p149 = scmp.ne.s32.totalorder %s141, %s143
      %p150 = scmp.eq.s32.totalorder %s28, 1
      %p151 = por %p149, %p150
      %p152 = scmp.ne.s32.totalorder %s143, %s144
      %p153 = scmp.eq.s32.totalorder %s28, 0
      %p154 = por %p152, %p153
      %p155 = scmp.ne.s32.totalorder %s143, %s144
      %p156 = scmp.eq.s32.totalorder %s29, 1
      %p157 = por %p155, %p156
      %p159 = scmp.ne.s32.totalorder %s144, %s158
      %p160 = scmp.eq.s32.totalorder %s29, 0
      %p161 = por %p159, %p160
      %s163 = sadd.s32 %s162, 1
      %p166 = scmp.eq.s32.totalorder %s23, 1
      %p167 = scmp.ne.s32.totalorder %s162, %s164
      %p168 = scmp.eq.s32.totalorder %s23, 0
      %p169 = por %p167, %p168
      %p170 = scmp.ne.s32.totalorder %s162, %s164
      %p171 = scmp.eq.s32.totalorder %s28, 1
      %p172 = por %p170, %p171
      %p173 = scmp.ne.s32.totalorder %s164, %s165
      %p174 = scmp.eq.s32.totalorder %s28, 0
      %p175 = por %p173, %p174
      %p176 = scmp.ne.s32.totalorder %s164, %s165
      %p177 = scmp.eq.s32.totalorder %s29, 1
      %p178 = por %p176, %p177
      %p180 = scmp.ne.s32.totalorder %s165, %s179
      %p181 = scmp.eq.s32.totalorder %s29, 0
      %p182 = por %p180, %p181
      %s184 = sadd.s32 %s183, 1
      %p187 = scmp.eq.s32.totalorder %s23, 1
      %p188 = scmp.ne.s32.totalorder %s183, %s185
      %p189 = scmp.eq.s32.totalorder %s23, 0
      %p190 = por %p188, %p189
      %p191 = scmp.ne.s32.totalorder %s183, %s185
      %p192 = scmp.eq.s32.totalorder %s28, 1
      %p193 = por %p191, %p192
      %p194 = scmp.ne.s32.totalorder %s185, %s186
      %p195 = scmp.eq.s32.totalorder %s28, 0
      %p196 = por %p194, %p195
      %p197 = scmp.ne.s32.totalorder %s185, %s186
      %p198 = scmp.eq.s32.totalorder %s29, 1
      %p199 = por %p197, %p198
      %p201 = scmp.ne.s32.totalorder %s186, %s200
      %p202 = scmp.eq.s32.totalorder %s29, 0
      %p203 = por %p201, %p202
      %s205 = sadd.s32 %s204, 1
      %p208 = scmp.eq.s32.totalorder %s23, 1
      %p209 = scmp.ne.s32.totalorder %s204, %s206
      %p210 = scmp.eq.s32.totalorder %s23, 0
      %p211 = por %p209, %p210
      %p212 = scmp.ne.s32.totalorder %s204, %s206
      %p213 = scmp.eq.s32.totalorder %s28, 1
      %p214 = por %p212, %p213
      %p215 = scmp.ne.s32.totalorder %s206, %s207
      %p216 = scmp.eq.s32.totalorder %s28, 0
      %p217 = por %p215, %p216
      %p218 = scmp.ne.s32.totalorder %s206, %s207
      %p219 = scmp.eq.s32.totalorder %s29, 1
      %p220 = por %p218, %p219
      %p222 = scmp.ne.s32.totalorder %s207, %s221
      %p223 = scmp.eq.s32.totalorder %s29, 0
      %p224 = por %p222, %p223
      %s225 = ssub.s32 %s23, %s30
      %p226 = scmp.eq.s32.totalorder %s225, 0
      %s228 = sadd.s32 %s227, 1
      %s229 = scalar_select %p226, %s227, %s228
      %p232 = pneg %p226
      %p233 = scmp.eq.s32.totalorder %s23, 1
      %p234 = por %p232, %p233
      %p235 = scmp.ne.s32.totalorder %s227, %s230
      %p236 = scmp.eq.s32.totalorder %s23, 0
      %p237 = por %p235, %p236
      %p238 = scmp.ne.s32.totalorder %s227, %s230
      %p239 = scmp.eq.s32.totalorder %s28, 1
      %p240 = por %p238, %p239
      %p241 = scmp.ne.s32.totalorder %s230, %s231
      %p242 = scmp.eq.s32.totalorder %s28, 0
      %p243 = por %p241, %p242
      %p244 = scmp.ne.s32.totalorder %s230, %s231
      %p245 = scmp.eq.s32.totalorder %s29, 1
      %p246 = por %p244, %p245
      %p248 = scmp.ne.s32.totalorder %s231, %s247
      %p249 = scmp.eq.s32.totalorder %s29, 0
      %p250 = por %p248, %p249
      %p251 = scmp.le.s32.totalorder 1, %s23
      %p252 = scmp.lt.s32.totalorder %s23, 3
      %p253 = pnand %p251, %p252
      %p254 = pneg %p253
      // Predicated region
      $region9: #{tpu_custom_call.1} parent=5 // pred_check
        _
      $region10: #{tpu_custom_call.1} parent=5 // pred_check_branch
        %256 = sbr.rel (%p253) target = $region12
      $region11: #{tpu_custom_call.1} parent=5 // pred_region
        %s257 = ssub.s32 %s23, 1
        // Predicated region
        $region13: #{tpu_custom_call.1} parent=11 // pred_check
          %p258 = pneg %p70
        $region14: #{tpu_custom_call.1} parent=11 // pred_check_branch
          %260 = sbr.rel (%p258) target = $region16
        $region15: #{tpu_custom_call.1} parent=11 // pred_region
          %s262 = ssub.s32 1536, 1536
          %263 = vsyncadd [#allocation10], %s262
          %s264 = sshll.u32 [#allocation9], 4
          %s265 = int_to_ptr.vmem [resolvable:$true] %s264
          %270 = dma.hbm_to_vmem [thread:$0]  %s1, 1536, %s265, [#allocation10], 64, 64, 4
        $region16: #{tpu_custom_call.1} parent=11 // pred_fallthru
          _
        // Predicated region
        $region17: #{tpu_custom_call.1} parent=11 // pred_check
          %p271 = pneg %p91
        $region18: #{tpu_custom_call.1} parent=11 // pred_check_branch
          %273 = sbr.rel (%p271) target = $region20
        $region19: #{tpu_custom_call.1} parent=11 // pred_region
          %s275 = ssub.s32 6144, 6144
          %276 = vsyncadd [#allocation10], %s275
          %s277 = sshll.u32 [#allocation11], 4
          %s278 = int_to_ptr.vmem [resolvable:$true] %s277
          %283 = dma.hbm_to_vmem [thread:$0]  %s2, 6144, %s278, [#allocation10], 128, 128, 8
        $region20: #{tpu_custom_call.1} parent=11 // pred_fallthru
          _
        // Predicated region
        $region21: #{tpu_custom_call.1} parent=11 // pred_check
          %p284 = pneg %p112
        $region22: #{tpu_custom_call.1} parent=11 // pred_check_branch
          %286 = sbr.rel (%p284) target = $region24
        $region23: #{tpu_custom_call.1} parent=11 // pred_region
          %s288 = ssub.s32 12288, 12288
          %289 = vsyncadd [#allocation13], %s288
          %s290 = sshll.u32 [#allocation12], 4
          %s291 = int_to_ptr.vmem [resolvable:$true] %s290
          %296 = dma.hbm_to_vmem [thread:$0]  %s3, 12288, %s291, [#allocation13], 128, 128, 8
        $region24: #{tpu_custom_call.1} parent=11 // pred_fallthru
          _
        // Predicated region
        $region25: #{tpu_custom_call.1} parent=11 // pred_check
          %p297 = pneg %p133
        $region26: #{tpu_custom_call.1} parent=11 // pred_check_branch
          %299 = sbr.rel (%p297) target = $region28
        $region27: #{tpu_custom_call.1} parent=11 // pred_region
          %s301 = ssub.s32 12288, 12288
          %302 = vsyncadd [#allocation13], %s301
          %s303 = sshll.u32 [#allocation14], 4
          %s304 = int_to_ptr.vmem [resolvable:$true] %s303
          %309 = dma.hbm_to_vmem [thread:$0]  %s4, 12288, %s304, [#allocation13], 128, 128, 8
        $region28: #{tpu_custom_call.1} parent=11 // pred_fallthru
          _
        // Predicated region
        $region29: #{tpu_custom_call.1} parent=11 // pred_check
          %p310 = pneg %p154
        $region30: #{tpu_custom_call.1} parent=11 // pred_check_branch
          %312 = sbr.rel (%p310) target = $region32
        $region31: #{tpu_custom_call.1} parent=11 // pred_region
          _
        $region32: #{tpu_custom_call.1} parent=11 // pred_fallthru
          _
        // Predicated region
        $region33: #{tpu_custom_call.1} parent=11 // pred_check
          %p313 = pneg %p175
        $region34: #{tpu_custom_call.1} parent=11 // pred_check_branch
          %315 = sbr.rel (%p313) target = $region36
        $region35: #{tpu_custom_call.1} parent=11 // pred_region
          _
        $region36: #{tpu_custom_call.1} parent=11 // pred_fallthru
          _
        // Predicated region
        $region37: #{tpu_custom_call.1} parent=11 // pred_check
          %p316 = pneg %p196
        $region38: #{tpu_custom_call.1} parent=11 // pred_check_branch
          %318 = sbr.rel (%p316) target = $region40
        $region39: #{tpu_custom_call.1} parent=11 // pred_region
          _
        $region40: #{tpu_custom_call.1} parent=11 // pred_fallthru
          _
        // Predicated region
        $region41: #{tpu_custom_call.1} parent=11 // pred_check
          %p319 = pneg %p217
        $region42: #{tpu_custom_call.1} parent=11 // pred_check_branch
          %321 = sbr.rel (%p319) target = $region44
        $region43: #{tpu_custom_call.1} parent=11 // pred_region
          _
        $region44: #{tpu_custom_call.1} parent=11 // pred_fallthru
          _
      $region12: #{tpu_custom_call.1} parent=5 // pred_fallthru
        _
      %p322 = scmp.lt.s32.totalorder %s23, 2
      // Predicated region
      $region45: #{tpu_custom_call.1} parent=5 // pred_check
        %p323 = pneg %p322
      $region46: #{tpu_custom_call.1} parent=5 // pred_check_branch
        %325 = sbr.rel (%p323) target = $region48
      $region47: #{tpu_custom_call.1} parent=5 // pred_region
        // Predicated region
        $region49: #{tpu_custom_call.1} parent=47 // pred_check
          %p326 = pneg %p43
        $region50: #{tpu_custom_call.1} parent=47 // pred_check_branch
          %328 = sbr.rel (%p326) target = $region52
        $region51: #{tpu_custom_call.1} parent=47 // pred_region
          %s329 = sand.u32 %s33, 1
          %s330 = scalar_lea.sflag [#allocation7], %s329
          %s331 = sand.u32 %s33, 1
          %s332 = smul.addr %s331, 128
          %s333 = scalar_lea.vmem [#allocation6], %s332
          %s335 = ssub.s32 2048, 2048
          %336 = vsyncadd %s330, %s335
          %s337 = smul.addr %s23, 16
          %s338 = smul.addr %s337, 128
          %s339 = scalar_lea.hbm %s0, %s338
          %s340 = sshll.u32 %s333, 4
          %s341 = int_to_ptr.vmem [resolvable:$true] %s340
          %346 = dma.hbm_to_vmem [thread:$0]  %s339, 2048, %s341, %s330, 128, 128, 8
        $region52: #{tpu_custom_call.1} parent=47 // pred_fallthru
          _
      $region48: #{tpu_custom_call.1} parent=5 // pred_fallthru
        _
      %p347 = scmp.le.s32.totalorder 1, %s23
      %p348 = scmp.lt.s32.totalorder %s23, 3
      %p349 = pnand %p347, %p348
      %p350 = pneg %p349
      // Predicated region
      $region53: #{tpu_custom_call.1} parent=5 // pred_check
        _
      $region54: #{tpu_custom_call.1} parent=5 // pred_check_branch
        %352 = sbr.rel (%p349) target = $region56
      $region55: #{tpu_custom_call.1} parent=5 // pred_region
        %s353 = ssub.s32 %s23, 1
        %s354 = sand.u32 %s36, 1
        %s355 = scalar_lea.sflag [#allocation7], %s354
        %s356 = sand.u32 %s36, 1
        %s357 = smul.addr %s356, 128
        %s358 = scalar_lea.vmem [#allocation6], %s357
        // Predicated region
        $region57: #{tpu_custom_call.1} parent=55 // pred_check
          %p359 = pneg %p49
        $region58: #{tpu_custom_call.1} parent=55 // pred_check_branch
          %361 = sbr.rel (%p359) target = $region60
        $region59: #{tpu_custom_call.1} parent=55 // pred_region
          %362 = dma.done %s355, 2048
        $region60: #{tpu_custom_call.1} parent=55 // pred_fallthru
          _
        // Predicated region
        $region61: #{tpu_custom_call.1} parent=55 // pred_check
          %p363 = pneg %p70
        $region62: #{tpu_custom_call.1} parent=55 // pred_check_branch
          %365 = sbr.rel (%p363) target = $region64
        $region63: #{tpu_custom_call.1} parent=55 // pred_region
          %366 = dma.done [#allocation10], 1536
        $region64: #{tpu_custom_call.1} parent=55 // pred_fallthru
          _
        // Predicated region
        $region65: #{tpu_custom_call.1} parent=55 // pred_check
          %p367 = pneg %p91
        $region66: #{tpu_custom_call.1} parent=55 // pred_check_branch
          %369 = sbr.rel (%p367) target = $region68
        $region67: #{tpu_custom_call.1} parent=55 // pred_region
          %370 = dma.done [#allocation10], 6144
        $region68: #{tpu_custom_call.1} parent=55 // pred_fallthru
          _
        // Predicated region
        $region69: #{tpu_custom_call.1} parent=55 // pred_check
          %p371 = pneg %p112
        $region70: #{tpu_custom_call.1} parent=55 // pred_check_branch
          %373 = sbr.rel (%p371) target = $region72
        $region71: #{tpu_custom_call.1} parent=55 // pred_region
          %374 = dma.done [#allocation13], 12288
        $region72: #{tpu_custom_call.1} parent=55 // pred_fallthru
          _
        // Predicated region
        $region73: #{tpu_custom_call.1} parent=55 // pred_check
          %p375 = pneg %p133
        $region74: #{tpu_custom_call.1} parent=55 // pred_check_branch
          %377 = sbr.rel (%p375) target = $region76
        $region75: #{tpu_custom_call.1} parent=55 // pred_region
          %378 = dma.done [#allocation13], 12288
        $region76: #{tpu_custom_call.1} parent=55 // pred_fallthru
          _
        %s379 = sand.u32 %s36, 1
        %s380 = scalar_lea.sflag [#allocation7], %s379
        %s381 = sand.u32 %s36, 1
        %s382 = smul.addr %s381, 128
        %s383 = scalar_lea.vmem [#allocation6], %s382
        %p384 = pneg %p49
        %p385 = pneg %p46
        %p386 = pneg %p70
        %p387 = pneg %p67
        %p388 = pneg %p91
        %p389 = pneg %p88
        %p390 = pneg %p112
        %p391 = pneg %p109
        %p392 = pneg %p133
        %p393 = pneg %p130
        %p394 = pneg %p154
        %p395 = pneg %p151
        %p396 = pneg %p175
        %p397 = pneg %p172
        %p398 = pneg %p196
        %p399 = pneg %p193
        %p400 = pneg %p217
        %p401 = pneg %p214
        %p402 = pneg %p243
        %p403 = pneg %p240
        %s404 = sand.u32 %s230, 1
        %s405 = scalar_lea.sflag [#allocation8], %s404
        %s406 = sand.u32 %s230, 1
        %s407 = smul.addr %s406, 256
        %s408 = scalar_lea.vmem [#allocation15], %s407
        %vm410 = vcmask 523264
        %411 = vst.msk [vmem:[#allocation2] sm:$0xff] %vm410, 0.0
        %412 = vst.msk [vmem:[#allocation2 + $0x20] sm:$0xff] %vm410, 0.0
        %413 = vst.msk [vmem:[#allocation2 + $0x40] sm:$0xff] %vm410, 0.0
        %414 = vst.msk [vmem:[#allocation2 + $0x60] sm:$0xff] %vm410, 0.0
        %415 = vst.msk [vmem:[#allocation2 + $0x80] sm:$0xff] %vm410, 0.0
        %416 = vst.msk [vmem:[#allocation2 + $0xa0] sm:$0xff] %vm410, 0.0
        %417 = vst.msk [vmem:[#allocation2 + $0xc0] sm:$0xff] %vm410, 0.0
        %418 = vst.msk [vmem:[#allocation2 + $0xe0] sm:$0xff] %vm410, 0.0
        %419 = vst.msk [vmem:[#allocation2 + $0x18] sm:$0xff] %vm410, 0.0
        %420 = vst.msk [vmem:[#allocation2 + $0x38] sm:$0xff] %vm410, 0.0
        %421 = vst.msk [vmem:[#allocation2 + $0x58] sm:$0xff] %vm410, 0.0
        %422 = vst.msk [vmem:[#allocation2 + $0x78] sm:$0xff] %vm410, 0.0
        %423 = vst.msk [vmem:[#allocation2 + $0x98] sm:$0xff] %vm410, 0.0
        %424 = vst.msk [vmem:[#allocation2 + $0xb8] sm:$0xff] %vm410, 0.0
        %425 = vst.msk [vmem:[#allocation2 + $0xd8] sm:$0xff] %vm410, 0.0
        %426 = vst.msk [vmem:[#allocation2 + $0xf8] sm:$0xff] %vm410, 0.0
        %v427 = vld [vmem:[%s358] sm:$0xff]
        %v428 = vld [vmem:[%s358 + $0x8] sm:$0xff]
        %v429 = vld [vmem:[%s358 + $0x10] sm:$0xff]
        %v430 = vld [vmem:[%s358 + $0x18] sm:$0xff]
        %v431 = vld [vmem:[%s358 + $0x20] sm:$0xff]
        %v432 = vld [vmem:[%s358 + $0x28] sm:$0xff]
        %v433 = vld [vmem:[%s358 + $0x30] sm:$0xff]
        %v434 = vld [vmem:[%s358 + $0x38] sm:$0xff]
        %v435 = vld [vmem:[%s358 + $0x40] sm:$0xff]
        %v436 = vld [vmem:[%s358 + $0x48] sm:$0xff]
        %v437 = vld [vmem:[%s358 + $0x50] sm:$0xff]
        %v438 = vld [vmem:[%s358 + $0x58] sm:$0xff]
        %v439 = vld [vmem:[%s358 + $0x60] sm:$0xff]
        %v440 = vld [vmem:[%s358 + $0x68] sm:$0xff]
        %v441 = vld [vmem:[%s358 + $0x70] sm:$0xff]
        %v442 = vld [vmem:[%s358 + $0x78] sm:$0xff]
        %443 = vst.msk [vmem:[#allocation2 + $0x8] sm:$0xff] %vm410, %v427
        %444 = vst.msk [vmem:[#allocation2 + $0x10] sm:$0xff] %vm410, %v428
        %445 = vst.msk [vmem:[#allocation2 + $0x28] sm:$0xff] %vm410, %v429
        %446 = vst.msk [vmem:[#allocation2 + $0x30] sm:$0xff] %vm410, %v430
        %447 = vst.msk [vmem:[#allocation2 + $0x48] sm:$0xff] %vm410, %v431
        %448 = vst.msk [vmem:[#allocation2 + $0x50] sm:$0xff] %vm410, %v432
        %449 = vst.msk [vmem:[#allocation2 + $0x68] sm:$0xff] %vm410, %v433
        %450 = vst.msk [vmem:[#allocation2 + $0x70] sm:$0xff] %vm410, %v434
        %451 = vst.msk [vmem:[#allocation2 + $0x88] sm:$0xff] %vm410, %v435
        %452 = vst.msk [vmem:[#allocation2 + $0x90] sm:$0xff] %vm410, %v436
        %453 = vst.msk [vmem:[#allocation2 + $0xa8] sm:$0xff] %vm410, %v437
        %454 = vst.msk [vmem:[#allocation2 + $0xb0] sm:$0xff] %vm410, %v438
        %455 = vst.msk [vmem:[#allocation2 + $0xc8] sm:$0xff] %vm410, %v439
        %456 = vst.msk [vmem:[#allocation2 + $0xd0] sm:$0xff] %vm410, %v440
        %457 = vst.msk [vmem:[#allocation2 + $0xe8] sm:$0xff] %vm410, %v441
        %458 = vst.msk [vmem:[#allocation2 + $0xf0] sm:$0xff] %vm410, %v442
        %v459 = vld [vmem:[#allocation2 + $0x7] sm:$0xff]
        %v460 = vld [vmem:[#allocation2 + $0xf] sm:$0xff]
        %v461 = vld [vmem:[#allocation2 + $0x27] sm:$0xff]
        %v462 = vld [vmem:[#allocation2 + $0x2f] sm:$0xff]
        %v463 = vld [vmem:[#allocation2 + $0x47] sm:$0xff]
        %v464 = vld [vmem:[#allocation2 + $0x4f] sm:$0xff]
        %v465 = vld [vmem:[#allocation2 + $0x67] sm:$0xff]
        %v466 = vld [vmem:[#allocation2 + $0x6f] sm:$0xff]
        %v467 = vld [vmem:[#allocation2 + $0x87] sm:$0xff]
        %v468 = vld [vmem:[#allocation2 + $0x8f] sm:$0xff]
        %v469 = vld [vmem:[#allocation2 + $0xa7] sm:$0xff]
        %v470 = vld [vmem:[#allocation2 + $0xaf] sm:$0xff]
        %v471 = vld [vmem:[#allocation2 + $0xc7] sm:$0xff]
        %v472 = vld [vmem:[#allocation2 + $0xcf] sm:$0xff]
        %v473 = vld [vmem:[#allocation2 + $0xe7] sm:$0xff]
        %v474 = vld [vmem:[#allocation2 + $0xef] sm:$0xff]
        %v475 = vpack.c.bf16 %v460, %v459
        %v476 = vpack.c.bf16 %v462, %v461
        %v477 = vpack.c.bf16 %v464, %v463
        %v478 = vpack.c.bf16 %v466, %v465
        %v479 = vpack.c.bf16 %v468, %v467
        %v480 = vpack.c.bf16 %v470, %v469
        %v481 = vpack.c.bf16 %v472, %v471
        %v482 = vpack.c.bf16 %v474, %v473
        %v483 = vld [vmem:[#allocation9] sm:$0xf]
        %v484 = vld [vmem:[#allocation9 + $0x4] sm:$0xf]
        %v485 = vld [vmem:[#allocation9 + $0x8] sm:$0xf]
        %v486 = vld [vmem:[#allocation9 + $0xc] sm:$0xf]
        %v487 = vld [vmem:[#allocation9 + $0x10] sm:$0xf]
        %v488 = vld [vmem:[#allocation9 + $0x14] sm:$0xf]
        %v489 = vld [vmem:[#allocation9 + $0x18] sm:$0xf]
        %v490 = vld [vmem:[#allocation9 + $0x1c] sm:$0xf]
        %v491 = vld [vmem:[#allocation2 + $0x8] sm:$0xff]
        %v492 = vld [vmem:[#allocation2 + $0x10] sm:$0xff]
        %v493 = vld [vmem:[#allocation2 + $0x28] sm:$0xff]
        %v494 = vld [vmem:[#allocation2 + $0x30] sm:$0xff]
        %v495 = vld [vmem:[#allocation2 + $0x48] sm:$0xff]
        %v496 = vld [vmem:[#allocation2 + $0x50] sm:$0xff]
        %v497 = vld [vmem:[#allocation2 + $0x68] sm:$0xff]
        %v498 = vld [vmem:[#allocation2 + $0x70] sm:$0xff]
        %v499 = vld [vmem:[#allocation2 + $0x88] sm:$0xff]
        %v500 = vld [vmem:[#allocation2 + $0x90] sm:$0xff]
        %v501 = vld [vmem:[#allocation2 + $0xa8] sm:$0xff]
        %v502 = vld [vmem:[#allocation2 + $0xb0] sm:$0xff]
        %v503 = vld [vmem:[#allocation2 + $0xc8] sm:$0xff]
        %v504 = vld [vmem:[#allocation2 + $0xd0] sm:$0xff]
        %v505 = vld [vmem:[#allocation2 + $0xe8] sm:$0xff]
        %v506 = vld [vmem:[#allocation2 + $0xf0] sm:$0xff]
        %v507 = vpack.c.bf16 %v492, %v491
        %v508 = vpack.c.bf16 %v494, %v493
        %v509 = vpack.c.bf16 %v496, %v495
        %v510 = vpack.c.bf16 %v498, %v497
        %v511 = vpack.c.bf16 %v500, %v499
        %v512 = vpack.c.bf16 %v502, %v501
        %v513 = vpack.c.bf16 %v504, %v503
        %v514 = vpack.c.bf16 %v506, %v505
        %s515 = scalar_lea.vmem [#allocation9], 32
        %v516 = vld [vmem:[%s515] sm:$0xf]
        %v517 = vld [vmem:[%s515 + $0x4] sm:$0xf]
        %v518 = vld [vmem:[%s515 + $0x8] sm:$0xf]
        %v519 = vld [vmem:[%s515 + $0xc] sm:$0xf]
        %v520 = vld [vmem:[%s515 + $0x10] sm:$0xf]
        %v521 = vld [vmem:[%s515 + $0x14] sm:$0xf]
        %v522 = vld [vmem:[%s515 + $0x18] sm:$0xf]
        %v523 = vld [vmem:[%s515 + $0x1c] sm:$0xf]
        %v532 = vunpack.c.l.b16 %v516
        %v533 = vunpack.c.l.b16 %v517
        %v534 = vunpack.c.l.b16 %v518
        %v535 = vunpack.c.l.b16 %v519
        %v536 = vunpack.c.l.b16 %v520
        %v537 = vunpack.c.l.b16 %v521
        %v538 = vunpack.c.l.b16 %v522
        %v539 = vunpack.c.l.b16 %v523
        %v540 = vpack.c.b16 %v533, %v532
        %v541 = vpack.c.b16 %v535, %v534
        %v542 = vpack.c.b16 %v537, %v536
        %v543 = vpack.c.b16 %v539, %v538
        %v549 = vsel %vm410, %v507, 0
        %v552 = vsel %vm410, %v508, 0
        %v555 = vsel %vm410, %v509, 0
        %v558 = vsel %vm410, %v510, 0
        %v561 = vsel %vm410, %v511, 0
        %v564 = vsel %vm410, %v512, 0
        %v567 = vsel %vm410, %v513, 0
        %v570 = vsel %vm410, %v514, 0
        %572 = vmatprep.subr.bf16.mxu0 0
        %573 = vmatpush1.bf16.msra.mxu0 0
        %574 = vmatprep.subr.bf16.mxu0 0
        %575 = vmatpush1.bf16.msra.mxu0 0
        %576 = vmatprep.subr.bf16.mxu0 0
        %577 = vmatpush1.bf16.msra.mxu0 0
        %578 = vmatprep.subr.bf16.mxu0 0
        %579 = vmatpush1.bf16.msra.mxu0 0
        %580 = vmatprep.subr.bf16.mxu0 0
        %581 = vmatpush1.bf16.msra.mxu0 %v543
        %582 = vmatprep.subr.bf16.mxu0 0
        %583 = vmatpush1.bf16.msra.mxu0 %v542
        %584 = vmatprep.subr.bf16.mxu0 0
        %585 = vmatpush1.bf16.msra.mxu0 %v541
        %586 = vmatprep.subr.bf16.mxu0 0
        %587 = vmatpush1.bf16.msra.mxu0 %v540
        %588 = vmatprep.subr.bf16.mxu0 0
        %589 = vmatpush2.bf16.msra.mxu0 0
        %590 = vmatprep.subr.bf16.mxu0 0
        %591 = vmatpush2.bf16.msra.mxu0 0
        %592 = vmatprep.subr.bf16.mxu0 0
        %593 = vmatpush2.bf16.msra.mxu0 0
        %594 = vmatprep.subr.bf16.mxu0 0
        %595 = vmatpush2.bf16.msra.mxu0 0
        %596 = vmatprep.subr.bf16.mxu0 0
        %597 = vmatpush2.bf16.msra.mxu0 0
        %598 = vmatprep.subr.bf16.mxu0 0
        %599 = vmatpush2.bf16.msra.mxu0 0
        %600 = vmatprep.subr.bf16.mxu0 0
        %601 = vmatpush2.bf16.msra.mxu0 0
        %602 = vmatprep.subr.bf16.mxu0 0
        %603 = vmatpush2.bf16.msra.mxu0 0
        %604 = vmatprep.mubr.bf16.mxu0 0
        %605 = vmatmul.mubr.bf16.gmra.mxu0 %v549
        %v606 = vpop.f32.mrf.mxu0
        %v607 = vadd.f32 0.0, %v606
        %v608 = vpop.f32.mrf.mxu0
        %v609 = vpop.f32.mrf.mxu0
        %v610 = vadd.f32 0.0, %v609
        %v611 = vpop.f32.mrf.mxu0
        %612 = vmatprep.mubr.bf16.mxu0 0
        %613 = vmatmul.mubr.bf16.gmra.mxu0 %v552
        %v614 = vpop.f32.mrf.mxu0
        %v615 = vadd.f32 0.0, %v614
        %v616 = vpop.f32.mrf.mxu0
        %v617 = vpop.f32.mrf.mxu0
        %v618 = vadd.f32 0.0, %v617
        %v619 = vpop.f32.mrf.mxu0
        %620 = vmatprep.mubr.bf16.mxu0 0
        %621 = vmatmul.mubr.bf16.gmra.mxu0 %v555
        %v622 = vpop.f32.mrf.mxu0
        %v623 = vadd.f32 0.0, %v622
        %v624 = vpop.f32.mrf.mxu0
        %v625 = vpop.f32.mrf.mxu0
        %v626 = vadd.f32 0.0, %v625
        %v627 = vpop.f32.mrf.mxu0
        %628 = vmatprep.mubr.bf16.mxu0 0
        %629 = vmatmul.mubr.bf16.gmra.mxu0 %v558
        %v630 = vpop.f32.mrf.mxu0
        %v631 = vadd.f32 0.0, %v630
        %v632 = vpop.f32.mrf.mxu0
        %v633 = vpop.f32.mrf.mxu0
        %v634 = vadd.f32 0.0, %v633
        %v635 = vpop.f32.mrf.mxu0
        %636 = vmatprep.mubr.bf16.mxu0 0
        %637 = vmatmul.mubr.bf16.gmra.mxu0 %v561
        %v638 = vpop.f32.mrf.mxu0
        %v639 = vadd.f32 0.0, %v638
        %v640 = vpop.f32.mrf.mxu0
        %v641 = vpop.f32.mrf.mxu0
        %v642 = vadd.f32 0.0, %v641
        %v643 = vpop.f32.mrf.mxu0
        %644 = vmatprep.mubr.bf16.mxu0 0
        %645 = vmatmul.mubr.bf16.gmra.mxu0 %v564
        %v646 = vpop.f32.mrf.mxu0
        %v647 = vadd.f32 0.0, %v646
        %v648 = vpop.f32.mrf.mxu0
        %v649 = vpop.f32.mrf.mxu0
        %v650 = vadd.f32 0.0, %v649
        %v651 = vpop.f32.mrf.mxu0
        %652 = vmatprep.mubr.bf16.mxu0 0
        %653 = vmatmul.mubr.bf16.gmra.mxu0 %v567
        %v654 = vpop.f32.mrf.mxu0
        %v655 = vadd.f32 0.0, %v654
        %v656 = vpop.f32.mrf.mxu0
        %v657 = vpop.f32.mrf.mxu0
        %v658 = vadd.f32 0.0, %v657
        %v659 = vpop.f32.mrf.mxu0
        %660 = vmatprep.mubr.bf16.mxu0 0
        %661 = vmatmul.mubr.bf16.gmra.mxu0 %v570
        %v662 = vpop.f32.mrf.mxu0
        %v663 = vadd.f32 0.0, %v662
        %v664 = vpop.f32.mrf.mxu0
        %v665 = vpop.f32.mrf.mxu0
        %v666 = vadd.f32 0.0, %v665
        %v667 = vpop.f32.mrf.mxu0
        %668 = vdwg.mxu0
        %v677 = vunpack.c.l.b16 %v483
        %v678 = vunpack.c.l.b16 %v484
        %v679 = vunpack.c.l.b16 %v485
        %v680 = vunpack.c.l.b16 %v486
        %v681 = vunpack.c.l.b16 %v487
        %v682 = vunpack.c.l.b16 %v488
        %v683 = vunpack.c.l.b16 %v489
        %v684 = vunpack.c.l.b16 %v490
        %v685 = vpack.c.b16 %v678, %v677
        %v686 = vpack.c.b16 %v680, %v679
        %v687 = vpack.c.b16 %v682, %v681
        %v688 = vpack.c.b16 %v684, %v683
        %v694 = vsel %vm410, %v475, 0
        %v697 = vsel %vm410, %v476, 0
        %v700 = vsel %vm410, %v477, 0
        %v703 = vsel %vm410, %v478, 0
        %v706 = vsel %vm410, %v479, 0
        %v709 = vsel %vm410, %v480, 0
        %v712 = vsel %vm410, %v481, 0
        %v715 = vsel %vm410, %v482, 0
        %717 = vmatprep.subr.bf16.mxu0 0
        %718 = vmatpush1.bf16.msra.mxu0 0
        %719 = vmatprep.subr.bf16.mxu0 0
        %720 = vmatpush1.bf16.msra.mxu0 0
        %721 = vmatprep.subr.bf16.mxu0 0
        %722 = vmatpush1.bf16.msra.mxu0 0
        %723 = vmatprep.subr.bf16.mxu0 0
        %724 = vmatpush1.bf16.msra.mxu0 0
        %725 = vmatprep.subr.bf16.mxu0 0
        %726 = vmatpush1.bf16.msra.mxu0 %v688
        %727 = vmatprep.subr.bf16.mxu0 0
        %728 = vmatpush1.bf16.msra.mxu0 %v687
        %729 = vmatprep.subr.bf16.mxu0 0
        %730 = vmatpush1.bf16.msra.mxu0 %v686
        %731 = vmatprep.subr.bf16.mxu0 0
        %732 = vmatpush1.bf16.msra.mxu0 %v685
        %733 = vmatprep.subr.bf16.mxu0 0
        %734 = vmatpush2.bf16.msra.mxu0 0
        %735 = vmatprep.subr.bf16.mxu0 0
        %736 = vmatpush2.bf16.msra.mxu0 0
        %737 = vmatprep.subr.bf16.mxu0 0
        %738 = vmatpush2.bf16.msra.mxu0 0
        %739 = vmatprep.subr.bf16.mxu0 0
        %740 = vmatpush2.bf16.msra.mxu0 0
        %741 = vmatprep.subr.bf16.mxu0 0
        %742 = vmatpush2.bf16.msra.mxu0 0
        %743 = vmatprep.subr.bf16.mxu0 0
        %744 = vmatpush2.bf16.msra.mxu0 0
        %745 = vmatprep.subr.bf16.mxu0 0
        %746 = vmatpush2.bf16.msra.mxu0 0
        %747 = vmatprep.subr.bf16.mxu0 0
        %748 = vmatpush2.bf16.msra.mxu0 0
        %749 = vmatprep.mubr.bf16.mxu0 0
        %750 = vmatmul.mubr.bf16.gmra.mxu0 %v694
        %v751 = vpop.f32.mrf.mxu0
        %v752 = vadd.f32 %v607, %v751
        %v753 = vpop.f32.mrf.mxu0
        %v754 = vpop.f32.mrf.mxu0
        %v755 = vadd.f32 %v610, %v754
        %v756 = vpop.f32.mrf.mxu0
        %757 = vmatprep.mubr.bf16.mxu0 0
        %758 = vmatmul.mubr.bf16.gmra.mxu0 %v697
        %v759 = vpop.f32.mrf.mxu0
        %v760 = vadd.f32 %v615, %v759
        %v761 = vpop.f32.mrf.mxu0
        %v762 = vpop.f32.mrf.mxu0
        %v763 = vadd.f32 %v618, %v762
        %v764 = vpop.f32.mrf.mxu0
        %765 = vmatprep.mubr.bf16.mxu0 0
        %766 = vmatmul.mubr.bf16.gmra.mxu0 %v700
        %v767 = vpop.f32.mrf.mxu0
        %v768 = vadd.f32 %v623, %v767
        %v769 = vpop.f32.mrf.mxu0
        %v770 = vpop.f32.mrf.mxu0
        %v771 = vadd.f32 %v626, %v770
        %v772 = vpop.f32.mrf.mxu0
        %773 = vmatprep.mubr.bf16.mxu0 0
        %774 = vmatmul.mubr.bf16.gmra.mxu0 %v703
        %v775 = vpop.f32.mrf.mxu0
        %v776 = vadd.f32 %v631, %v775
        %v777 = vpop.f32.mrf.mxu0
        %v778 = vpop.f32.mrf.mxu0
        %v779 = vadd.f32 %v634, %v778
        %v780 = vpop.f32.mrf.mxu0
        %781 = vmatprep.mubr.bf16.mxu0 0
        %782 = vmatmul.mubr.bf16.gmra.mxu0 %v706
        %v783 = vpop.f32.mrf.mxu0
        %v784 = vadd.f32 %v639, %v783
        %v785 = vpop.f32.mrf.mxu0
        %v786 = vpop.f32.mrf.mxu0
        %v787 = vadd.f32 %v642, %v786
        %v788 = vpop.f32.mrf.mxu0
        %789 = vmatprep.mubr.bf16.mxu0 0
        %790 = vmatmul.mubr.bf16.gmra.mxu0 %v709
        %v791 = vpop.f32.mrf.mxu0
        %v792 = vadd.f32 %v647, %v791
        %v793 = vpop.f32.mrf.mxu0
        %v794 = vpop.f32.mrf.mxu0
        %v795 = vadd.f32 %v650, %v794
        %v796 = vpop.f32.mrf.mxu0
        %797 = vmatprep.mubr.bf16.mxu0 0
        %798 = vmatmul.mubr.bf16.gmra.mxu0 %v712
        %v799 = vpop.f32.mrf.mxu0
        %v800 = vadd.f32 %v655, %v799
        %v801 = vpop.f32.mrf.mxu0
        %v802 = vpop.f32.mrf.mxu0
        %v803 = vadd.f32 %v658, %v802
        %v804 = vpop.f32.mrf.mxu0
        %805 = vmatprep.mubr.bf16.mxu0 0
        %806 = vmatmul.mubr.bf16.gmra.mxu0 %v715
        %v807 = vpop.f32.mrf.mxu0
        %v808 = vadd.f32 %v663, %v807
        %v809 = vpop.f32.mrf.mxu0
        %v810 = vpop.f32.mrf.mxu0
        %v811 = vadd.f32 %v666, %v810
        %v812 = vpop.f32.mrf.mxu0
        %813 = vdwg.mxu0
        %v814 = vld [vmem:[#allocation2 + $0x9] sm:$0xff]
        %v815 = vld [vmem:[#allocation2 + $0x11] sm:$0xff]
        %v816 = vld [vmem:[#allocation2 + $0x29] sm:$0xff]
        %v817 = vld [vmem:[#allocation2 + $0x31] sm:$0xff]
        %v818 = vld [vmem:[#allocation2 + $0x49] sm:$0xff]
        %v819 = vld [vmem:[#allocation2 + $0x51] sm:$0xff]
        %v820 = vld [vmem:[#allocation2 + $0x69] sm:$0xff]
        %v821 = vld [vmem:[#allocation2 + $0x71] sm:$0xff]
        %v822 = vld [vmem:[#allocation2 + $0x89] sm:$0xff]
        %v823 = vld [vmem:[#allocation2 + $0x91] sm:$0xff]
        %v824 = vld [vmem:[#allocation2 + $0xa9] sm:$0xff]
        %v825 = vld [vmem:[#allocation2 + $0xb1] sm:$0xff]
        %v826 = vld [vmem:[#allocation2 + $0xc9] sm:$0xff]
        %v827 = vld [vmem:[#allocation2 + $0xd1] sm:$0xff]
        %v828 = vld [vmem:[#allocation2 + $0xe9] sm:$0xff]
        %v829 = vld [vmem:[#allocation2 + $0xf1] sm:$0xff]
        %v830 = vpack.c.bf16 %v815, %v814
        %v831 = vpack.c.bf16 %v817, %v816
        %v832 = vpack.c.bf16 %v819, %v818
        %v833 = vpack.c.bf16 %v821, %v820
        %v834 = vpack.c.bf16 %v823, %v822
        %v835 = vpack.c.bf16 %v825, %v824
        %v836 = vpack.c.bf16 %v827, %v826
        %v837 = vpack.c.bf16 %v829, %v828
        %s838 = scalar_lea.vmem [#allocation9], 64
        %v839 = vld [vmem:[%s838] sm:$0xf]
        %v840 = vld [vmem:[%s838 + $0x4] sm:$0xf]
        %v841 = vld [vmem:[%s838 + $0x8] sm:$0xf]
        %v842 = vld [vmem:[%s838 + $0xc] sm:$0xf]
        %v843 = vld [vmem:[%s838 + $0x10] sm:$0xf]
        %v844 = vld [vmem:[%s838 + $0x14] sm:$0xf]
        %v845 = vld [vmem:[%s838 + $0x18] sm:$0xf]
        %v846 = vld [vmem:[%s838 + $0x1c] sm:$0xf]
        %v855 = vunpack.c.l.b16 %v839
        %v856 = vunpack.c.l.b16 %v840
        %v857 = vunpack.c.l.b16 %v841
        %v858 = vunpack.c.l.b16 %v842
        %v859 = vunpack.c.l.b16 %v843
        %v860 = vunpack.c.l.b16 %v844
        %v861 = vunpack.c.l.b16 %v845
        %v862 = vunpack.c.l.b16 %v846
        %v863 = vpack.c.b16 %v856, %v855
        %v864 = vpack.c.b16 %v858, %v857
        %v865 = vpack.c.b16 %v860, %v859
        %v866 = vpack.c.b16 %v862, %v861
        %v872 = vsel %vm410, %v830, 0
        %v875 = vsel %vm410, %v831, 0
        %v878 = vsel %vm410, %v832, 0
        %v881 = vsel %vm410, %v833, 0
        %v884 = vsel %vm410, %v834, 0
        %v887 = vsel %vm410, %v835, 0
        %v890 = vsel %vm410, %v836, 0
        %v893 = vsel %vm410, %v837, 0
        %895 = vmatprep.subr.bf16.mxu0 0
        %896 = vmatpush1.bf16.msra.mxu0 0
        %897 = vmatprep.subr.bf16.mxu0 0
        %898 = vmatpush1.bf16.msra.mxu0 0
        %899 = vmatprep.subr.bf16.mxu0 0
        %900 = vmatpush1.bf16.msra.mxu0 0
        %901 = vmatprep.subr.bf16.mxu0 0
        %902 = vmatpush1.bf16.msra.mxu0 0
        %903 = vmatprep.subr.bf16.mxu0 0
        %904 = vmatpush1.bf16.msra.mxu0 %v866
        %905 = vmatprep.subr.bf16.mxu0 0
        %906 = vmatpush1.bf16.msra.mxu0 %v865
        %907 = vmatprep.subr.bf16.mxu0 0
        %908 = vmatpush1.bf16.msra.mxu0 %v864
        %909 = vmatprep.subr.bf16.mxu0 0
        %910 = vmatpush1.bf16.msra.mxu0 %v863
        %911 = vmatprep.subr.bf16.mxu0 0
        %912 = vmatpush2.bf16.msra.mxu0 0
        %913 = vmatprep.subr.bf16.mxu0 0
        %914 = vmatpush2.bf16.msra.mxu0 0
        %915 = vmatprep.subr.bf16.mxu0 0
        %916 = vmatpush2.bf16.msra.mxu0 0
        %917 = vmatprep.subr.bf16.mxu0 0
        %918 = vmatpush2.bf16.msra.mxu0 0
        %919 = vmatprep.subr.bf16.mxu0 0
        %920 = vmatpush2.bf16.msra.mxu0 0
        %921 = vmatprep.subr.bf16.mxu0 0
        %922 = vmatpush2.bf16.msra.mxu0 0
        %923 = vmatprep.subr.bf16.mxu0 0
        %924 = vmatpush2.bf16.msra.mxu0 0
        %925 = vmatprep.subr.bf16.mxu0 0
        %926 = vmatpush2.bf16.msra.mxu0 0
        %927 = vmatprep.mubr.bf16.mxu0 0
        %928 = vmatmul.mubr.bf16.gmra.mxu0 %v872
        %v929 = vpop.f32.mrf.mxu0
        %v930 = vadd.f32 0.0, %v929
        %v931 = vpop.f32.mrf.mxu0
        %v932 = vpop.f32.mrf.mxu0
        %v933 = vadd.f32 0.0, %v932
        %v934 = vpop.f32.mrf.mxu0
        %935 = vmatprep.mubr.bf16.mxu0 0
        %936 = vmatmul.mubr.bf16.gmra.mxu0 %v875
        %v937 = vpop.f32.mrf.mxu0
        %v938 = vadd.f32 0.0, %v937
        %v939 = vpop.f32.mrf.mxu0
        %v940 = vpop.f32.mrf.mxu0
        %v941 = vadd.f32 0.0, %v940
        %v942 = vpop.f32.mrf.mxu0
        %943 = vmatprep.mubr.bf16.mxu0 0
        %944 = vmatmul.mubr.bf16.gmra.mxu0 %v878
        %v945 = vpop.f32.mrf.mxu0
        %v946 = vadd.f32 0.0, %v945
        %v947 = vpop.f32.mrf.mxu0
        %v948 = vpop.f32.mrf.mxu0
        %v949 = vadd.f32 0.0, %v948
        %v950 = vpop.f32.mrf.mxu0
        %951 = vmatprep.mubr.bf16.mxu0 0
        %952 = vmatmul.mubr.bf16.gmra.mxu0 %v881
        %v953 = vpop.f32.mrf.mxu0
        %v954 = vadd.f32 0.0, %v953
        %v955 = vpop.f32.mrf.mxu0
        %v956 = vpop.f32.mrf.mxu0
        %v957 = vadd.f32 0.0, %v956
        %v958 = vpop.f32.mrf.mxu0
        %959 = vmatprep.mubr.bf16.mxu0 0
        %960 = vmatmul.mubr.bf16.gmra.mxu0 %v884
        %v961 = vpop.f32.mrf.mxu0
        %v962 = vadd.f32 0.0, %v961
        %v963 = vpop.f32.mrf.mxu0
        %v964 = vpop.f32.mrf.mxu0
        %v965 = vadd.f32 0.0, %v964
        %v966 = vpop.f32.mrf.mxu0
        %967 = vmatprep.mubr.bf16.mxu0 0
        %968 = vmatmul.mubr.bf16.gmra.mxu0 %v887
        %v969 = vpop.f32.mrf.mxu0
        %v970 = vadd.f32 0.0, %v969
        %v971 = vpop.f32.mrf.mxu0
        %v972 = vpop.f32.mrf.mxu0
        %v973 = vadd.f32 0.0, %v972
        %v974 = vpop.f32.mrf.mxu0
        %975 = vmatprep.mubr.bf16.mxu0 0
        %976 = vmatmul.mubr.bf16.gmra.mxu0 %v890
        %v977 = vpop.f32.mrf.mxu0
        %v978 = vadd.f32 0.0, %v977
        %v979 = vpop.f32.mrf.mxu0
        %v980 = vpop.f32.mrf.mxu0
        %v981 = vadd.f32 0.0, %v980
        %v982 = vpop.f32.mrf.mxu0
        %983 = vmatprep.mubr.bf16.mxu0 0
        %984 = vmatmul.mubr.bf16.gmra.mxu0 %v893
        %v985 = vpop.f32.mrf.mxu0
        %v986 = vadd.f32 0.0, %v985
        %v987 = vpop.f32.mrf.mxu0
        %v988 = vpop.f32.mrf.mxu0
        %v989 = vadd.f32 0.0, %v988
        %v990 = vpop.f32.mrf.mxu0
        %991 = vdwg.mxu0
        %v992 = vadd.f32 %v752, %v930
        %v993 = vadd.f32 %v755, %v933
        %v994 = vadd.f32 %v760, %v938
        %v995 = vadd.f32 %v763, %v941
        %v996 = vadd.f32 %v768, %v946
        %v997 = vadd.f32 %v771, %v949
        %v998 = vadd.f32 %v776, %v954
        %v999 = vadd.f32 %v779, %v957
        %v1000 = vadd.f32 %v784, %v962
        %v1001 = vadd.f32 %v787, %v965
        %v1002 = vadd.f32 %v792, %v970
        %v1003 = vadd.f32 %v795, %v973
        %v1004 = vadd.f32 %v800, %v978
        %v1005 = vadd.f32 %v803, %v981
        %v1006 = vadd.f32 %v808, %v986
        %v1007 = vadd.f32 %v811, %v989
        %v1008 = vld [vmem:[%s5] sm:$0x1]
        %v1010 = vlaneseq
        %v1011 = vshrl.u32 %v1010, 7
        %v1012 = vsub.s32 0, %v1011
        %v1013 = vrot.slane %v1008, %v1012
        %v1015 = vadd.f32 %v992, %v1013
        %v1016 = vadd.f32 %v993, %v1013
        %v1017 = vadd.f32 %v994, %v1013
        %v1018 = vadd.f32 %v995, %v1013
        %v1019 = vadd.f32 %v996, %v1013
        %v1020 = vadd.f32 %v997, %v1013
        %v1021 = vadd.f32 %v998, %v1013
        %v1022 = vadd.f32 %v999, %v1013
        %v1023 = vadd.f32 %v1000, %v1013
        %v1024 = vadd.f32 %v1001, %v1013
        %v1025 = vadd.f32 %v1002, %v1013
        %v1026 = vadd.f32 %v1003, %v1013
        %v1027 = vadd.f32 %v1004, %v1013
        %v1028 = vadd.f32 %v1005, %v1013
        %v1029 = vadd.f32 %v1006, %v1013
        %v1030 = vadd.f32 %v1007, %v1013
        %v1031 = vmax.f32 %v1015, 0.0
        %v1032 = vmax.f32 %v1016, 0.0
        %v1033 = vmax.f32 %v1017, 0.0
        %v1034 = vmax.f32 %v1018, 0.0
        %v1035 = vmax.f32 %v1019, 0.0
        %v1036 = vmax.f32 %v1020, 0.0
        %v1037 = vmax.f32 %v1021, 0.0
        %v1038 = vmax.f32 %v1022, 0.0
        %v1039 = vmax.f32 %v1023, 0.0
        %v1040 = vmax.f32 %v1024, 0.0
        %v1041 = vmax.f32 %v1025, 0.0
        %v1042 = vmax.f32 %v1026, 0.0
        %v1043 = vmax.f32 %v1027, 0.0
        %v1044 = vmax.f32 %v1028, 0.0
        %v1045 = vmax.f32 %v1029, 0.0
        %v1046 = vmax.f32 %v1030, 0.0
        %1047 = vst [vmem:[#allocation3] sm:$0xff] 0.0
        %1048 = vst [vmem:[#allocation3 + $0x20] sm:$0xff] 0.0
        %1049 = vst [vmem:[#allocation3 + $0x40] sm:$0xff] 0.0
        %1050 = vst [vmem:[#allocation3 + $0x60] sm:$0xff] 0.0
        %1051 = vst [vmem:[#allocation3 + $0x80] sm:$0xff] 0.0
        %1052 = vst [vmem:[#allocation3 + $0xa0] sm:$0xff] 0.0
        %1053 = vst [vmem:[#allocation3 + $0xc0] sm:$0xff] 0.0
        %1054 = vst [vmem:[#allocation3 + $0xe0] sm:$0xff] 0.0
        %1055 = vst [vmem:[#allocation3 + $0x18] sm:$0xff] 0.0
        %1056 = vst [vmem:[#allocation3 + $0x38] sm:$0xff] 0.0
        %1057 = vst [vmem:[#allocation3 + $0x58] sm:$0xff] 0.0
        %1058 = vst [vmem:[#allocation3 + $0x78] sm:$0xff] 0.0
        %1059 = vst [vmem:[#allocation3 + $0x98] sm:$0xff] 0.0
        %1060 = vst [vmem:[#allocation3 + $0xb8] sm:$0xff] 0.0
        %1061 = vst [vmem:[#allocation3 + $0xd8] sm:$0xff] 0.0
        %1062 = vst [vmem:[#allocation3 + $0xf8] sm:$0xff] 0.0
        %1063 = vst [vmem:[#allocation3 + $0x8] sm:$0xff] %v1031
        %1064 = vst [vmem:[#allocation3 + $0x10] sm:$0xff] %v1032
        %1065 = vst [vmem:[#allocation3 + $0x28] sm:$0xff] %v1033
        %1066 = vst [vmem:[#allocation3 + $0x30] sm:$0xff] %v1034
        %1067 = vst [vmem:[#allocation3 + $0x48] sm:$0xff] %v1035
        %1068 = vst [vmem:[#allocation3 + $0x50] sm:$0xff] %v1036
        %1069 = vst [vmem:[#allocation3 + $0x68] sm:$0xff] %v1037
        %1070 = vst [vmem:[#allocation3 + $0x70] sm:$0xff] %v1038
        %1071 = vst [vmem:[#allocation3 + $0x88] sm:$0xff] %v1039
        %1072 = vst [vmem:[#allocation3 + $0x90] sm:$0xff] %v1040
        %1073 = vst [vmem:[#allocation3 + $0xa8] sm:$0xff] %v1041
        %1074 = vst [vmem:[#allocation3 + $0xb0] sm:$0xff] %v1042
        %1075 = vst [vmem:[#allocation3 + $0xc8] sm:$0xff] %v1043
        %1076 = vst [vmem:[#allocation3 + $0xd0] sm:$0xff] %v1044
        %1077 = vst [vmem:[#allocation3 + $0xe8] sm:$0xff] %v1045
        %1078 = vst [vmem:[#allocation3 + $0xf0] sm:$0xff] %v1046
        %v1079 = vld [vmem:[#allocation3 + $0x7] sm:$0xff]
        %v1080 = vld [vmem:[#allocation3 + $0xf] sm:$0xff]
        %v1081 = vld [vmem:[#allocation3 + $0x27] sm:$0xff]
        %v1082 = vld [vmem:[#allocation3 + $0x2f] sm:$0xff]
        %v1083 = vld [vmem:[#allocation3 + $0x47] sm:$0xff]
        %v1084 = vld [vmem:[#allocation3 + $0x4f] sm:$0xff]
        %v1085 = vld [vmem:[#allocation3 + $0x67] sm:$0xff]
        %v1086 = vld [vmem:[#allocation3 + $0x6f] sm:$0xff]
        %v1087 = vld [vmem:[#allocation3 + $0x87] sm:$0xff]
        %v1088 = vld [vmem:[#allocation3 + $0x8f] sm:$0xff]
        %v1089 = vld [vmem:[#allocation3 + $0xa7] sm:$0xff]
        %v1090 = vld [vmem:[#allocation3 + $0xaf] sm:$0xff]
        %v1091 = vld [vmem:[#allocation3 + $0xc7] sm:$0xff]
        %v1092 = vld [vmem:[#allocation3 + $0xcf] sm:$0xff]
        %v1093 = vld [vmem:[#allocation3 + $0xe7] sm:$0xff]
        %v1094 = vld [vmem:[#allocation3 + $0xef] sm:$0xff]
        %v1095 = vpack.c.bf16 %v1080, %v1079
        %v1096 = vpack.c.bf16 %v1082, %v1081
        %v1097 = vpack.c.bf16 %v1084, %v1083
        %v1098 = vpack.c.bf16 %v1086, %v1085
        %v1099 = vpack.c.bf16 %v1088, %v1087
        %v1100 = vpack.c.bf16 %v1090, %v1089
        %v1101 = vpack.c.bf16 %v1092, %v1091
        %v1102 = vpack.c.bf16 %v1094, %v1093
        %v1103 = vld [vmem:[#allocation11] sm:$0xff]
        %v1104 = vld [vmem:[#allocation11 + $0x8] sm:$0xff]
        %v1105 = vld [vmem:[#allocation11 + $0x10] sm:$0xff]
        %v1106 = vld [vmem:[#allocation11 + $0x18] sm:$0xff]
        %v1107 = vld [vmem:[#allocation11 + $0x20] sm:$0xff]
        %v1108 = vld [vmem:[#allocation11 + $0x28] sm:$0xff]
        %v1109 = vld [vmem:[#allocation11 + $0x30] sm:$0xff]
        %v1110 = vld [vmem:[#allocation11 + $0x38] sm:$0xff]
        %v1111 = vld [vmem:[#allocation11 + $0x40] sm:$0xff]
        %v1112 = vld [vmem:[#allocation11 + $0x48] sm:$0xff]
        %v1113 = vld [vmem:[#allocation11 + $0x50] sm:$0xff]
        %v1114 = vld [vmem:[#allocation11 + $0x58] sm:$0xff]
        %v1115 = vld [vmem:[#allocation11 + $0x60] sm:$0xff]
        %v1116 = vld [vmem:[#allocation11 + $0x68] sm:$0xff]
        %v1117 = vld [vmem:[#allocation11 + $0x70] sm:$0xff]
        %v1118 = vld [vmem:[#allocation11 + $0x78] sm:$0xff]
        %v1119 = vld [vmem:[#allocation3 + $0x8] sm:$0xff]
        %v1120 = vld [vmem:[#allocation3 + $0x10] sm:$0xff]
        %v1121 = vld [vmem:[#allocation3 + $0x28] sm:$0xff]
        %v1122 = vld [vmem:[#allocation3 + $0x30] sm:$0xff]
        %v1123 = vld [vmem:[#allocation3 + $0x48] sm:$0xff]
        %v1124 = vld [vmem:[#allocation3 + $0x50] sm:$0xff]
        %v1125 = vld [vmem:[#allocation3 + $0x68] sm:$0xff]
        %v1126 = vld [vmem:[#allocation3 + $0x70] sm:$0xff]
        %v1127 = vld [vmem:[#allocation3 + $0x88] sm:$0xff]
        %v1128 = vld [vmem:[#allocation3 + $0x90] sm:$0xff]
        %v1129 = vld [vmem:[#allocation3 + $0xa8] sm:$0xff]
        %v1130 = vld [vmem:[#allocation3 + $0xb0] sm:$0xff]
        %v1131 = vld [vmem:[#allocation3 + $0xc8] sm:$0xff]
        %v1132 = vld [vmem:[#allocation3 + $0xd0] sm:$0xff]
        %v1133 = vld [vmem:[#allocation3 + $0xe8] sm:$0xff]
        %v1134 = vld [vmem:[#allocation3 + $0xf0] sm:$0xff]
        %v1135 = vpack.c.bf16 %v1120, %v1119
        %v1136 = vpack.c.bf16 %v1122, %v1121
        %v1137 = vpack.c.bf16 %v1124, %v1123
        %v1138 = vpack.c.bf16 %v1126, %v1125
        %v1139 = vpack.c.bf16 %v1128, %v1127
        %v1140 = vpack.c.bf16 %v1130, %v1129
        %v1141 = vpack.c.bf16 %v1132, %v1131
        %v1142 = vpack.c.bf16 %v1134, %v1133
        %s1143 = scalar_lea.vmem [#allocation11], 128
        %v1144 = vld [vmem:[%s1143] sm:$0xff]
        %v1145 = vld [vmem:[%s1143 + $0x8] sm:$0xff]
        %v1146 = vld [vmem:[%s1143 + $0x10] sm:$0xff]
        %v1147 = vld [vmem:[%s1143 + $0x18] sm:$0xff]
        %v1148 = vld [vmem:[%s1143 + $0x20] sm:$0xff]
        %v1149 = vld [vmem:[%s1143 + $0x28] sm:$0xff]
        %v1150 = vld [vmem:[%s1143 + $0x30] sm:$0xff]
        %v1151 = vld [vmem:[%s1143 + $0x38] sm:$0xff]
        %v1152 = vld [vmem:[%s1143 + $0x40] sm:$0xff]
        %v1153 = vld [vmem:[%s1143 + $0x48] sm:$0xff]
        %v1154 = vld [vmem:[%s1143 + $0x50] sm:$0xff]
        %v1155 = vld [vmem:[%s1143 + $0x58] sm:$0xff]
        %v1156 = vld [vmem:[%s1143 + $0x60] sm:$0xff]
        %v1157 = vld [vmem:[%s1143 + $0x68] sm:$0xff]
        %v1158 = vld [vmem:[%s1143 + $0x70] sm:$0xff]
        %v1159 = vld [vmem:[%s1143 + $0x78] sm:$0xff]
        %v1176 = vunpack.c.l.b16 %v1144
        %v1177 = vunpack.c.h.b16 %v1144
        %v1178 = vunpack.c.l.b16 %v1145
        %v1179 = vunpack.c.h.b16 %v1145
        %v1180 = vunpack.c.l.b16 %v1146
        %v1181 = vunpack.c.h.b16 %v1146
        %v1182 = vunpack.c.l.b16 %v1147
        %v1183 = vunpack.c.h.b16 %v1147
        %v1184 = vunpack.c.l.b16 %v1148
        %v1185 = vunpack.c.h.b16 %v1148
        %v1186 = vunpack.c.l.b16 %v1149
        %v1187 = vunpack.c.h.b16 %v1149
        %v1188 = vunpack.c.l.b16 %v1150
        %v1189 = vunpack.c.h.b16 %v1150
        %v1190 = vunpack.c.l.b16 %v1151
        %v1191 = vunpack.c.h.b16 %v1151
        %v1192 = vunpack.c.l.b16 %v1152
        %v1193 = vunpack.c.h.b16 %v1152
        %v1194 = vunpack.c.l.b16 %v1153
        %v1195 = vunpack.c.h.b16 %v1153
        %v1196 = vunpack.c.l.b16 %v1154
        %v1197 = vunpack.c.h.b16 %v1154
        %v1198 = vunpack.c.l.b16 %v1155
        %v1199 = vunpack.c.h.b16 %v1155
        %v1200 = vunpack.c.l.b16 %v1156
        %v1201 = vunpack.c.h.b16 %v1156
        %v1202 = vunpack.c.l.b16 %v1157
        %v1203 = vunpack.c.h.b16 %v1157
        %v1204 = vunpack.c.l.b16 %v1158
        %v1205 = vunpack.c.h.b16 %v1158
        %v1206 = vunpack.c.l.b16 %v1159
        %v1207 = vunpack.c.h.b16 %v1159
        %v1208 = vpack.c.b16 %v1178, %v1176
        %v1209 = vpack.c.b16 %v1179, %v1177
        %v1210 = vpack.c.b16 %v1182, %v1180
        %v1211 = vpack.c.b16 %v1183, %v1181
        %v1212 = vpack.c.b16 %v1186, %v1184
        %v1213 = vpack.c.b16 %v1187, %v1185
        %v1214 = vpack.c.b16 %v1190, %v1188
        %v1215 = vpack.c.b16 %v1191, %v1189
        %v1216 = vpack.c.b16 %v1194, %v1192
        %v1217 = vpack.c.b16 %v1195, %v1193
        %v1218 = vpack.c.b16 %v1198, %v1196
        %v1219 = vpack.c.b16 %v1199, %v1197
        %v1220 = vpack.c.b16 %v1202, %v1200
        %v1221 = vpack.c.b16 %v1203, %v1201
        %v1222 = vpack.c.b16 %v1206, %v1204
        %v1223 = vpack.c.b16 %v1207, %v1205
        %1240 = vmatprep.subr.bf16.mxu0 %v1223
        %1241 = vmatpush1.bf16.msra.mxu0 %v1222
        %1242 = vmatprep.subr.bf16.mxu0 %v1221
        %1243 = vmatpush1.bf16.msra.mxu0 %v1220
        %1244 = vmatprep.subr.bf16.mxu0 %v1219
        %1245 = vmatpush1.bf16.msra.mxu0 %v1218
        %1246 = vmatprep.subr.bf16.mxu0 %v1217
        %1247 = vmatpush1.bf16.msra.mxu0 %v1216
        %1248 = vmatprep.subr.bf16.mxu0 %v1215
        %1249 = vmatpush1.bf16.msra.mxu0 %v1214
        %1250 = vmatprep.subr.bf16.mxu0 %v1213
        %1251 = vmatpush1.bf16.msra.mxu0 %v1212
        %1252 = vmatprep.subr.bf16.mxu0 %v1211
        %1253 = vmatpush1.bf16.msra.mxu0 %v1210
        %1254 = vmatprep.subr.bf16.mxu0 %v1209
        %1255 = vmatpush1.bf16.msra.mxu0 %v1208
        %1256 = vmatprep.subr.bf16.mxu0 0
        %1257 = vmatpush2.bf16.msra.mxu0 0
        %1258 = vmatprep.subr.bf16.mxu0 0
        %1259 = vmatpush2.bf16.msra.mxu0 0
        %1260 = vmatprep.subr.bf16.mxu0 0
        %1261 = vmatpush2.bf16.msra.mxu0 0
        %1262 = vmatprep.subr.bf16.mxu0 0
        %1263 = vmatpush2.bf16.msra.mxu0 0
        %1264 = vmatprep.subr.bf16.mxu0 0
        %1265 = vmatpush2.bf16.msra.mxu0 0
        %1266 = vmatprep.subr.bf16.mxu0 0
        %1267 = vmatpush2.bf16.msra.mxu0 0
        %1268 = vmatprep.subr.bf16.mxu0 0
        %1269 = vmatpush2.bf16.msra.mxu0 0
        %1270 = vmatprep.subr.bf16.mxu0 0
        %1271 = vmatpush2.bf16.msra.mxu0 0
        %1272 = vmatprep.mubr.bf16.mxu0 0
        %1273 = vmatmul.mubr.bf16.gmra.mxu0 %v1135
        %v1274 = vpop.f32.mrf.mxu0
        %v1275 = vadd.f32 0.0, %v1274
        %v1276 = vpop.f32.mrf.mxu0
        %v1277 = vadd.f32 0.0, %v1276
        %v1278 = vpop.f32.mrf.mxu0
        %v1279 = vadd.f32 0.0, %v1278
        %v1280 = vpop.f32.mrf.mxu0
        %v1281 = vadd.f32 0.0, %v1280
        %1282 = vmatprep.mubr.bf16.mxu0 0
        %1283 = vmatmul.mubr.bf16.gmra.mxu0 %v1136
        %v1284 = vpop.f32.mrf.mxu0
        %v1285 = vadd.f32 0.0, %v1284
        %v1286 = vpop.f32.mrf.mxu0
        %v1287 = vadd.f32 0.0, %v1286
        %v1288 = vpop.f32.mrf.mxu0
        %v1289 = vadd.f32 0.0, %v1288
        %v1290 = vpop.f32.mrf.mxu0
        %v1291 = vadd.f32 0.0, %v1290
        %1292 = vmatprep.mubr.bf16.mxu0 0
        %1293 = vmatmul.mubr.bf16.gmra.mxu0 %v1137
        %v1294 = vpop.f32.mrf.mxu0
        %v1295 = vadd.f32 0.0, %v1294
        %v1296 = vpop.f32.mrf.mxu0
        %v1297 = vadd.f32 0.0, %v1296
        %v1298 = vpop.f32.mrf.mxu0
        %v1299 = vadd.f32 0.0, %v1298
        %v1300 = vpop.f32.mrf.mxu0
        %v1301 = vadd.f32 0.0, %v1300
        %1302 = vmatprep.mubr.bf16.mxu0 0
        %1303 = vmatmul.mubr.bf16.gmra.mxu0 %v1138
        %v1304 = vpop.f32.mrf.mxu0
        %v1305 = vadd.f32 0.0, %v1304
        %v1306 = vpop.f32.mrf.mxu0
        %v1307 = vadd.f32 0.0, %v1306
        %v1308 = vpop.f32.mrf.mxu0
        %v1309 = vadd.f32 0.0, %v1308
        %v1310 = vpop.f32.mrf.mxu0
        %v1311 = vadd.f32 0.0, %v1310
        %1312 = vmatprep.mubr.bf16.mxu0 0
        %1313 = vmatmul.mubr.bf16.gmra.mxu0 %v1139
        %v1314 = vpop.f32.mrf.mxu0
        %v1315 = vadd.f32 0.0, %v1314
        %v1316 = vpop.f32.mrf.mxu0
        %v1317 = vadd.f32 0.0, %v1316
        %v1318 = vpop.f32.mrf.mxu0
        %v1319 = vadd.f32 0.0, %v1318
        %v1320 = vpop.f32.mrf.mxu0
        %v1321 = vadd.f32 0.0, %v1320
        %1322 = vmatprep.mubr.bf16.mxu0 0
        %1323 = vmatmul.mubr.bf16.gmra.mxu0 %v1140
        %v1324 = vpop.f32.mrf.mxu0
        %v1325 = vadd.f32 0.0, %v1324
        %v1326 = vpop.f32.mrf.mxu0
        %v1327 = vadd.f32 0.0, %v1326
        %v1328 = vpop.f32.mrf.mxu0
        %v1329 = vadd.f32 0.0, %v1328
        %v1330 = vpop.f32.mrf.mxu0
        %v1331 = vadd.f32 0.0, %v1330
        %1332 = vmatprep.mubr.bf16.mxu0 0
        %1333 = vmatmul.mubr.bf16.gmra.mxu0 %v1141
        %v1334 = vpop.f32.mrf.mxu0
        %v1335 = vadd.f32 0.0, %v1334
        %v1336 = vpop.f32.mrf.mxu0
        %v1337 = vadd.f32 0.0, %v1336
        %v1338 = vpop.f32.mrf.mxu0
        %v1339 = vadd.f32 0.0, %v1338
        %v1340 = vpop.f32.mrf.mxu0
        %v1341 = vadd.f32 0.0, %v1340
        %1342 = vmatprep.mubr.bf16.mxu0 0
        %1343 = vmatmul.mubr.bf16.gmra.mxu0 %v1142
        %v1344 = vpop.f32.mrf.mxu0
        %v1345 = vadd.f32 0.0, %v1344
        %v1346 = vpop.f32.mrf.mxu0
        %v1347 = vadd.f32 0.0, %v1346
        %v1348 = vpop.f32.mrf.mxu0
        %v1349 = vadd.f32 0.0, %v1348
        %v1350 = vpop.f32.mrf.mxu0
        %v1351 = vadd.f32 0.0, %v1350
        %1352 = vdwg.mxu0
        %v1369 = vunpack.c.l.b16 %v1103
        %v1370 = vunpack.c.h.b16 %v1103
        %v1371 = vunpack.c.l.b16 %v1104
        %v1372 = vunpack.c.h.b16 %v1104
        %v1373 = vunpack.c.l.b16 %v1105
        %v1374 = vunpack.c.h.b16 %v1105
        %v1375 = vunpack.c.l.b16 %v1106
        %v1376 = vunpack.c.h.b16 %v1106
        %v1377 = vunpack.c.l.b16 %v1107
        %v1378 = vunpack.c.h.b16 %v1107
        %v1379 = vunpack.c.l.b16 %v1108
        %v1380 = vunpack.c.h.b16 %v1108
        %v1381 = vunpack.c.l.b16 %v1109
        %v1382 = vunpack.c.h.b16 %v1109
        %v1383 = vunpack.c.l.b16 %v1110
        %v1384 = vunpack.c.h.b16 %v1110
        %v1385 = vunpack.c.l.b16 %v1111
        %v1386 = vunpack.c.h.b16 %v1111
        %v1387 = vunpack.c.l.b16 %v1112
        %v1388 = vunpack.c.h.b16 %v1112
        %v1389 = vunpack.c.l.b16 %v1113
        %v1390 = vunpack.c.h.b16 %v1113
        %v1391 = vunpack.c.l.b16 %v1114
        %v1392 = vunpack.c.h.b16 %v1114
        %v1393 = vunpack.c.l.b16 %v1115
        %v1394 = vunpack.c.h.b16 %v1115
        %v1395 = vunpack.c.l.b16 %v1116
        %v1396 = vunpack.c.h.b16 %v1116
        %v1397 = vunpack.c.l.b16 %v1117
        %v1398 = vunpack.c.h.b16 %v1117
        %v1399 = vunpack.c.l.b16 %v1118
        %v1400 = vunpack.c.h.b16 %v1118
        %v1401 = vpack.c.b16 %v1371, %v1369
        %v1402 = vpack.c.b16 %v1372, %v1370
        %v1403 = vpack.c.b16 %v1375, %v1373
        %v1404 = vpack.c.b16 %v1376, %v1374
        %v1405 = vpack.c.b16 %v1379, %v1377
        %v1406 = vpack.c.b16 %v1380, %v1378
        %v1407 = vpack.c.b16 %v1383, %v1381
        %v1408 = vpack.c.b16 %v1384, %v1382
        %v1409 = vpack.c.b16 %v1387, %v1385
        %v1410 = vpack.c.b16 %v1388, %v1386
        %v1411 = vpack.c.b16 %v1391, %v1389
        %v1412 = vpack.c.b16 %v1392, %v1390
        %v1413 = vpack.c.b16 %v1395, %v1393
        %v1414 = vpack.c.b16 %v1396, %v1394
        %v1415 = vpack.c.b16 %v1399, %v1397
        %v1416 = vpack.c.b16 %v1400, %v1398
        %1433 = vmatprep.subr.bf16.mxu0 %v1416
        %1434 = vmatpush1.bf16.msra.mxu0 %v1415
        %1435 = vmatprep.subr.bf16.mxu0 %v1414
        %1436 = vmatpush1.bf16.msra.mxu0 %v1413
        %1437 = vmatprep.subr.bf16.mxu0 %v1412
        %1438 = vmatpush1.bf16.msra.mxu0 %v1411
        %1439 = vmatprep.subr.bf16.mxu0 %v1410
        %1440 = vmatpush1.bf16.msra.mxu0 %v1409
        %1441 = vmatprep.subr.bf16.mxu0 %v1408
        %1442 = vmatpush1.bf16.msra.mxu0 %v1407
        %1443 = vmatprep.subr.bf16.mxu0 %v1406
        %1444 = vmatpush1.bf16.msra.mxu0 %v1405
        %1445 = vmatprep.subr.bf16.mxu0 %v1404
        %1446 = vmatpush1.bf16.msra.mxu0 %v1403
        %1447 = vmatprep.subr.bf16.mxu0 %v1402
        %1448 = vmatpush1.bf16.msra.mxu0 %v1401
        %1449 = vmatprep.subr.bf16.mxu0 0
        %1450 = vmatpush2.bf16.msra.mxu0 0
        %1451 = vmatprep.subr.bf16.mxu0 0
        %1452 = vmatpush2.bf16.msra.mxu0 0
        %1453 = vmatprep.subr.bf16.mxu0 0
        %1454 = vmatpush2.bf16.msra.mxu0 0
        %1455 = vmatprep.subr.bf16.mxu0 0
        %1456 = vmatpush2.bf16.msra.mxu0 0
        %1457 = vmatprep.subr.bf16.mxu0 0
        %1458 = vmatpush2.bf16.msra.mxu0 0
        %1459 = vmatprep.subr.bf16.mxu0 0
        %1460 = vmatpush2.bf16.msra.mxu0 0
        %1461 = vmatprep.subr.bf16.mxu0 0
        %1462 = vmatpush2.bf16.msra.mxu0 0
        %1463 = vmatprep.subr.bf16.mxu0 0
        %1464 = vmatpush2.bf16.msra.mxu0 0
        %1465 = vmatprep.mubr.bf16.mxu0 0
        %1466 = vmatmul.mubr.bf16.gmra.mxu0 %v1095
        %v1467 = vpop.f32.mrf.mxu0
        %v1468 = vadd.f32 %v1275, %v1467
        %v1469 = vpop.f32.mrf.mxu0
        %v1470 = vadd.f32 %v1277, %v1469
        %v1471 = vpop.f32.mrf.mxu0
        %v1472 = vadd.f32 %v1279, %v1471
        %v1473 = vpop.f32.mrf.mxu0
        %v1474 = vadd.f32 %v1281, %v1473
        %1475 = vmatprep.mubr.bf16.mxu0 0
        %1476 = vmatmul.mubr.bf16.gmra.mxu0 %v1096
        %v1477 = vpop.f32.mrf.mxu0
        %v1478 = vadd.f32 %v1285, %v1477
        %v1479 = vpop.f32.mrf.mxu0
        %v1480 = vadd.f32 %v1287, %v1479
        %v1481 = vpop.f32.mrf.mxu0
        %v1482 = vadd.f32 %v1289, %v1481
        %v1483 = vpop.f32.mrf.mxu0
        %v1484 = vadd.f32 %v1291, %v1483
        %1485 = vmatprep.mubr.bf16.mxu0 0
        %1486 = vmatmul.mubr.bf16.gmra.mxu0 %v1097
        %v1487 = vpop.f32.mrf.mxu0
        %v1488 = vadd.f32 %v1295, %v1487
        %v1489 = vpop.f32.mrf.mxu0
        %v1490 = vadd.f32 %v1297, %v1489
        %v1491 = vpop.f32.mrf.mxu0
        %v1492 = vadd.f32 %v1299, %v1491
        %v1493 = vpop.f32.mrf.mxu0
        %v1494 = vadd.f32 %v1301, %v1493
        %1495 = vmatprep.mubr.bf16.mxu0 0
        %1496 = vmatmul.mubr.bf16.gmra.mxu0 %v1098
        %v1497 = vpop.f32.mrf.mxu0
        %v1498 = vadd.f32 %v1305, %v1497
        %v1499 = vpop.f32.mrf.mxu0
        %v1500 = vadd.f32 %v1307, %v1499
        %v1501 = vpop.f32.mrf.mxu0
        %v1502 = vadd.f32 %v1309, %v1501
        %v1503 = vpop.f32.mrf.mxu0
        %v1504 = vadd.f32 %v1311, %v1503
        %1505 = vmatprep.mubr.bf16.mxu0 0
        %1506 = vmatmul.mubr.bf16.gmra.mxu0 %v1099
        %v1507 = vpop.f32.mrf.mxu0
        %v1508 = vadd.f32 %v1315, %v1507
        %v1509 = vpop.f32.mrf.mxu0
        %v1510 = vadd.f32 %v1317, %v1509
        %v1511 = vpop.f32.mrf.mxu0
        %v1512 = vadd.f32 %v1319, %v1511
        %v1513 = vpop.f32.mrf.mxu0
        %v1514 = vadd.f32 %v1321, %v1513
        %1515 = vmatprep.mubr.bf16.mxu0 0
        %1516 = vmatmul.mubr.bf16.gmra.mxu0 %v1100
        %v1517 = vpop.f32.mrf.mxu0
        %v1518 = vadd.f32 %v1325, %v1517
        %v1519 = vpop.f32.mrf.mxu0
        %v1520 = vadd.f32 %v1327, %v1519
        %v1521 = vpop.f32.mrf.mxu0
        %v1522 = vadd.f32 %v1329, %v1521
        %v1523 = vpop.f32.mrf.mxu0
        %v1524 = vadd.f32 %v1331, %v1523
        %1525 = vmatprep.mubr.bf16.mxu0 0
        %1526 = vmatmul.mubr.bf16.gmra.mxu0 %v1101
        %v1527 = vpop.f32.mrf.mxu0
        %v1528 = vadd.f32 %v1335, %v1527
        %v1529 = vpop.f32.mrf.mxu0
        %v1530 = vadd.f32 %v1337, %v1529
        %v1531 = vpop.f32.mrf.mxu0
        %v1532 = vadd.f32 %v1339, %v1531
        %v1533 = vpop.f32.mrf.mxu0
        %v1534 = vadd.f32 %v1341, %v1533
        %1535 = vmatprep.mubr.bf16.mxu0 0
        %1536 = vmatmul.mubr.bf16.gmra.mxu0 %v1102
        %v1537 = vpop.f32.mrf.mxu0
        %v1538 = vadd.f32 %v1345, %v1537
        %v1539 = vpop.f32.mrf.mxu0
        %v1540 = vadd.f32 %v1347, %v1539
        %v1541 = vpop.f32.mrf.mxu0
        %v1542 = vadd.f32 %v1349, %v1541
        %v1543 = vpop.f32.mrf.mxu0
        %v1544 = vadd.f32 %v1351, %v1543
        %1545 = vdwg.mxu0
        %v1546 = vld [vmem:[#allocation3 + $0x9] sm:$0xff]
        %v1547 = vld [vmem:[#allocation3 + $0x11] sm:$0xff]
        %v1548 = vld [vmem:[#allocation3 + $0x29] sm:$0xff]
        %v1549 = vld [vmem:[#allocation3 + $0x31] sm:$0xff]
        %v1550 = vld [vmem:[#allocation3 + $0x49] sm:$0xff]
        %v1551 = vld [vmem:[#allocation3 + $0x51] sm:$0xff]
        %v1552 = vld [vmem:[#allocation3 + $0x69] sm:$0xff]
        %v1553 = vld [vmem:[#allocation3 + $0x71] sm:$0xff]
        %v1554 = vld [vmem:[#allocation3 + $0x89] sm:$0xff]
        %v1555 = vld [vmem:[#allocation3 + $0x91] sm:$0xff]
        %v1556 = vld [vmem:[#allocation3 + $0xa9] sm:$0xff]
        %v1557 = vld [vmem:[#allocation3 + $0xb1] sm:$0xff]
        %v1558 = vld [vmem:[#allocation3 + $0xc9] sm:$0xff]
        %v1559 = vld [vmem:[#allocation3 + $0xd1] sm:$0xff]
        %v1560 = vld [vmem:[#allocation3 + $0xe9] sm:$0xff]
        %v1561 = vld [vmem:[#allocation3 + $0xf1] sm:$0xff]
        %v1562 = vpack.c.bf16 %v1547, %v1546
        %v1563 = vpack.c.bf16 %v1549, %v1548
        %v1564 = vpack.c.bf16 %v1551, %v1550
        %v1565 = vpack.c.bf16 %v1553, %v1552
        %v1566 = vpack.c.bf16 %v1555, %v1554
        %v1567 = vpack.c.bf16 %v1557, %v1556
        %v1568 = vpack.c.bf16 %v1559, %v1558
        %v1569 = vpack.c.bf16 %v1561, %v1560
        %s1570 = scalar_lea.vmem [#allocation11], 256
        %v1571 = vld [vmem:[%s1570] sm:$0xff]
        %v1572 = vld [vmem:[%s1570 + $0x8] sm:$0xff]
        %v1573 = vld [vmem:[%s1570 + $0x10] sm:$0xff]
        %v1574 = vld [vmem:[%s1570 + $0x18] sm:$0xff]
        %v1575 = vld [vmem:[%s1570 + $0x20] sm:$0xff]
        %v1576 = vld [vmem:[%s1570 + $0x28] sm:$0xff]
        %v1577 = vld [vmem:[%s1570 + $0x30] sm:$0xff]
        %v1578 = vld [vmem:[%s1570 + $0x38] sm:$0xff]
        %v1579 = vld [vmem:[%s1570 + $0x40] sm:$0xff]
        %v1580 = vld [vmem:[%s1570 + $0x48] sm:$0xff]
        %v1581 = vld [vmem:[%s1570 + $0x50] sm:$0xff]
        %v1582 = vld [vmem:[%s1570 + $0x58] sm:$0xff]
        %v1583 = vld [vmem:[%s1570 + $0x60] sm:$0xff]
        %v1584 = vld [vmem:[%s1570 + $0x68] sm:$0xff]
        %v1585 = vld [vmem:[%s1570 + $0x70] sm:$0xff]
        %v1586 = vld [vmem:[%s1570 + $0x78] sm:$0xff]
        %v1603 = vunpack.c.l.b16 %v1571
        %v1604 = vunpack.c.h.b16 %v1571
        %v1605 = vunpack.c.l.b16 %v1572
        %v1606 = vunpack.c.h.b16 %v1572
        %v1607 = vunpack.c.l.b16 %v1573
        %v1608 = vunpack.c.h.b16 %v1573
        %v1609 = vunpack.c.l.b16 %v1574
        %v1610 = vunpack.c.h.b16 %v1574
        %v1611 = vunpack.c.l.b16 %v1575
        %v1612 = vunpack.c.h.b16 %v1575
        %v1613 = vunpack.c.l.b16 %v1576
        %v1614 = vunpack.c.h.b16 %v1576
        %v1615 = vunpack.c.l.b16 %v1577
        %v1616 = vunpack.c.h.b16 %v1577
        %v1617 = vunpack.c.l.b16 %v1578
        %v1618 = vunpack.c.h.b16 %v1578
        %v1619 = vunpack.c.l.b16 %v1579
        %v1620 = vunpack.c.h.b16 %v1579
        %v1621 = vunpack.c.l.b16 %v1580
        %v1622 = vunpack.c.h.b16 %v1580
        %v1623 = vunpack.c.l.b16 %v1581
        %v1624 = vunpack.c.h.b16 %v1581
        %v1625 = vunpack.c.l.b16 %v1582
        %v1626 = vunpack.c.h.b16 %v1582
        %v1627 = vunpack.c.l.b16 %v1583
        %v1628 = vunpack.c.h.b16 %v1583
        %v1629 = vunpack.c.l.b16 %v1584
        %v1630 = vunpack.c.h.b16 %v1584
        %v1631 = vunpack.c.l.b16 %v1585
        %v1632 = vunpack.c.h.b16 %v1585
        %v1633 = vunpack.c.l.b16 %v1586
        %v1634 = vunpack.c.h.b16 %v1586
        %v1635 = vpack.c.b16 %v1605, %v1603
        %v1636 = vpack.c.b16 %v1606, %v1604
        %v1637 = vpack.c.b16 %v1609, %v1607
        %v1638 = vpack.c.b16 %v1610, %v1608
        %v1639 = vpack.c.b16 %v1613, %v1611
        %v1640 = vpack.c.b16 %v1614, %v1612
        %v1641 = vpack.c.b16 %v1617, %v1615
        %v1642 = vpack.c.b16 %v1618, %v1616
        %v1643 = vpack.c.b16 %v1621, %v1619
        %v1644 = vpack.c.b16 %v1622, %v1620
        %v1645 = vpack.c.b16 %v1625, %v1623
        %v1646 = vpack.c.b16 %v1626, %v1624
        %v1647 = vpack.c.b16 %v1629, %v1627
        %v1648 = vpack.c.b16 %v1630, %v1628
        %v1649 = vpack.c.b16 %v1633, %v1631
        %v1650 = vpack.c.b16 %v1634, %v1632
        %1667 = vmatprep.subr.bf16.mxu0 %v1650
        %1668 = vmatpush1.bf16.msra.mxu0 %v1649
        %1669 = vmatprep.subr.bf16.mxu0 %v1648
        %1670 = vmatpush1.bf16.msra.mxu0 %v1647
        %1671 = vmatprep.subr.bf16.mxu0 %v1646
        %1672 = vmatpush1.bf16.msra.mxu0 %v1645
        %1673 = vmatprep.subr.bf16.mxu0 %v1644
        %1674 = vmatpush1.bf16.msra.mxu0 %v1643
        %1675 = vmatprep.subr.bf16.mxu0 %v1642
        %1676 = vmatpush1.bf16.msra.mxu0 %v1641
        %1677 = vmatprep.subr.bf16.mxu0 %v1640
        %1678 = vmatpush1.bf16.msra.mxu0 %v1639
        %1679 = vmatprep.subr.bf16.mxu0 %v1638
        %1680 = vmatpush1.bf16.msra.mxu0 %v1637
        %1681 = vmatprep.subr.bf16.mxu0 %v1636
        %1682 = vmatpush1.bf16.msra.mxu0 %v1635
        %1683 = vmatprep.subr.bf16.mxu0 0
        %1684 = vmatpush2.bf16.msra.mxu0 0
        %1685 = vmatprep.subr.bf16.mxu0 0
        %1686 = vmatpush2.bf16.msra.mxu0 0
        %1687 = vmatprep.subr.bf16.mxu0 0
        %1688 = vmatpush2.bf16.msra.mxu0 0
        %1689 = vmatprep.subr.bf16.mxu0 0
        %1690 = vmatpush2.bf16.msra.mxu0 0
        %1691 = vmatprep.subr.bf16.mxu0 0
        %1692 = vmatpush2.bf16.msra.mxu0 0
        %1693 = vmatprep.subr.bf16.mxu0 0
        %1694 = vmatpush2.bf16.msra.mxu0 0
        %1695 = vmatprep.subr.bf16.mxu0 0
        %1696 = vmatpush2.bf16.msra.mxu0 0
        %1697 = vmatprep.subr.bf16.mxu0 0
        %1698 = vmatpush2.bf16.msra.mxu0 0
        %1699 = vmatprep.mubr.bf16.mxu0 0
        %1700 = vmatmul.mubr.bf16.gmra.mxu0 %v1562
        %v1701 = vpop.f32.mrf.mxu0
        %v1702 = vadd.f32 0.0, %v1701
        %v1703 = vpop.f32.mrf.mxu0
        %v1704 = vadd.f32 0.0, %v1703
        %v1705 = vpop.f32.mrf.mxu0
        %v1706 = vadd.f32 0.0, %v1705
        %v1707 = vpop.f32.mrf.mxu0
        %v1708 = vadd.f32 0.0, %v1707
        %1709 = vmatprep.mubr.bf16.mxu0 0
        %1710 = vmatmul.mubr.bf16.gmra.mxu0 %v1563
        %v1711 = vpop.f32.mrf.mxu0
        %v1712 = vadd.f32 0.0, %v1711
        %v1713 = vpop.f32.mrf.mxu0
        %v1714 = vadd.f32 0.0, %v1713
        %v1715 = vpop.f32.mrf.mxu0
        %v1716 = vadd.f32 0.0, %v1715
        %v1717 = vpop.f32.mrf.mxu0
        %v1718 = vadd.f32 0.0, %v1717
        %1719 = vmatprep.mubr.bf16.mxu0 0
        %1720 = vmatmul.mubr.bf16.gmra.mxu0 %v1564
        %v1721 = vpop.f32.mrf.mxu0
        %v1722 = vadd.f32 0.0, %v1721
        %v1723 = vpop.f32.mrf.mxu0
        %v1724 = vadd.f32 0.0, %v1723
        %v1725 = vpop.f32.mrf.mxu0
        %v1726 = vadd.f32 0.0, %v1725
        %v1727 = vpop.f32.mrf.mxu0
        %v1728 = vadd.f32 0.0, %v1727
        %1729 = vmatprep.mubr.bf16.mxu0 0
        %1730 = vmatmul.mubr.bf16.gmra.mxu0 %v1565
        %v1731 = vpop.f32.mrf.mxu0
        %v1732 = vadd.f32 0.0, %v1731
        %v1733 = vpop.f32.mrf.mxu0
        %v1734 = vadd.f32 0.0, %v1733
        %v1735 = vpop.f32.mrf.mxu0
        %v1736 = vadd.f32 0.0, %v1735
        %v1737 = vpop.f32.mrf.mxu0
        %v1738 = vadd.f32 0.0, %v1737
        %1739 = vmatprep.mubr.bf16.mxu0 0
        %1740 = vmatmul.mubr.bf16.gmra.mxu0 %v1566
        %v1741 = vpop.f32.mrf.mxu0
        %v1742 = vadd.f32 0.0, %v1741
        %v1743 = vpop.f32.mrf.mxu0
        %v1744 = vadd.f32 0.0, %v1743
        %v1745 = vpop.f32.mrf.mxu0
        %v1746 = vadd.f32 0.0, %v1745
        %v1747 = vpop.f32.mrf.mxu0
        %v1748 = vadd.f32 0.0, %v1747
        %1749 = vmatprep.mubr.bf16.mxu0 0
        %1750 = vmatmul.mubr.bf16.gmra.mxu0 %v1567
        %v1751 = vpop.f32.mrf.mxu0
        %v1752 = vadd.f32 0.0, %v1751
        %v1753 = vpop.f32.mrf.mxu0
        %v1754 = vadd.f32 0.0, %v1753
        %v1755 = vpop.f32.mrf.mxu0
        %v1756 = vadd.f32 0.0, %v1755
        %v1757 = vpop.f32.mrf.mxu0
        %v1758 = vadd.f32 0.0, %v1757
        %1759 = vmatprep.mubr.bf16.mxu0 0
        %1760 = vmatmul.mubr.bf16.gmra.mxu0 %v1568
        %v1761 = vpop.f32.mrf.mxu0
        %v1762 = vadd.f32 0.0, %v1761
        %v1763 = vpop.f32.mrf.mxu0
        %v1764 = vadd.f32 0.0, %v1763
        %v1765 = vpop.f32.mrf.mxu0
        %v1766 = vadd.f32 0.0, %v1765
        %v1767 = vpop.f32.mrf.mxu0
        %v1768 = vadd.f32 0.0, %v1767
        %1769 = vmatprep.mubr.bf16.mxu0 0
        %1770 = vmatmul.mubr.bf16.gmra.mxu0 %v1569
        %v1771 = vpop.f32.mrf.mxu0
        %v1772 = vadd.f32 0.0, %v1771
        %v1773 = vpop.f32.mrf.mxu0
        %v1774 = vadd.f32 0.0, %v1773
        %v1775 = vpop.f32.mrf.mxu0
        %v1776 = vadd.f32 0.0, %v1775
        %v1777 = vpop.f32.mrf.mxu0
        %v1778 = vadd.f32 0.0, %v1777
        %1779 = vdwg.mxu0
        %v1780 = vadd.f32 %v1468, %v1702
        %v1781 = vadd.f32 %v1470, %v1704
        %v1782 = vadd.f32 %v1472, %v1706
        %v1783 = vadd.f32 %v1474, %v1708
        %v1784 = vadd.f32 %v1478, %v1712
        %v1785 = vadd.f32 %v1480, %v1714
        %v1786 = vadd.f32 %v1482, %v1716
        %v1787 = vadd.f32 %v1484, %v1718
        %v1788 = vadd.f32 %v1488, %v1722
        %v1789 = vadd.f32 %v1490, %v1724
        %v1790 = vadd.f32 %v1492, %v1726
        %v1791 = vadd.f32 %v1494, %v1728
        %v1792 = vadd.f32 %v1498, %v1732
        %v1793 = vadd.f32 %v1500, %v1734
        %v1794 = vadd.f32 %v1502, %v1736
        %v1795 = vadd.f32 %v1504, %v1738
        %v1796 = vadd.f32 %v1508, %v1742
        %v1797 = vadd.f32 %v1510, %v1744
        %v1798 = vadd.f32 %v1512, %v1746
        %v1799 = vadd.f32 %v1514, %v1748
        %v1800 = vadd.f32 %v1518, %v1752
        %v1801 = vadd.f32 %v1520, %v1754
        %v1802 = vadd.f32 %v1522, %v1756
        %v1803 = vadd.f32 %v1524, %v1758
        %v1804 = vadd.f32 %v1528, %v1762
        %v1805 = vadd.f32 %v1530, %v1764
        %v1806 = vadd.f32 %v1532, %v1766
        %v1807 = vadd.f32 %v1534, %v1768
        %v1808 = vadd.f32 %v1538, %v1772
        %v1809 = vadd.f32 %v1540, %v1774
        %v1810 = vadd.f32 %v1542, %v1776
        %v1811 = vadd.f32 %v1544, %v1778
        %v1812 = vld [vmem:[%s6] sm:$0x3]
        %v1814 = vlaneseq
        %v1815 = vshrl.u32 %v1814, 7
        %v1816 = vsub.s32 0, %v1815
        %v1817 = vrot.slane %v1812, %v1816
        %v1818 = vlaneseq
        %v1819 = vshrl.u32 %v1818, 7
        %v1820 = vsub.s32 1, %v1819
        %v1821 = vrot.slane %v1812, %v1820
        %v1824 = vadd.f32 %v1780, %v1817
        %v1825 = vadd.f32 %v1781, %v1821
        %v1826 = vadd.f32 %v1782, %v1817
        %v1827 = vadd.f32 %v1783, %v1821
        %v1828 = vadd.f32 %v1784, %v1817
        %v1829 = vadd.f32 %v1785, %v1821
        %v1830 = vadd.f32 %v1786, %v1817
        %v1831 = vadd.f32 %v1787, %v1821
        %v1832 = vadd.f32 %v1788, %v1817
        %v1833 = vadd.f32 %v1789, %v1821
        %v1834 = vadd.f32 %v1790, %v1817
        %v1835 = vadd.f32 %v1791, %v1821
        %v1836 = vadd.f32 %v1792, %v1817
        %v1837 = vadd.f32 %v1793, %v1821
        %v1838 = vadd.f32 %v1794, %v1817
        %v1839 = vadd.f32 %v1795, %v1821
        %v1840 = vadd.f32 %v1796, %v1817
        %v1841 = vadd.f32 %v1797, %v1821
        %v1842 = vadd.f32 %v1798, %v1817
        %v1843 = vadd.f32 %v1799, %v1821
        %v1844 = vadd.f32 %v1800, %v1817
        %v1845 = vadd.f32 %v1801, %v1821
        %v1846 = vadd.f32 %v1802, %v1817
        %v1847 = vadd.f32 %v1803, %v1821
        %v1848 = vadd.f32 %v1804, %v1817
        %v1849 = vadd.f32 %v1805, %v1821
        %v1850 = vadd.f32 %v1806, %v1817
        %v1851 = vadd.f32 %v1807, %v1821
        %v1852 = vadd.f32 %v1808, %v1817
        %v1853 = vadd.f32 %v1809, %v1821
        %v1854 = vadd.f32 %v1810, %v1817
        %v1855 = vadd.f32 %v1811, %v1821
        %v1856 = vmax.f32 %v1824, 0.0
        %v1857 = vmax.f32 %v1825, 0.0
        %v1858 = vmax.f32 %v1826, 0.0
        %v1859 = vmax.f32 %v1827, 0.0
        %v1860 = vmax.f32 %v1828, 0.0
        %v1861 = vmax.f32 %v1829, 0.0
        %v1862 = vmax.f32 %v1830, 0.0
        %v1863 = vmax.f32 %v1831, 0.0
        %v1864 = vmax.f32 %v1832, 0.0
        %v1865 = vmax.f32 %v1833, 0.0
        %v1866 = vmax.f32 %v1834, 0.0
        %v1867 = vmax.f32 %v1835, 0.0
        %v1868 = vmax.f32 %v1836, 0.0
        %v1869 = vmax.f32 %v1837, 0.0
        %v1870 = vmax.f32 %v1838, 0.0
        %v1871 = vmax.f32 %v1839, 0.0
        %v1872 = vmax.f32 %v1840, 0.0
        %v1873 = vmax.f32 %v1841, 0.0
        %v1874 = vmax.f32 %v1842, 0.0
        %v1875 = vmax.f32 %v1843, 0.0
        %v1876 = vmax.f32 %v1844, 0.0
        %v1877 = vmax.f32 %v1845, 0.0
        %v1878 = vmax.f32 %v1846, 0.0
        %v1879 = vmax.f32 %v1847, 0.0
        %v1880 = vmax.f32 %v1848, 0.0
        %v1881 = vmax.f32 %v1849, 0.0
        %v1882 = vmax.f32 %v1850, 0.0
        %v1883 = vmax.f32 %v1851, 0.0
        %v1884 = vmax.f32 %v1852, 0.0
        %v1885 = vmax.f32 %v1853, 0.0
        %v1886 = vmax.f32 %v1854, 0.0
        %v1887 = vmax.f32 %v1855, 0.0
        %1888 = vst [vmem:[#allocation4] sm:$0xff] 0
        %1889 = vst [vmem:[#allocation4 + $0x8] sm:$0xff] 0
        %s1890 = scalar_lea.vmem [#allocation4], 144
        %1891 = vst [vmem:[%s1890] sm:$0xff] 0
        %1892 = vst [vmem:[%s1890 + $0x8] sm:$0xff] 0
        %v1893 = vpack.c.bf16 %v1858, %v1856
        %v1894 = vpack.c.bf16 %v1859, %v1857
        %v1895 = vpack.c.bf16 %v1862, %v1860
        %v1896 = vpack.c.bf16 %v1863, %v1861
        %v1897 = vpack.c.bf16 %v1866, %v1864
        %v1898 = vpack.c.bf16 %v1867, %v1865
        %v1899 = vpack.c.bf16 %v1870, %v1868
        %v1900 = vpack.c.bf16 %v1871, %v1869
        %v1901 = vpack.c.bf16 %v1874, %v1872
        %v1902 = vpack.c.bf16 %v1875, %v1873
        %v1903 = vpack.c.bf16 %v1878, %v1876
        %v1904 = vpack.c.bf16 %v1879, %v1877
        %v1905 = vpack.c.bf16 %v1882, %v1880
        %v1906 = vpack.c.bf16 %v1883, %v1881
        %v1907 = vpack.c.bf16 %v1886, %v1884
        %v1908 = vpack.c.bf16 %v1887, %v1885
        %v1925 = vunpack.c.l.b16 %v1893
        %v1926 = vunpack.c.l.b16 %v1894
        %v1927 = vunpack.c.h.b16 %v1893
        %v1928 = vunpack.c.h.b16 %v1894
        %v1929 = vunpack.c.l.b16 %v1895
        %v1930 = vunpack.c.l.b16 %v1896
        %v1931 = vunpack.c.h.b16 %v1895
        %v1932 = vunpack.c.h.b16 %v1896
        %v1933 = vunpack.c.l.b16 %v1897
        %v1934 = vunpack.c.l.b16 %v1898
        %v1935 = vunpack.c.h.b16 %v1897
        %v1936 = vunpack.c.h.b16 %v1898
        %v1937 = vunpack.c.l.b16 %v1899
        %v1938 = vunpack.c.l.b16 %v1900
        %v1939 = vunpack.c.h.b16 %v1899
        %v1940 = vunpack.c.h.b16 %v1900
        %v1941 = vunpack.c.l.b16 %v1901
        %v1942 = vunpack.c.l.b16 %v1902
        %v1943 = vunpack.c.h.b16 %v1901
        %v1944 = vunpack.c.h.b16 %v1902
        %v1945 = vunpack.c.l.b16 %v1903
        %v1946 = vunpack.c.l.b16 %v1904
        %v1947 = vunpack.c.h.b16 %v1903
        %v1948 = vunpack.c.h.b16 %v1904
        %v1949 = vunpack.c.l.b16 %v1905
        %v1950 = vunpack.c.l.b16 %v1906
        %v1951 = vunpack.c.h.b16 %v1905
        %v1952 = vunpack.c.h.b16 %v1906
        %v1953 = vunpack.c.l.b16 %v1907
        %v1954 = vunpack.c.l.b16 %v1908
        %v1955 = vunpack.c.h.b16 %v1907
        %v1956 = vunpack.c.h.b16 %v1908
        %v1957 = vpack.c.b16 %v1926, %v1925
        %v1958 = vpack.c.b16 %v1928, %v1927
        %v1959 = vpack.c.b16 %v1930, %v1929
        %v1960 = vpack.c.b16 %v1932, %v1931
        %v1961 = vpack.c.b16 %v1934, %v1933
        %v1962 = vpack.c.b16 %v1936, %v1935
        %v1963 = vpack.c.b16 %v1938, %v1937
        %v1964 = vpack.c.b16 %v1940, %v1939
        %v1965 = vpack.c.b16 %v1942, %v1941
        %v1966 = vpack.c.b16 %v1944, %v1943
        %v1967 = vpack.c.b16 %v1946, %v1945
        %v1968 = vpack.c.b16 %v1948, %v1947
        %v1969 = vpack.c.b16 %v1950, %v1949
        %v1970 = vpack.c.b16 %v1952, %v1951
        %v1971 = vpack.c.b16 %v1954, %v1953
        %v1972 = vpack.c.b16 %v1956, %v1955
        %s1989 = scalar_lea.vmem [#allocation4], 16
        %1990 = vst [vmem:[%s1989] sm:$0xff] %v1957
        %1991 = vst [vmem:[%s1989 + $0x8] sm:$0xff] %v1958
        %1992 = vst [vmem:[%s1989 + $0x10] sm:$0xff] %v1959
        %1993 = vst [vmem:[%s1989 + $0x18] sm:$0xff] %v1960
        %1994 = vst [vmem:[%s1989 + $0x20] sm:$0xff] %v1961
        %1995 = vst [vmem:[%s1989 + $0x28] sm:$0xff] %v1962
        %1996 = vst [vmem:[%s1989 + $0x30] sm:$0xff] %v1963
        %1997 = vst [vmem:[%s1989 + $0x38] sm:$0xff] %v1964
        %1998 = vst [vmem:[%s1989 + $0x40] sm:$0xff] %v1965
        %1999 = vst [vmem:[%s1989 + $0x48] sm:$0xff] %v1966
        %2000 = vst [vmem:[%s1989 + $0x50] sm:$0xff] %v1967
        %2001 = vst [vmem:[%s1989 + $0x58] sm:$0xff] %v1968
        %2002 = vst [vmem:[%s1989 + $0x60] sm:$0xff] %v1969
        %2003 = vst [vmem:[%s1989 + $0x68] sm:$0xff] %v1970
        %2004 = vst [vmem:[%s1989 + $0x70] sm:$0xff] %v1971
        %2005 = vst [vmem:[%s1989 + $0x78] sm:$0xff] %v1972
        %v2006 = vld [vmem:[#allocation4] sm:$0xff]
        %v2007 = vld [vmem:[#allocation4 + $0x8] sm:$0xff]
        %v2008 = vld [vmem:[#allocation4 + $0x10] sm:$0xff]
        %v2009 = vld [vmem:[#allocation4 + $0x18] sm:$0xff]
        %v2010 = vld [vmem:[#allocation4 + $0x20] sm:$0xff]
        %v2011 = vld [vmem:[#allocation4 + $0x28] sm:$0xff]
        %v2012 = vld [vmem:[#allocation4 + $0x30] sm:$0xff]
        %v2013 = vld [vmem:[#allocation4 + $0x38] sm:$0xff]
        %v2014 = vld [vmem:[#allocation4 + $0x40] sm:$0xff]
        %v2015 = vld [vmem:[#allocation4 + $0x48] sm:$0xff]
        %v2016 = vld [vmem:[#allocation4 + $0x50] sm:$0xff]
        %v2017 = vld [vmem:[#allocation4 + $0x58] sm:$0xff]
        %v2018 = vld [vmem:[#allocation4 + $0x60] sm:$0xff]
        %v2019 = vld [vmem:[#allocation4 + $0x68] sm:$0xff]
        %v2020 = vld [vmem:[#allocation4 + $0x70] sm:$0xff]
        %v2021 = vld [vmem:[#allocation4 + $0x78] sm:$0xff]
        %v2022 = vld [vmem:[#allocation12] sm:$0xff]
        %v2023 = vld [vmem:[#allocation12 + $0x8] sm:$0xff]
        %v2024 = vld [vmem:[#allocation12 + $0x10] sm:$0xff]
        %v2025 = vld [vmem:[#allocation12 + $0x18] sm:$0xff]
        %v2026 = vld [vmem:[#allocation12 + $0x20] sm:$0xff]
        %v2027 = vld [vmem:[#allocation12 + $0x28] sm:$0xff]
        %v2028 = vld [vmem:[#allocation12 + $0x30] sm:$0xff]
        %v2029 = vld [vmem:[#allocation12 + $0x38] sm:$0xff]
        %v2030 = vld [vmem:[#allocation12 + $0x40] sm:$0xff]
        %v2031 = vld [vmem:[#allocation12 + $0x48] sm:$0xff]
        %v2032 = vld [vmem:[#allocation12 + $0x50] sm:$0xff]
        %v2033 = vld [vmem:[#allocation12 + $0x58] sm:$0xff]
        %v2034 = vld [vmem:[#allocation12 + $0x60] sm:$0xff]
        %v2035 = vld [vmem:[#allocation12 + $0x68] sm:$0xff]
        %v2036 = vld [vmem:[#allocation12 + $0x70] sm:$0xff]
        %v2037 = vld [vmem:[#allocation12 + $0x78] sm:$0xff]
        %v2038 = vld [vmem:[#allocation12 + $0x80] sm:$0xff]
        %v2039 = vld [vmem:[#allocation12 + $0x88] sm:$0xff]
        %v2040 = vld [vmem:[#allocation12 + $0x90] sm:$0xff]
        %v2041 = vld [vmem:[#allocation12 + $0x98] sm:$0xff]
        %v2042 = vld [vmem:[#allocation12 + $0xa0] sm:$0xff]
        %v2043 = vld [vmem:[#allocation12 + $0xa8] sm:$0xff]
        %v2044 = vld [vmem:[#allocation12 + $0xb0] sm:$0xff]
        %v2045 = vld [vmem:[#allocation12 + $0xb8] sm:$0xff]
        %v2046 = vld [vmem:[#allocation12 + $0xc0] sm:$0xff]
        %v2047 = vld [vmem:[#allocation12 + $0xc8] sm:$0xff]
        %v2048 = vld [vmem:[#allocation12 + $0xd0] sm:$0xff]
        %v2049 = vld [vmem:[#allocation12 + $0xd8] sm:$0xff]
        %v2050 = vld [vmem:[#allocation12 + $0xe0] sm:$0xff]
        %v2051 = vld [vmem:[#allocation12 + $0xe8] sm:$0xff]
        %v2052 = vld [vmem:[#allocation12 + $0xf0] sm:$0xff]
        %v2053 = vld [vmem:[#allocation12 + $0xf8] sm:$0xff]
        %v2054 = vld [vmem:[%s1989] sm:$0xff]
        %v2055 = vld [vmem:[%s1989 + $0x8] sm:$0xff]
        %v2056 = vld [vmem:[%s1989 + $0x10] sm:$0xff]
        %v2057 = vld [vmem:[%s1989 + $0x18] sm:$0xff]
        %v2058 = vld [vmem:[%s1989 + $0x20] sm:$0xff]
        %v2059 = vld [vmem:[%s1989 + $0x28] sm:$0xff]
        %v2060 = vld [vmem:[%s1989 + $0x30] sm:$0xff]
        %v2061 = vld [vmem:[%s1989 + $0x38] sm:$0xff]
        %v2062 = vld [vmem:[%s1989 + $0x40] sm:$0xff]
        %v2063 = vld [vmem:[%s1989 + $0x48] sm:$0xff]
        %v2064 = vld [vmem:[%s1989 + $0x50] sm:$0xff]
        %v2065 = vld [vmem:[%s1989 + $0x58] sm:$0xff]
        %v2066 = vld [vmem:[%s1989 + $0x60] sm:$0xff]
        %v2067 = vld [vmem:[%s1989 + $0x68] sm:$0xff]
        %v2068 = vld [vmem:[%s1989 + $0x70] sm:$0xff]
        %v2069 = vld [vmem:[%s1989 + $0x78] sm:$0xff]
        %s2070 = scalar_lea.vmem [#allocation12], 256
        %v2071 = vld [vmem:[%s2070] sm:$0xff]
        %v2072 = vld [vmem:[%s2070 + $0x8] sm:$0xff]
        %v2073 = vld [vmem:[%s2070 + $0x10] sm:$0xff]
        %v2074 = vld [vmem:[%s2070 + $0x18] sm:$0xff]
        %v2075 = vld [vmem:[%s2070 + $0x20] sm:$0xff]
        %v2076 = vld [vmem:[%s2070 + $0x28] sm:$0xff]
        %v2077 = vld [vmem:[%s2070 + $0x30] sm:$0xff]
        %v2078 = vld [vmem:[%s2070 + $0x38] sm:$0xff]
        %v2079 = vld [vmem:[%s2070 + $0x40] sm:$0xff]
        %v2080 = vld [vmem:[%s2070 + $0x48] sm:$0xff]
        %v2081 = vld [vmem:[%s2070 + $0x50] sm:$0xff]
        %v2082 = vld [vmem:[%s2070 + $0x58] sm:$0xff]
        %v2083 = vld [vmem:[%s2070 + $0x60] sm:$0xff]
        %v2084 = vld [vmem:[%s2070 + $0x68] sm:$0xff]
        %v2085 = vld [vmem:[%s2070 + $0x70] sm:$0xff]
        %v2086 = vld [vmem:[%s2070 + $0x78] sm:$0xff]
        %v2087 = vld [vmem:[%s2070 + $0x80] sm:$0xff]
        %v2088 = vld [vmem:[%s2070 + $0x88] sm:$0xff]
        %v2089 = vld [vmem:[%s2070 + $0x90] sm:$0xff]
        %v2090 = vld [vmem:[%s2070 + $0x98] sm:$0xff]
        %v2091 = vld [vmem:[%s2070 + $0xa0] sm:$0xff]
        %v2092 = vld [vmem:[%s2070 + $0xa8] sm:$0xff]
        %v2093 = vld [vmem:[%s2070 + $0xb0] sm:$0xff]
        %v2094 = vld [vmem:[%s2070 + $0xb8] sm:$0xff]
        %v2095 = vld [vmem:[%s2070 + $0xc0] sm:$0xff]
        %v2096 = vld [vmem:[%s2070 + $0xc8] sm:$0xff]
        %v2097 = vld [vmem:[%s2070 + $0xd0] sm:$0xff]
        %v2098 = vld [vmem:[%s2070 + $0xd8] sm:$0xff]
        %v2099 = vld [vmem:[%s2070 + $0xe0] sm:$0xff]
        %v2100 = vld [vmem:[%s2070 + $0xe8] sm:$0xff]
        %v2101 = vld [vmem:[%s2070 + $0xf0] sm:$0xff]
        %v2102 = vld [vmem:[%s2070 + $0xf8] sm:$0xff]
        %v2119 = vunpack.c.l.b16 %v2054
        %v2120 = vunpack.c.h.b16 %v2054
        %v2121 = vunpack.c.l.b16 %v2055
        %v2122 = vunpack.c.h.b16 %v2055
        %v2123 = vunpack.c.l.b16 %v2056
        %v2124 = vunpack.c.h.b16 %v2056
        %v2125 = vunpack.c.l.b16 %v2057
        %v2126 = vunpack.c.h.b16 %v2057
        %v2127 = vunpack.c.l.b16 %v2058
        %v2128 = vunpack.c.h.b16 %v2058
        %v2129 = vunpack.c.l.b16 %v2059
        %v2130 = vunpack.c.h.b16 %v2059
        %v2131 = vunpack.c.l.b16 %v2060
        %v2132 = vunpack.c.h.b16 %v2060
        %v2133 = vunpack.c.l.b16 %v2061
        %v2134 = vunpack.c.h.b16 %v2061
        %v2135 = vunpack.c.l.b16 %v2062
        %v2136 = vunpack.c.h.b16 %v2062
        %v2137 = vunpack.c.l.b16 %v2063
        %v2138 = vunpack.c.h.b16 %v2063
        %v2139 = vunpack.c.l.b16 %v2064
        %v2140 = vunpack.c.h.b16 %v2064
        %v2141 = vunpack.c.l.b16 %v2065
        %v2142 = vunpack.c.h.b16 %v2065
        %v2143 = vunpack.c.l.b16 %v2066
        %v2144 = vunpack.c.h.b16 %v2066
        %v2145 = vunpack.c.l.b16 %v2067
        %v2146 = vunpack.c.h.b16 %v2067
        %v2147 = vunpack.c.l.b16 %v2068
        %v2148 = vunpack.c.h.b16 %v2068
        %v2149 = vunpack.c.l.b16 %v2069
        %v2150 = vunpack.c.h.b16 %v2069
        %v2151 = vpack.c.b16 %v2121, %v2119
        %v2152 = vpack.c.b16 %v2122, %v2120
        %v2153 = vpack.c.b16 %v2125, %v2123
        %v2154 = vpack.c.b16 %v2126, %v2124
        %v2155 = vpack.c.b16 %v2129, %v2127
        %v2156 = vpack.c.b16 %v2130, %v2128
        %v2157 = vpack.c.b16 %v2133, %v2131
        %v2158 = vpack.c.b16 %v2134, %v2132
        %v2159 = vpack.c.b16 %v2137, %v2135
        %v2160 = vpack.c.b16 %v2138, %v2136
        %v2161 = vpack.c.b16 %v2141, %v2139
        %v2162 = vpack.c.b16 %v2142, %v2140
        %v2163 = vpack.c.b16 %v2145, %v2143
        %v2164 = vpack.c.b16 %v2146, %v2144
        %v2165 = vpack.c.b16 %v2149, %v2147
        %v2166 = vpack.c.b16 %v2150, %v2148
        %v2215 = vunpack.c.l.b16 %v2071
        %v2216 = vunpack.c.h.b16 %v2071
        %v2217 = vunpack.c.l.b16 %v2072
        %v2218 = vunpack.c.h.b16 %v2072
        %v2219 = vunpack.c.l.b16 %v2073
        %v2220 = vunpack.c.h.b16 %v2073
        %v2221 = vunpack.c.l.b16 %v2074
        %v2222 = vunpack.c.h.b16 %v2074
        %v2223 = vunpack.c.l.b16 %v2075
        %v2224 = vunpack.c.h.b16 %v2075
        %v2225 = vunpack.c.l.b16 %v2076
        %v2226 = vunpack.c.h.b16 %v2076
        %v2227 = vunpack.c.l.b16 %v2077
        %v2228 = vunpack.c.h.b16 %v2077
        %v2229 = vunpack.c.l.b16 %v2078
        %v2230 = vunpack.c.h.b16 %v2078
        %v2231 = vunpack.c.l.b16 %v2079
        %v2232 = vunpack.c.h.b16 %v2079
        %v2233 = vunpack.c.l.b16 %v2080
        %v2234 = vunpack.c.h.b16 %v2080
        %v2235 = vunpack.c.l.b16 %v2081
        %v2236 = vunpack.c.h.b16 %v2081
        %v2237 = vunpack.c.l.b16 %v2082
        %v2238 = vunpack.c.h.b16 %v2082
        %v2239 = vunpack.c.l.b16 %v2083
        %v2240 = vunpack.c.h.b16 %v2083
        %v2241 = vunpack.c.l.b16 %v2084
        %v2242 = vunpack.c.h.b16 %v2084
        %v2243 = vunpack.c.l.b16 %v2085
        %v2244 = vunpack.c.h.b16 %v2085
        %v2245 = vunpack.c.l.b16 %v2086
        %v2246 = vunpack.c.h.b16 %v2086
        %v2247 = vunpack.c.l.b16 %v2087
        %v2248 = vunpack.c.h.b16 %v2087
        %v2249 = vunpack.c.l.b16 %v2088
        %v2250 = vunpack.c.h.b16 %v2088
        %v2251 = vunpack.c.l.b16 %v2089
        %v2252 = vunpack.c.h.b16 %v2089
        %v2253 = vunpack.c.l.b16 %v2090
        %v2254 = vunpack.c.h.b16 %v2090
        %v2255 = vunpack.c.l.b16 %v2091
        %v2256 = vunpack.c.h.b16 %v2091
        %v2257 = vunpack.c.l.b16 %v2092
        %v2258 = vunpack.c.h.b16 %v2092
        %v2259 = vunpack.c.l.b16 %v2093
        %v2260 = vunpack.c.h.b16 %v2093
        %v2261 = vunpack.c.l.b16 %v2094
        %v2262 = vunpack.c.h.b16 %v2094
        %v2263 = vunpack.c.l.b16 %v2095
        %v2264 = vunpack.c.h.b16 %v2095
        %v2265 = vunpack.c.l.b16 %v2096
        %v2266 = vunpack.c.h.b16 %v2096
        %v2267 = vunpack.c.l.b16 %v2097
        %v2268 = vunpack.c.h.b16 %v2097
        %v2269 = vunpack.c.l.b16 %v2098
        %v2270 = vunpack.c.h.b16 %v2098
        %v2271 = vunpack.c.l.b16 %v2099
        %v2272 = vunpack.c.h.b16 %v2099
        %v2273 = vunpack.c.l.b16 %v2100
        %v2274 = vunpack.c.h.b16 %v2100
        %v2275 = vunpack.c.l.b16 %v2101
        %v2276 = vunpack.c.h.b16 %v2101
        %v2277 = vunpack.c.l.b16 %v2102
        %v2278 = vunpack.c.h.b16 %v2102
        %v2279 = vpack.c.b16 %v2217, %v2215
        %v2280 = vpack.c.b16 %v2218, %v2216
        %v2281 = vpack.c.b16 %v2221, %v2219
        %v2282 = vpack.c.b16 %v2222, %v2220
        %v2283 = vpack.c.b16 %v2225, %v2223
        %v2284 = vpack.c.b16 %v2226, %v2224
        %v2285 = vpack.c.b16 %v2229, %v2227
        %v2286 = vpack.c.b16 %v2230, %v2228
        %v2287 = vpack.c.b16 %v2233, %v2231
        %v2288 = vpack.c.b16 %v2234, %v2232
        %v2289 = vpack.c.b16 %v2237, %v2235
        %v2290 = vpack.c.b16 %v2238, %v2236
        %v2291 = vpack.c.b16 %v2241, %v2239
        %v2292 = vpack.c.b16 %v2242, %v2240
        %v2293 = vpack.c.b16 %v2245, %v2243
        %v2294 = vpack.c.b16 %v2246, %v2244
        %v2295 = vpack.c.b16 %v2249, %v2247
        %v2296 = vpack.c.b16 %v2250, %v2248
        %v2297 = vpack.c.b16 %v2253, %v2251
        %v2298 = vpack.c.b16 %v2254, %v2252
        %v2299 = vpack.c.b16 %v2257, %v2255
        %v2300 = vpack.c.b16 %v2258, %v2256
        %v2301 = vpack.c.b16 %v2261, %v2259
        %v2302 = vpack.c.b16 %v2262, %v2260
        %v2303 = vpack.c.b16 %v2265, %v2263
        %v2304 = vpack.c.b16 %v2266, %v2264
        %v2305 = vpack.c.b16 %v2269, %v2267
        %v2306 = vpack.c.b16 %v2270, %v2268
        %v2307 = vpack.c.b16 %v2273, %v2271
        %v2308 = vpack.c.b16 %v2274, %v2272
        %v2309 = vpack.c.b16 %v2277, %v2275
        %v2310 = vpack.c.b16 %v2278, %v2276
        %2343 = vmatprep.subr.bf16.mxu0 %v2294
        %2344 = vmatpush1.bf16.msra.mxu0 %v2293
        %2345 = vmatprep.subr.bf16.mxu0 %v2292
        %2346 = vmatpush1.bf16.msra.mxu0 %v2291
        %2347 = vmatprep.subr.bf16.mxu0 %v2290
        %2348 = vmatpush1.bf16.msra.mxu0 %v2289
        %2349 = vmatprep.subr.bf16.mxu0 %v2288
        %2350 = vmatpush1.bf16.msra.mxu0 %v2287
        %2351 = vmatprep.subr.bf16.mxu0 %v2286
        %2352 = vmatpush1.bf16.msra.mxu0 %v2285
        %2353 = vmatprep.subr.bf16.mxu0 %v2284
        %2354 = vmatpush1.bf16.msra.mxu0 %v2283
        %2355 = vmatprep.subr.bf16.mxu0 %v2282
        %2356 = vmatpush1.bf16.msra.mxu0 %v2281
        %2357 = vmatprep.subr.bf16.mxu0 %v2280
        %2358 = vmatpush1.bf16.msra.mxu0 %v2279
        %2359 = vmatprep.subr.bf16.mxu0 %v2310
        %2360 = vmatpush2.bf16.msra.mxu0 %v2309
        %2361 = vmatprep.subr.bf16.mxu0 %v2308
        %2362 = vmatpush2.bf16.msra.mxu0 %v2307
        %2363 = vmatprep.subr.bf16.mxu0 %v2306
        %2364 = vmatpush2.bf16.msra.mxu0 %v2305
        %2365 = vmatprep.subr.bf16.mxu0 %v2304
        %2366 = vmatpush2.bf16.msra.mxu0 %v2303
        %2367 = vmatprep.subr.bf16.mxu0 %v2302
        %2368 = vmatpush2.bf16.msra.mxu0 %v2301
        %2369 = vmatprep.subr.bf16.mxu0 %v2300
        %2370 = vmatpush2.bf16.msra.mxu0 %v2299
        %2371 = vmatprep.subr.bf16.mxu0 %v2298
        %2372 = vmatpush2.bf16.msra.mxu0 %v2297
        %2373 = vmatprep.subr.bf16.mxu0 %v2296
        %2374 = vmatpush2.bf16.msra.mxu0 %v2295
        %2375 = vmatprep.mubr.bf16.mxu0 %v2152
        %2376 = vmatmul.mubr.bf16.gmra.mxu0 %v2151
        %v2377 = vpop.f32.mrf.mxu0
        %v2378 = vadd.f32 0.0, %v2377
        %v2379 = vpop.f32.mrf.mxu0
        %v2380 = vadd.f32 0.0, %v2379
        %v2381 = vpop.f32.mrf.mxu0
        %v2382 = vadd.f32 0.0, %v2381
        %v2383 = vpop.f32.mrf.mxu0
        %v2384 = vadd.f32 0.0, %v2383
        %2385 = vmatprep.mubr.bf16.mxu0 %v2154
        %2386 = vmatmul.mubr.bf16.gmra.mxu0 %v2153
        %v2387 = vpop.f32.mrf.mxu0
        %v2388 = vadd.f32 0.0, %v2387
        %v2389 = vpop.f32.mrf.mxu0
        %v2390 = vadd.f32 0.0, %v2389
        %v2391 = vpop.f32.mrf.mxu0
        %v2392 = vadd.f32 0.0, %v2391
        %v2393 = vpop.f32.mrf.mxu0
        %v2394 = vadd.f32 0.0, %v2393
        %2395 = vmatprep.mubr.bf16.mxu0 %v2156
        %2396 = vmatmul.mubr.bf16.gmra.mxu0 %v2155
        %v2397 = vpop.f32.mrf.mxu0
        %v2398 = vadd.f32 0.0, %v2397
        %v2399 = vpop.f32.mrf.mxu0
        %v2400 = vadd.f32 0.0, %v2399
        %v2401 = vpop.f32.mrf.mxu0
        %v2402 = vadd.f32 0.0, %v2401
        %v2403 = vpop.f32.mrf.mxu0
        %v2404 = vadd.f32 0.0, %v2403
        %2405 = vmatprep.mubr.bf16.mxu0 %v2158
        %2406 = vmatmul.mubr.bf16.gmra.mxu0 %v2157
        %v2407 = vpop.f32.mrf.mxu0
        %v2408 = vadd.f32 0.0, %v2407
        %v2409 = vpop.f32.mrf.mxu0
        %v2410 = vadd.f32 0.0, %v2409
        %v2411 = vpop.f32.mrf.mxu0
        %v2412 = vadd.f32 0.0, %v2411
        %v2413 = vpop.f32.mrf.mxu0
        %v2414 = vadd.f32 0.0, %v2413
        %2415 = vmatprep.mubr.bf16.mxu0 %v2160
        %2416 = vmatmul.mubr.bf16.gmra.mxu0 %v2159
        %v2417 = vpop.f32.mrf.mxu0
        %v2418 = vadd.f32 0.0, %v2417
        %v2419 = vpop.f32.mrf.mxu0
        %v2420 = vadd.f32 0.0, %v2419
        %v2421 = vpop.f32.mrf.mxu0
        %v2422 = vadd.f32 0.0, %v2421
        %v2423 = vpop.f32.mrf.mxu0
        %v2424 = vadd.f32 0.0, %v2423
        %2425 = vmatprep.mubr.bf16.mxu0 %v2162
        %2426 = vmatmul.mubr.bf16.gmra.mxu0 %v2161
        %v2427 = vpop.f32.mrf.mxu0
        %v2428 = vadd.f32 0.0, %v2427
        %v2429 = vpop.f32.mrf.mxu0
        %v2430 = vadd.f32 0.0, %v2429
        %v2431 = vpop.f32.mrf.mxu0
        %v2432 = vadd.f32 0.0, %v2431
        %v2433 = vpop.f32.mrf.mxu0
        %v2434 = vadd.f32 0.0, %v2433
        %2435 = vmatprep.mubr.bf16.mxu0 %v2164
        %2436 = vmatmul.mubr.bf16.gmra.mxu0 %v2163
        %v2437 = vpop.f32.mrf.mxu0
        %v2438 = vadd.f32 0.0, %v2437
        %v2439 = vpop.f32.mrf.mxu0
        %v2440 = vadd.f32 0.0, %v2439
        %v2441 = vpop.f32.mrf.mxu0
        %v2442 = vadd.f32 0.0, %v2441
        %v2443 = vpop.f32.mrf.mxu0
        %v2444 = vadd.f32 0.0, %v2443
        %2445 = vmatprep.mubr.bf16.mxu0 %v2166
        %2446 = vmatmul.mubr.bf16.gmra.mxu0 %v2165
        %v2447 = vpop.f32.mrf.mxu0
        %v2448 = vadd.f32 0.0, %v2447
        %v2449 = vpop.f32.mrf.mxu0
        %v2450 = vadd.f32 0.0, %v2449
        %v2451 = vpop.f32.mrf.mxu0
        %v2452 = vadd.f32 0.0, %v2451
        %v2453 = vpop.f32.mrf.mxu0
        %v2454 = vadd.f32 0.0, %v2453
        %2455 = vdwg.mxu0
        %v2472 = vunpack.c.l.b16 %v2006
        %v2473 = vunpack.c.h.b16 %v2006
        %v2474 = vunpack.c.l.b16 %v2007
        %v2475 = vunpack.c.h.b16 %v2007
        %v2476 = vunpack.c.l.b16 %v2008
        %v2477 = vunpack.c.h.b16 %v2008
        %v2478 = vunpack.c.l.b16 %v2009
        %v2479 = vunpack.c.h.b16 %v2009
        %v2480 = vunpack.c.l.b16 %v2010
        %v2481 = vunpack.c.h.b16 %v2010
        %v2482 = vunpack.c.l.b16 %v2011
        %v2483 = vunpack.c.h.b16 %v2011
        %v2484 = vunpack.c.l.b16 %v2012
        %v2485 = vunpack.c.h.b16 %v2012
        %v2486 = vunpack.c.l.b16 %v2013
        %v2487 = vunpack.c.h.b16 %v2013
        %v2488 = vunpack.c.l.b16 %v2014
        %v2489 = vunpack.c.h.b16 %v2014
        %v2490 = vunpack.c.l.b16 %v2015
        %v2491 = vunpack.c.h.b16 %v2015
        %v2492 = vunpack.c.l.b16 %v2016
        %v2493 = vunpack.c.h.b16 %v2016
        %v2494 = vunpack.c.l.b16 %v2017
        %v2495 = vunpack.c.h.b16 %v2017
        %v2496 = vunpack.c.l.b16 %v2018
        %v2497 = vunpack.c.h.b16 %v2018
        %v2498 = vunpack.c.l.b16 %v2019
        %v2499 = vunpack.c.h.b16 %v2019
        %v2500 = vunpack.c.l.b16 %v2020
        %v2501 = vunpack.c.h.b16 %v2020
        %v2502 = vunpack.c.l.b16 %v2021
        %v2503 = vunpack.c.h.b16 %v2021
        %v2504 = vpack.c.b16 %v2474, %v2472
        %v2505 = vpack.c.b16 %v2475, %v2473
        %v2506 = vpack.c.b16 %v2478, %v2476
        %v2507 = vpack.c.b16 %v2479, %v2477
        %v2508 = vpack.c.b16 %v2482, %v2480
        %v2509 = vpack.c.b16 %v2483, %v2481
        %v2510 = vpack.c.b16 %v2486, %v2484
        %v2511 = vpack.c.b16 %v2487, %v2485
        %v2512 = vpack.c.b16 %v2490, %v2488
        %v2513 = vpack.c.b16 %v2491, %v2489
        %v2514 = vpack.c.b16 %v2494, %v2492
        %v2515 = vpack.c.b16 %v2495, %v2493
        %v2516 = vpack.c.b16 %v2498, %v2496
        %v2517 = vpack.c.b16 %v2499, %v2497
        %v2518 = vpack.c.b16 %v2502, %v2500
        %v2519 = vpack.c.b16 %v2503, %v2501
        %v2568 = vunpack.c.l.b16 %v2022
        %v2569 = vunpack.c.h.b16 %v2022
        %v2570 = vunpack.c.l.b16 %v2023
        %v2571 = vunpack.c.h.b16 %v2023
        %v2572 = vunpack.c.l.b16 %v2024
        %v2573 = vunpack.c.h.b16 %v2024
        %v2574 = vunpack.c.l.b16 %v2025
        %v2575 = vunpack.c.h.b16 %v2025
        %v2576 = vunpack.c.l.b16 %v2026
        %v2577 = vunpack.c.h.b16 %v2026
        %v2578 = vunpack.c.l.b16 %v2027
        %v2579 = vunpack.c.h.b16 %v2027
        %v2580 = vunpack.c.l.b16 %v2028
        %v2581 = vunpack.c.h.b16 %v2028
        %v2582 = vunpack.c.l.b16 %v2029
        %v2583 = vunpack.c.h.b16 %v2029
        %v2584 = vunpack.c.l.b16 %v2030
        %v2585 = vunpack.c.h.b16 %v2030
        %v2586 = vunpack.c.l.b16 %v2031
        %v2587 = vunpack.c.h.b16 %v2031
        %v2588 = vunpack.c.l.b16 %v2032
        %v2589 = vunpack.c.h.b16 %v2032
        %v2590 = vunpack.c.l.b16 %v2033
        %v2591 = vunpack.c.h.b16 %v2033
        %v2592 = vunpack.c.l.b16 %v2034
        %v2593 = vunpack.c.h.b16 %v2034
        %v2594 = vunpack.c.l.b16 %v2035
        %v2595 = vunpack.c.h.b16 %v2035
        %v2596 = vunpack.c.l.b16 %v2036
        %v2597 = vunpack.c.h.b16 %v2036
        %v2598 = vunpack.c.l.b16 %v2037
        %v2599 = vunpack.c.h.b16 %v2037
        %v2600 = vunpack.c.l.b16 %v2038
        %v2601 = vunpack.c.h.b16 %v2038
        %v2602 = vunpack.c.l.b16 %v2039
        %v2603 = vunpack.c.h.b16 %v2039
        %v2604 = vunpack.c.l.b16 %v2040
        %v2605 = vunpack.c.h.b16 %v2040
        %v2606 = vunpack.c.l.b16 %v2041
        %v2607 = vunpack.c.h.b16 %v2041
        %v2608 = vunpack.c.l.b16 %v2042
        %v2609 = vunpack.c.h.b16 %v2042
        %v2610 = vunpack.c.l.b16 %v2043
        %v2611 = vunpack.c.h.b16 %v2043
        %v2612 = vunpack.c.l.b16 %v2044
        %v2613 = vunpack.c.h.b16 %v2044
        %v2614 = vunpack.c.l.b16 %v2045
        %v2615 = vunpack.c.h.b16 %v2045
        %v2616 = vunpack.c.l.b16 %v2046
        %v2617 = vunpack.c.h.b16 %v2046
        %v2618 = vunpack.c.l.b16 %v2047
        %v2619 = vunpack.c.h.b16 %v2047
        %v2620 = vunpack.c.l.b16 %v2048
        %v2621 = vunpack.c.h.b16 %v2048
        %v2622 = vunpack.c.l.b16 %v2049
        %v2623 = vunpack.c.h.b16 %v2049
        %v2624 = vunpack.c.l.b16 %v2050
        %v2625 = vunpack.c.h.b16 %v2050
        %v2626 = vunpack.c.l.b16 %v2051
        %v2627 = vunpack.c.h.b16 %v2051
        %v2628 = vunpack.c.l.b16 %v2052
        %v2629 = vunpack.c.h.b16 %v2052
        %v2630 = vunpack.c.l.b16 %v2053
        %v2631 = vunpack.c.h.b16 %v2053
        %v2632 = vpack.c.b16 %v2570, %v2568
        %v2633 = vpack.c.b16 %v2571, %v2569
        %v2634 = vpack.c.b16 %v2574, %v2572
        %v2635 = vpack.c.b16 %v2575, %v2573
        %v2636 = vpack.c.b16 %v2578, %v2576
        %v2637 = vpack.c.b16 %v2579, %v2577
        %v2638 = vpack.c.b16 %v2582, %v2580
        %v2639 = vpack.c.b16 %v2583, %v2581
        %v2640 = vpack.c.b16 %v2586, %v2584
        %v2641 = vpack.c.b16 %v2587, %v2585
        %v2642 = vpack.c.b16 %v2590, %v2588
        %v2643 = vpack.c.b16 %v2591, %v2589
        %v2644 = vpack.c.b16 %v2594, %v2592
        %v2645 = vpack.c.b16 %v2595, %v2593
        %v2646 = vpack.c.b16 %v2598, %v2596
        %v2647 = vpack.c.b16 %v2599, %v2597
        %v2648 = vpack.c.b16 %v2602, %v2600
        %v2649 = vpack.c.b16 %v2603, %v2601
        %v2650 = vpack.c.b16 %v2606, %v2604
        %v2651 = vpack.c.b16 %v2607, %v2605
        %v2652 = vpack.c.b16 %v2610, %v2608
        %v2653 = vpack.c.b16 %v2611, %v2609
        %v2654 = vpack.c.b16 %v2614, %v2612
        %v2655 = vpack.c.b16 %v2615, %v2613
        %v2656 = vpack.c.b16 %v2618, %v2616
        %v2657 = vpack.c.b16 %v2619, %v2617
        %v2658 = vpack.c.b16 %v2622, %v2620
        %v2659 = vpack.c.b16 %v2623, %v2621
        %v2660 = vpack.c.b16 %v2626, %v2624
        %v2661 = vpack.c.b16 %v2627, %v2625
        %v2662 = vpack.c.b16 %v2630, %v2628
        %v2663 = vpack.c.b16 %v2631, %v2629
        %2696 = vmatprep.subr.bf16.mxu0 %v2647
        %2697 = vmatpush1.bf16.msra.mxu0 %v2646
        %2698 = vmatprep.subr.bf16.mxu0 %v2645
        %2699 = vmatpush1.bf16.msra.mxu0 %v2644
        %2700 = vmatprep.subr.bf16.mxu0 %v2643
        %2701 = vmatpush1.bf16.msra.mxu0 %v2642
        %2702 = vmatprep.subr.bf16.mxu0 %v2641
        %2703 = vmatpush1.bf16.msra.mxu0 %v2640
        %2704 = vmatprep.subr.bf16.mxu0 %v2639
        %2705 = vmatpush1.bf16.msra.mxu0 %v2638
        %2706 = vmatprep.subr.bf16.mxu0 %v2637
        %2707 = vmatpush1.bf16.msra.mxu0 %v2636
        %2708 = vmatprep.subr.bf16.mxu0 %v2635
        %2709 = vmatpush1.bf16.msra.mxu0 %v2634
        %2710 = vmatprep.subr.bf16.mxu0 %v2633
        %2711 = vmatpush1.bf16.msra.mxu0 %v2632
        %2712 = vmatprep.subr.bf16.mxu0 %v2663
        %2713 = vmatpush2.bf16.msra.mxu0 %v2662
        %2714 = vmatprep.subr.bf16.mxu0 %v2661
        %2715 = vmatpush2.bf16.msra.mxu0 %v2660
        %2716 = vmatprep.subr.bf16.mxu0 %v2659
        %2717 = vmatpush2.bf16.msra.mxu0 %v2658
        %2718 = vmatprep.subr.bf16.mxu0 %v2657
        %2719 = vmatpush2.bf16.msra.mxu0 %v2656
        %2720 = vmatprep.subr.bf16.mxu0 %v2655
        %2721 = vmatpush2.bf16.msra.mxu0 %v2654
        %2722 = vmatprep.subr.bf16.mxu0 %v2653
        %2723 = vmatpush2.bf16.msra.mxu0 %v2652
        %2724 = vmatprep.subr.bf16.mxu0 %v2651
        %2725 = vmatpush2.bf16.msra.mxu0 %v2650
        %2726 = vmatprep.subr.bf16.mxu0 %v2649
        %2727 = vmatpush2.bf16.msra.mxu0 %v2648
        %2728 = vmatprep.mubr.bf16.mxu0 %v2505
        %2729 = vmatmul.mubr.bf16.gmra.mxu0 %v2504
        %v2730 = vpop.f32.mrf.mxu0
        %v2731 = vadd.f32 %v2378, %v2730
        %v2732 = vpop.f32.mrf.mxu0
        %v2733 = vadd.f32 %v2380, %v2732
        %v2734 = vpop.f32.mrf.mxu0
        %v2735 = vadd.f32 %v2382, %v2734
        %v2736 = vpop.f32.mrf.mxu0
        %v2737 = vadd.f32 %v2384, %v2736
        %2738 = vmatprep.mubr.bf16.mxu0 %v2507
        %2739 = vmatmul.mubr.bf16.gmra.mxu0 %v2506
        %v2740 = vpop.f32.mrf.mxu0
        %v2741 = vadd.f32 %v2388, %v2740
        %v2742 = vpop.f32.mrf.mxu0
        %v2743 = vadd.f32 %v2390, %v2742
        %v2744 = vpop.f32.mrf.mxu0
        %v2745 = vadd.f32 %v2392, %v2744
        %v2746 = vpop.f32.mrf.mxu0
        %v2747 = vadd.f32 %v2394, %v2746
        %2748 = vmatprep.mubr.bf16.mxu0 %v2509
        %2749 = vmatmul.mubr.bf16.gmra.mxu0 %v2508
        %v2750 = vpop.f32.mrf.mxu0
        %v2751 = vadd.f32 %v2398, %v2750
        %v2752 = vpop.f32.mrf.mxu0
        %v2753 = vadd.f32 %v2400, %v2752
        %v2754 = vpop.f32.mrf.mxu0
        %v2755 = vadd.f32 %v2402, %v2754
        %v2756 = vpop.f32.mrf.mxu0
        %v2757 = vadd.f32 %v2404, %v2756
        %2758 = vmatprep.mubr.bf16.mxu0 %v2511
        %2759 = vmatmul.mubr.bf16.gmra.mxu0 %v2510
        %v2760 = vpop.f32.mrf.mxu0
        %v2761 = vadd.f32 %v2408, %v2760
        %v2762 = vpop.f32.mrf.mxu0
        %v2763 = vadd.f32 %v2410, %v2762
        %v2764 = vpop.f32.mrf.mxu0
        %v2765 = vadd.f32 %v2412, %v2764
        %v2766 = vpop.f32.mrf.mxu0
        %v2767 = vadd.f32 %v2414, %v2766
        %2768 = vmatprep.mubr.bf16.mxu0 %v2513
        %2769 = vmatmul.mubr.bf16.gmra.mxu0 %v2512
        %v2770 = vpop.f32.mrf.mxu0
        %v2771 = vadd.f32 %v2418, %v2770
        %v2772 = vpop.f32.mrf.mxu0
        %v2773 = vadd.f32 %v2420, %v2772
        %v2774 = vpop.f32.mrf.mxu0
        %v2775 = vadd.f32 %v2422, %v2774
        %v2776 = vpop.f32.mrf.mxu0
        %v2777 = vadd.f32 %v2424, %v2776
        %2778 = vmatprep.mubr.bf16.mxu0 %v2515
        %2779 = vmatmul.mubr.bf16.gmra.mxu0 %v2514
        %v2780 = vpop.f32.mrf.mxu0
        %v2781 = vadd.f32 %v2428, %v2780
        %v2782 = vpop.f32.mrf.mxu0
        %v2783 = vadd.f32 %v2430, %v2782
        %v2784 = vpop.f32.mrf.mxu0
        %v2785 = vadd.f32 %v2432, %v2784
        %v2786 = vpop.f32.mrf.mxu0
        %v2787 = vadd.f32 %v2434, %v2786
        %2788 = vmatprep.mubr.bf16.mxu0 %v2517
        %2789 = vmatmul.mubr.bf16.gmra.mxu0 %v2516
        %v2790 = vpop.f32.mrf.mxu0
        %v2791 = vadd.f32 %v2438, %v2790
        %v2792 = vpop.f32.mrf.mxu0
        %v2793 = vadd.f32 %v2440, %v2792
        %v2794 = vpop.f32.mrf.mxu0
        %v2795 = vadd.f32 %v2442, %v2794
        %v2796 = vpop.f32.mrf.mxu0
        %v2797 = vadd.f32 %v2444, %v2796
        %2798 = vmatprep.mubr.bf16.mxu0 %v2519
        %2799 = vmatmul.mubr.bf16.gmra.mxu0 %v2518
        %v2800 = vpop.f32.mrf.mxu0
        %v2801 = vadd.f32 %v2448, %v2800
        %v2802 = vpop.f32.mrf.mxu0
        %v2803 = vadd.f32 %v2450, %v2802
        %v2804 = vpop.f32.mrf.mxu0
        %v2805 = vadd.f32 %v2452, %v2804
        %v2806 = vpop.f32.mrf.mxu0
        %v2807 = vadd.f32 %v2454, %v2806
        %2808 = vdwg.mxu0
        %s2809 = scalar_lea.vmem [#allocation4], 32
        %v2810 = vld [vmem:[%s2809] sm:$0xff]
        %v2811 = vld [vmem:[%s2809 + $0x8] sm:$0xff]
        %v2812 = vld [vmem:[%s2809 + $0x10] sm:$0xff]
        %v2813 = vld [vmem:[%s2809 + $0x18] sm:$0xff]
        %v2814 = vld [vmem:[%s2809 + $0x20] sm:$0xff]
        %v2815 = vld [vmem:[%s2809 + $0x28] sm:$0xff]
        %v2816 = vld [vmem:[%s2809 + $0x30] sm:$0xff]
        %v2817 = vld [vmem:[%s2809 + $0x38] sm:$0xff]
        %v2818 = vld [vmem:[%s2809 + $0x40] sm:$0xff]
        %v2819 = vld [vmem:[%s2809 + $0x48] sm:$0xff]
        %v2820 = vld [vmem:[%s2809 + $0x50] sm:$0xff]
        %v2821 = vld [vmem:[%s2809 + $0x58] sm:$0xff]
        %v2822 = vld [vmem:[%s2809 + $0x60] sm:$0xff]
        %v2823 = vld [vmem:[%s2809 + $0x68] sm:$0xff]
        %v2824 = vld [vmem:[%s2809 + $0x70] sm:$0xff]
        %v2825 = vld [vmem:[%s2809 + $0x78] sm:$0xff]
        %s2826 = scalar_lea.vmem [#allocation12], 512
        %v2827 = vld [vmem:[%s2826] sm:$0xff]
        %v2828 = vld [vmem:[%s2826 + $0x8] sm:$0xff]
        %v2829 = vld [vmem:[%s2826 + $0x10] sm:$0xff]
        %v2830 = vld [vmem:[%s2826 + $0x18] sm:$0xff]
        %v2831 = vld [vmem:[%s2826 + $0x20] sm:$0xff]
        %v2832 = vld [vmem:[%s2826 + $0x28] sm:$0xff]
        %v2833 = vld [vmem:[%s2826 + $0x30] sm:$0xff]
        %v2834 = vld [vmem:[%s2826 + $0x38] sm:$0xff]
        %v2835 = vld [vmem:[%s2826 + $0x40] sm:$0xff]
        %v2836 = vld [vmem:[%s2826 + $0x48] sm:$0xff]
        %v2837 = vld [vmem:[%s2826 + $0x50] sm:$0xff]
        %v2838 = vld [vmem:[%s2826 + $0x58] sm:$0xff]
        %v2839 = vld [vmem:[%s2826 + $0x60] sm:$0xff]
        %v2840 = vld [vmem:[%s2826 + $0x68] sm:$0xff]
        %v2841 = vld [vmem:[%s2826 + $0x70] sm:$0xff]
        %v2842 = vld [vmem:[%s2826 + $0x78] sm:$0xff]
        %v2843 = vld [vmem:[%s2826 + $0x80] sm:$0xff]
        %v2844 = vld [vmem:[%s2826 + $0x88] sm:$0xff]
        %v2845 = vld [vmem:[%s2826 + $0x90] sm:$0xff]
        %v2846 = vld [vmem:[%s2826 + $0x98] sm:$0xff]
        %v2847 = vld [vmem:[%s2826 + $0xa0] sm:$0xff]
        %v2848 = vld [vmem:[%s2826 + $0xa8] sm:$0xff]
        %v2849 = vld [vmem:[%s2826 + $0xb0] sm:$0xff]
        %v2850 = vld [vmem:[%s2826 + $0xb8] sm:$0xff]
        %v2851 = vld [vmem:[%s2826 + $0xc0] sm:$0xff]
        %v2852 = vld [vmem:[%s2826 + $0xc8] sm:$0xff]
        %v2853 = vld [vmem:[%s2826 + $0xd0] sm:$0xff]
        %v2854 = vld [vmem:[%s2826 + $0xd8] sm:$0xff]
        %v2855 = vld [vmem:[%s2826 + $0xe0] sm:$0xff]
        %v2856 = vld [vmem:[%s2826 + $0xe8] sm:$0xff]
        %v2857 = vld [vmem:[%s2826 + $0xf0] sm:$0xff]
        %v2858 = vld [vmem:[%s2826 + $0xf8] sm:$0xff]
        %v2875 = vunpack.c.l.b16 %v2810
        %v2876 = vunpack.c.h.b16 %v2810
        %v2877 = vunpack.c.l.b16 %v2811
        %v2878 = vunpack.c.h.b16 %v2811
        %v2879 = vunpack.c.l.b16 %v2812
        %v2880 = vunpack.c.h.b16 %v2812
        %v2881 = vunpack.c.l.b16 %v2813
        %v2882 = vunpack.c.h.b16 %v2813
        %v2883 = vunpack.c.l.b16 %v2814
        %v2884 = vunpack.c.h.b16 %v2814
        %v2885 = vunpack.c.l.b16 %v2815
        %v2886 = vunpack.c.h.b16 %v2815
        %v2887 = vunpack.c.l.b16 %v2816
        %v2888 = vunpack.c.h.b16 %v2816
        %v2889 = vunpack.c.l.b16 %v2817
        %v2890 = vunpack.c.h.b16 %v2817
        %v2891 = vunpack.c.l.b16 %v2818
        %v2892 = vunpack.c.h.b16 %v2818
        %v2893 = vunpack.c.l.b16 %v2819
        %v2894 = vunpack.c.h.b16 %v2819
        %v2895 = vunpack.c.l.b16 %v2820
        %v2896 = vunpack.c.h.b16 %v2820
        %v2897 = vunpack.c.l.b16 %v2821
        %v2898 = vunpack.c.h.b16 %v2821
        %v2899 = vunpack.c.l.b16 %v2822
        %v2900 = vunpack.c.h.b16 %v2822
        %v2901 = vunpack.c.l.b16 %v2823
        %v2902 = vunpack.c.h.b16 %v2823
        %v2903 = vunpack.c.l.b16 %v2824
        %v2904 = vunpack.c.h.b16 %v2824
        %v2905 = vunpack.c.l.b16 %v2825
        %v2906 = vunpack.c.h.b16 %v2825
        %v2907 = vpack.c.b16 %v2877, %v2875
        %v2908 = vpack.c.b16 %v2878, %v2876
        %v2909 = vpack.c.b16 %v2881, %v2879
        %v2910 = vpack.c.b16 %v2882, %v2880
        %v2911 = vpack.c.b16 %v2885, %v2883
        %v2912 = vpack.c.b16 %v2886, %v2884
        %v2913 = vpack.c.b16 %v2889, %v2887
        %v2914 = vpack.c.b16 %v2890, %v2888
        %v2915 = vpack.c.b16 %v2893, %v2891
        %v2916 = vpack.c.b16 %v2894, %v2892
        %v2917 = vpack.c.b16 %v2897, %v2895
        %v2918 = vpack.c.b16 %v2898, %v2896
        %v2919 = vpack.c.b16 %v2901, %v2899
        %v2920 = vpack.c.b16 %v2902, %v2900
        %v2921 = vpack.c.b16 %v2905, %v2903
        %v2922 = vpack.c.b16 %v2906, %v2904
        %v2971 = vunpack.c.l.b16 %v2827
        %v2972 = vunpack.c.h.b16 %v2827
        %v2973 = vunpack.c.l.b16 %v2828
        %v2974 = vunpack.c.h.b16 %v2828
        %v2975 = vunpack.c.l.b16 %v2829
        %v2976 = vunpack.c.h.b16 %v2829
        %v2977 = vunpack.c.l.b16 %v2830
        %v2978 = vunpack.c.h.b16 %v2830
        %v2979 = vunpack.c.l.b16 %v2831
        %v2980 = vunpack.c.h.b16 %v2831
        %v2981 = vunpack.c.l.b16 %v2832
        %v2982 = vunpack.c.h.b16 %v2832
        %v2983 = vunpack.c.l.b16 %v2833
        %v2984 = vunpack.c.h.b16 %v2833
        %v2985 = vunpack.c.l.b16 %v2834
        %v2986 = vunpack.c.h.b16 %v2834
        %v2987 = vunpack.c.l.b16 %v2835
        %v2988 = vunpack.c.h.b16 %v2835
        %v2989 = vunpack.c.l.b16 %v2836
        %v2990 = vunpack.c.h.b16 %v2836
        %v2991 = vunpack.c.l.b16 %v2837
        %v2992 = vunpack.c.h.b16 %v2837
        %v2993 = vunpack.c.l.b16 %v2838
        %v2994 = vunpack.c.h.b16 %v2838
        %v2995 = vunpack.c.l.b16 %v2839
        %v2996 = vunpack.c.h.b16 %v2839
        %v2997 = vunpack.c.l.b16 %v2840
        %v2998 = vunpack.c.h.b16 %v2840
        %v2999 = vunpack.c.l.b16 %v2841
        %v3000 = vunpack.c.h.b16 %v2841
        %v3001 = vunpack.c.l.b16 %v2842
        %v3002 = vunpack.c.h.b16 %v2842
        %v3003 = vunpack.c.l.b16 %v2843
        %v3004 = vunpack.c.h.b16 %v2843
        %v3005 = vunpack.c.l.b16 %v2844
        %v3006 = vunpack.c.h.b16 %v2844
        %v3007 = vunpack.c.l.b16 %v2845
        %v3008 = vunpack.c.h.b16 %v2845
        %v3009 = vunpack.c.l.b16 %v2846
        %v3010 = vunpack.c.h.b16 %v2846
        %v3011 = vunpack.c.l.b16 %v2847
        %v3012 = vunpack.c.h.b16 %v2847
        %v3013 = vunpack.c.l.b16 %v2848
        %v3014 = vunpack.c.h.b16 %v2848
        %v3015 = vunpack.c.l.b16 %v2849
        %v3016 = vunpack.c.h.b16 %v2849
        %v3017 = vunpack.c.l.b16 %v2850
        %v3018 = vunpack.c.h.b16 %v2850
        %v3019 = vunpack.c.l.b16 %v2851
        %v3020 = vunpack.c.h.b16 %v2851
        %v3021 = vunpack.c.l.b16 %v2852
        %v3022 = vunpack.c.h.b16 %v2852
        %v3023 = vunpack.c.l.b16 %v2853
        %v3024 = vunpack.c.h.b16 %v2853
        %v3025 = vunpack.c.l.b16 %v2854
        %v3026 = vunpack.c.h.b16 %v2854
        %v3027 = vunpack.c.l.b16 %v2855
        %v3028 = vunpack.c.h.b16 %v2855
        %v3029 = vunpack.c.l.b16 %v2856
        %v3030 = vunpack.c.h.b16 %v2856
        %v3031 = vunpack.c.l.b16 %v2857
        %v3032 = vunpack.c.h.b16 %v2857
        %v3033 = vunpack.c.l.b16 %v2858
        %v3034 = vunpack.c.h.b16 %v2858
        %v3035 = vpack.c.b16 %v2973, %v2971
        %v3036 = vpack.c.b16 %v2974, %v2972
        %v3037 = vpack.c.b16 %v2977, %v2975
        %v3038 = vpack.c.b16 %v2978, %v2976
        %v3039 = vpack.c.b16 %v2981, %v2979
        %v3040 = vpack.c.b16 %v2982, %v2980
        %v3041 = vpack.c.b16 %v2985, %v2983
        %v3042 = vpack.c.b16 %v2986, %v2984
        %v3043 = vpack.c.b16 %v2989, %v2987
        %v3044 = vpack.c.b16 %v2990, %v2988
        %v3045 = vpack.c.b16 %v2993, %v2991
        %v3046 = vpack.c.b16 %v2994, %v2992
        %v3047 = vpack.c.b16 %v2997, %v2995
        %v3048 = vpack.c.b16 %v2998, %v2996
        %v3049 = vpack.c.b16 %v3001, %v2999
        %v3050 = vpack.c.b16 %v3002, %v3000
        %v3051 = vpack.c.b16 %v3005, %v3003
        %v3052 = vpack.c.b16 %v3006, %v3004
        %v3053 = vpack.c.b16 %v3009, %v3007
        %v3054 = vpack.c.b16 %v3010, %v3008
        %v3055 = vpack.c.b16 %v3013, %v3011
        %v3056 = vpack.c.b16 %v3014, %v3012
        %v3057 = vpack.c.b16 %v3017, %v3015
        %v3058 = vpack.c.b16 %v3018, %v3016
        %v3059 = vpack.c.b16 %v3021, %v3019
        %v3060 = vpack.c.b16 %v3022, %v3020
        %v3061 = vpack.c.b16 %v3025, %v3023
        %v3062 = vpack.c.b16 %v3026, %v3024
        %v3063 = vpack.c.b16 %v3029, %v3027
        %v3064 = vpack.c.b16 %v3030, %v3028
        %v3065 = vpack.c.b16 %v3033, %v3031
        %v3066 = vpack.c.b16 %v3034, %v3032
        %3099 = vmatprep.subr.bf16.mxu0 %v3050
        %3100 = vmatpush1.bf16.msra.mxu0 %v3049
        %3101 = vmatprep.subr.bf16.mxu0 %v3048
        %3102 = vmatpush1.bf16.msra.mxu0 %v3047
        %3103 = vmatprep.subr.bf16.mxu0 %v3046
        %3104 = vmatpush1.bf16.msra.mxu0 %v3045
        %3105 = vmatprep.subr.bf16.mxu0 %v3044
        %3106 = vmatpush1.bf16.msra.mxu0 %v3043
        %3107 = vmatprep.subr.bf16.mxu0 %v3042
        %3108 = vmatpush1.bf16.msra.mxu0 %v3041
        %3109 = vmatprep.subr.bf16.mxu0 %v3040
        %3110 = vmatpush1.bf16.msra.mxu0 %v3039
        %3111 = vmatprep.subr.bf16.mxu0 %v3038
        %3112 = vmatpush1.bf16.msra.mxu0 %v3037
        %3113 = vmatprep.subr.bf16.mxu0 %v3036
        %3114 = vmatpush1.bf16.msra.mxu0 %v3035
        %3115 = vmatprep.subr.bf16.mxu0 %v3066
        %3116 = vmatpush2.bf16.msra.mxu0 %v3065
        %3117 = vmatprep.subr.bf16.mxu0 %v3064
        %3118 = vmatpush2.bf16.msra.mxu0 %v3063
        %3119 = vmatprep.subr.bf16.mxu0 %v3062
        %3120 = vmatpush2.bf16.msra.mxu0 %v3061
        %3121 = vmatprep.subr.bf16.mxu0 %v3060
        %3122 = vmatpush2.bf16.msra.mxu0 %v3059
        %3123 = vmatprep.subr.bf16.mxu0 %v3058
        %3124 = vmatpush2.bf16.msra.mxu0 %v3057
        %3125 = vmatprep.subr.bf16.mxu0 %v3056
        %3126 = vmatpush2.bf16.msra.mxu0 %v3055
        %3127 = vmatprep.subr.bf16.mxu0 %v3054
        %3128 = vmatpush2.bf16.msra.mxu0 %v3053
        %3129 = vmatprep.subr.bf16.mxu0 %v3052
        %3130 = vmatpush2.bf16.msra.mxu0 %v3051
        %3131 = vmatprep.mubr.bf16.mxu0 %v2908
        %3132 = vmatmul.mubr.bf16.gmra.mxu0 %v2907
        %v3133 = vpop.f32.mrf.mxu0
        %v3134 = vadd.f32 0.0, %v3133
        %v3135 = vpop.f32.mrf.mxu0
        %v3136 = vadd.f32 0.0, %v3135
        %v3137 = vpop.f32.mrf.mxu0
        %v3138 = vadd.f32 0.0, %v3137
        %v3139 = vpop.f32.mrf.mxu0
        %v3140 = vadd.f32 0.0, %v3139
        %3141 = vmatprep.mubr.bf16.mxu0 %v2910
        %3142 = vmatmul.mubr.bf16.gmra.mxu0 %v2909
        %v3143 = vpop.f32.mrf.mxu0
        %v3144 = vadd.f32 0.0, %v3143
        %v3145 = vpop.f32.mrf.mxu0
        %v3146 = vadd.f32 0.0, %v3145
        %v3147 = vpop.f32.mrf.mxu0
        %v3148 = vadd.f32 0.0, %v3147
        %v3149 = vpop.f32.mrf.mxu0
        %v3150 = vadd.f32 0.0, %v3149
        %3151 = vmatprep.mubr.bf16.mxu0 %v2912
        %3152 = vmatmul.mubr.bf16.gmra.mxu0 %v2911
        %v3153 = vpop.f32.mrf.mxu0
        %v3154 = vadd.f32 0.0, %v3153
        %v3155 = vpop.f32.mrf.mxu0
        %v3156 = vadd.f32 0.0, %v3155
        %v3157 = vpop.f32.mrf.mxu0
        %v3158 = vadd.f32 0.0, %v3157
        %v3159 = vpop.f32.mrf.mxu0
        %v3160 = vadd.f32 0.0, %v3159
        %3161 = vmatprep.mubr.bf16.mxu0 %v2914
        %3162 = vmatmul.mubr.bf16.gmra.mxu0 %v2913
        %v3163 = vpop.f32.mrf.mxu0
        %v3164 = vadd.f32 0.0, %v3163
        %v3165 = vpop.f32.mrf.mxu0
        %v3166 = vadd.f32 0.0, %v3165
        %v3167 = vpop.f32.mrf.mxu0
        %v3168 = vadd.f32 0.0, %v3167
        %v3169 = vpop.f32.mrf.mxu0
        %v3170 = vadd.f32 0.0, %v3169
        %3171 = vmatprep.mubr.bf16.mxu0 %v2916
        %3172 = vmatmul.mubr.bf16.gmra.mxu0 %v2915
        %v3173 = vpop.f32.mrf.mxu0
        %v3174 = vadd.f32 0.0, %v3173
        %v3175 = vpop.f32.mrf.mxu0
        %v3176 = vadd.f32 0.0, %v3175
        %v3177 = vpop.f32.mrf.mxu0
        %v3178 = vadd.f32 0.0, %v3177
        %v3179 = vpop.f32.mrf.mxu0
        %v3180 = vadd.f32 0.0, %v3179
        %3181 = vmatprep.mubr.bf16.mxu0 %v2918
        %3182 = vmatmul.mubr.bf16.gmra.mxu0 %v2917
        %v3183 = vpop.f32.mrf.mxu0
        %v3184 = vadd.f32 0.0, %v3183
        %v3185 = vpop.f32.mrf.mxu0
        %v3186 = vadd.f32 0.0, %v3185
        %v3187 = vpop.f32.mrf.mxu0
        %v3188 = vadd.f32 0.0, %v3187
        %v3189 = vpop.f32.mrf.mxu0
        %v3190 = vadd.f32 0.0, %v3189
        %3191 = vmatprep.mubr.bf16.mxu0 %v2920
        %3192 = vmatmul.mubr.bf16.gmra.mxu0 %v2919
        %v3193 = vpop.f32.mrf.mxu0
        %v3194 = vadd.f32 0.0, %v3193
        %v3195 = vpop.f32.mrf.mxu0
        %v3196 = vadd.f32 0.0, %v3195
        %v3197 = vpop.f32.mrf.mxu0
        %v3198 = vadd.f32 0.0, %v3197
        %v3199 = vpop.f32.mrf.mxu0
        %v3200 = vadd.f32 0.0, %v3199
        %3201 = vmatprep.mubr.bf16.mxu0 %v2922
        %3202 = vmatmul.mubr.bf16.gmra.mxu0 %v2921
        %v3203 = vpop.f32.mrf.mxu0
        %v3204 = vadd.f32 0.0, %v3203
        %v3205 = vpop.f32.mrf.mxu0
        %v3206 = vadd.f32 0.0, %v3205
        %v3207 = vpop.f32.mrf.mxu0
        %v3208 = vadd.f32 0.0, %v3207
        %v3209 = vpop.f32.mrf.mxu0
        %v3210 = vadd.f32 0.0, %v3209
        %3211 = vdwg.mxu0
        %v3212 = vadd.f32 %v2731, %v3134
        %v3213 = vadd.f32 %v2733, %v3136
        %v3214 = vadd.f32 %v2735, %v3138
        %v3215 = vadd.f32 %v2737, %v3140
        %v3216 = vadd.f32 %v2741, %v3144
        %v3217 = vadd.f32 %v2743, %v3146
        %v3218 = vadd.f32 %v2745, %v3148
        %v3219 = vadd.f32 %v2747, %v3150
        %v3220 = vadd.f32 %v2751, %v3154
        %v3221 = vadd.f32 %v2753, %v3156
        %v3222 = vadd.f32 %v2755, %v3158
        %v3223 = vadd.f32 %v2757, %v3160
        %v3224 = vadd.f32 %v2761, %v3164
        %v3225 = vadd.f32 %v2763, %v3166
        %v3226 = vadd.f32 %v2765, %v3168
        %v3227 = vadd.f32 %v2767, %v3170
        %v3228 = vadd.f32 %v2771, %v3174
        %v3229 = vadd.f32 %v2773, %v3176
        %v3230 = vadd.f32 %v2775, %v3178
        %v3231 = vadd.f32 %v2777, %v3180
        %v3232 = vadd.f32 %v2781, %v3184
        %v3233 = vadd.f32 %v2783, %v3186
        %v3234 = vadd.f32 %v2785, %v3188
        %v3235 = vadd.f32 %v2787, %v3190
        %v3236 = vadd.f32 %v2791, %v3194
        %v3237 = vadd.f32 %v2793, %v3196
        %v3238 = vadd.f32 %v2795, %v3198
        %v3239 = vadd.f32 %v2797, %v3200
        %v3240 = vadd.f32 %v2801, %v3204
        %v3241 = vadd.f32 %v2803, %v3206
        %v3242 = vadd.f32 %v2805, %v3208
        %v3243 = vadd.f32 %v2807, %v3210
        %v3244 = vld [vmem:[%s7] sm:$0x3]
        %v3246 = vlaneseq
        %v3247 = vshrl.u32 %v3246, 7
        %v3248 = vsub.s32 0, %v3247
        %v3249 = vrot.slane %v3244, %v3248
        %v3250 = vlaneseq
        %v3251 = vshrl.u32 %v3250, 7
        %v3252 = vsub.s32 1, %v3251
        %v3253 = vrot.slane %v3244, %v3252
        %v3256 = vadd.f32 %v3212, %v3249
        %v3257 = vadd.f32 %v3213, %v3253
        %v3258 = vadd.f32 %v3214, %v3249
        %v3259 = vadd.f32 %v3215, %v3253
        %v3260 = vadd.f32 %v3216, %v3249
        %v3261 = vadd.f32 %v3217, %v3253
        %v3262 = vadd.f32 %v3218, %v3249
        %v3263 = vadd.f32 %v3219, %v3253
        %v3264 = vadd.f32 %v3220, %v3249
        %v3265 = vadd.f32 %v3221, %v3253
        %v3266 = vadd.f32 %v3222, %v3249
        %v3267 = vadd.f32 %v3223, %v3253
        %v3268 = vadd.f32 %v3224, %v3249
        %v3269 = vadd.f32 %v3225, %v3253
        %v3270 = vadd.f32 %v3226, %v3249
        %v3271 = vadd.f32 %v3227, %v3253
        %v3272 = vadd.f32 %v3228, %v3249
        %v3273 = vadd.f32 %v3229, %v3253
        %v3274 = vadd.f32 %v3230, %v3249
        %v3275 = vadd.f32 %v3231, %v3253
        %v3276 = vadd.f32 %v3232, %v3249
        %v3277 = vadd.f32 %v3233, %v3253
        %v3278 = vadd.f32 %v3234, %v3249
        %v3279 = vadd.f32 %v3235, %v3253
        %v3280 = vadd.f32 %v3236, %v3249
        %v3281 = vadd.f32 %v3237, %v3253
        %v3282 = vadd.f32 %v3238, %v3249
        %v3283 = vadd.f32 %v3239, %v3253
        %v3284 = vadd.f32 %v3240, %v3249
        %v3285 = vadd.f32 %v3241, %v3253
        %v3286 = vadd.f32 %v3242, %v3249
        %v3287 = vadd.f32 %v3243, %v3253
        %v3288 = vmax.f32 %v3256, 0.0
        %v3289 = vmax.f32 %v3257, 0.0
        %v3290 = vmax.f32 %v3258, 0.0
        %v3291 = vmax.f32 %v3259, 0.0
        %v3292 = vmax.f32 %v3260, 0.0
        %v3293 = vmax.f32 %v3261, 0.0
        %v3294 = vmax.f32 %v3262, 0.0
        %v3295 = vmax.f32 %v3263, 0.0
        %v3296 = vmax.f32 %v3264, 0.0
        %v3297 = vmax.f32 %v3265, 0.0
        %v3298 = vmax.f32 %v3266, 0.0
        %v3299 = vmax.f32 %v3267, 0.0
        %v3300 = vmax.f32 %v3268, 0.0
        %v3301 = vmax.f32 %v3269, 0.0
        %v3302 = vmax.f32 %v3270, 0.0
        %v3303 = vmax.f32 %v3271, 0.0
        %v3304 = vmax.f32 %v3272, 0.0
        %v3305 = vmax.f32 %v3273, 0.0
        %v3306 = vmax.f32 %v3274, 0.0
        %v3307 = vmax.f32 %v3275, 0.0
        %v3308 = vmax.f32 %v3276, 0.0
        %v3309 = vmax.f32 %v3277, 0.0
        %v3310 = vmax.f32 %v3278, 0.0
        %v3311 = vmax.f32 %v3279, 0.0
        %v3312 = vmax.f32 %v3280, 0.0
        %v3313 = vmax.f32 %v3281, 0.0
        %v3314 = vmax.f32 %v3282, 0.0
        %v3315 = vmax.f32 %v3283, 0.0
        %v3316 = vmax.f32 %v3284, 0.0
        %v3317 = vmax.f32 %v3285, 0.0
        %v3318 = vmax.f32 %v3286, 0.0
        %v3319 = vmax.f32 %v3287, 0.0
        %3320 = vst [vmem:[#allocation5] sm:$0xff] 0
        %3321 = vst [vmem:[#allocation5 + $0x8] sm:$0xff] 0
        %s3322 = scalar_lea.vmem [#allocation5], 144
        %3323 = vst [vmem:[%s3322] sm:$0xff] 0
        %3324 = vst [vmem:[%s3322 + $0x8] sm:$0xff] 0
        %v3325 = vpack.c.bf16 %v3290, %v3288
        %v3326 = vpack.c.bf16 %v3291, %v3289
        %v3327 = vpack.c.bf16 %v3294, %v3292
        %v3328 = vpack.c.bf16 %v3295, %v3293
        %v3329 = vpack.c.bf16 %v3298, %v3296
        %v3330 = vpack.c.bf16 %v3299, %v3297
        %v3331 = vpack.c.bf16 %v3302, %v3300
        %v3332 = vpack.c.bf16 %v3303, %v3301
        %v3333 = vpack.c.bf16 %v3306, %v3304
        %v3334 = vpack.c.bf16 %v3307, %v3305
        %v3335 = vpack.c.bf16 %v3310, %v3308
        %v3336 = vpack.c.bf16 %v3311, %v3309
        %v3337 = vpack.c.bf16 %v3314, %v3312
        %v3338 = vpack.c.bf16 %v3315, %v3313
        %v3339 = vpack.c.bf16 %v3318, %v3316
        %v3340 = vpack.c.bf16 %v3319, %v3317
        %v3357 = vunpack.c.l.b16 %v3325
        %v3358 = vunpack.c.l.b16 %v3326
        %v3359 = vunpack.c.h.b16 %v3325
        %v3360 = vunpack.c.h.b16 %v3326
        %v3361 = vunpack.c.l.b16 %v3327
        %v3362 = vunpack.c.l.b16 %v3328
        %v3363 = vunpack.c.h.b16 %v3327
        %v3364 = vunpack.c.h.b16 %v3328
        %v3365 = vunpack.c.l.b16 %v3329
        %v3366 = vunpack.c.l.b16 %v3330
        %v3367 = vunpack.c.h.b16 %v3329
        %v3368 = vunpack.c.h.b16 %v3330
        %v3369 = vunpack.c.l.b16 %v3331
        %v3370 = vunpack.c.l.b16 %v3332
        %v3371 = vunpack.c.h.b16 %v3331
        %v3372 = vunpack.c.h.b16 %v3332
        %v3373 = vunpack.c.l.b16 %v3333
        %v3374 = vunpack.c.l.b16 %v3334
        %v3375 = vunpack.c.h.b16 %v3333
        %v3376 = vunpack.c.h.b16 %v3334
        %v3377 = vunpack.c.l.b16 %v3335
        %v3378 = vunpack.c.l.b16 %v3336
        %v3379 = vunpack.c.h.b16 %v3335
        %v3380 = vunpack.c.h.b16 %v3336
        %v3381 = vunpack.c.l.b16 %v3337
        %v3382 = vunpack.c.l.b16 %v3338
        %v3383 = vunpack.c.h.b16 %v3337
        %v3384 = vunpack.c.h.b16 %v3338
        %v3385 = vunpack.c.l.b16 %v3339
        %v3386 = vunpack.c.l.b16 %v3340
        %v3387 = vunpack.c.h.b16 %v3339
        %v3388 = vunpack.c.h.b16 %v3340
        %v3389 = vpack.c.b16 %v3358, %v3357
        %v3390 = vpack.c.b16 %v3360, %v3359
        %v3391 = vpack.c.b16 %v3362, %v3361
        %v3392 = vpack.c.b16 %v3364, %v3363
        %v3393 = vpack.c.b16 %v3366, %v3365
        %v3394 = vpack.c.b16 %v3368, %v3367
        %v3395 = vpack.c.b16 %v3370, %v3369
        %v3396 = vpack.c.b16 %v3372, %v3371
        %v3397 = vpack.c.b16 %v3374, %v3373
        %v3398 = vpack.c.b16 %v3376, %v3375
        %v3399 = vpack.c.b16 %v3378, %v3377
        %v3400 = vpack.c.b16 %v3380, %v3379
        %v3401 = vpack.c.b16 %v3382, %v3381
        %v3402 = vpack.c.b16 %v3384, %v3383
        %v3403 = vpack.c.b16 %v3386, %v3385
        %v3404 = vpack.c.b16 %v3388, %v3387
        %s3421 = scalar_lea.vmem [#allocation5], 16
        %3422 = vst [vmem:[%s3421] sm:$0xff] %v3389
        %3423 = vst [vmem:[%s3421 + $0x8] sm:$0xff] %v3390
        %3424 = vst [vmem:[%s3421 + $0x10] sm:$0xff] %v3391
        %3425 = vst [vmem:[%s3421 + $0x18] sm:$0xff] %v3392
        %3426 = vst [vmem:[%s3421 + $0x20] sm:$0xff] %v3393
        %3427 = vst [vmem:[%s3421 + $0x28] sm:$0xff] %v3394
        %3428 = vst [vmem:[%s3421 + $0x30] sm:$0xff] %v3395
        %3429 = vst [vmem:[%s3421 + $0x38] sm:$0xff] %v3396
        %3430 = vst [vmem:[%s3421 + $0x40] sm:$0xff] %v3397
        %3431 = vst [vmem:[%s3421 + $0x48] sm:$0xff] %v3398
        %3432 = vst [vmem:[%s3421 + $0x50] sm:$0xff] %v3399
        %3433 = vst [vmem:[%s3421 + $0x58] sm:$0xff] %v3400
        %3434 = vst [vmem:[%s3421 + $0x60] sm:$0xff] %v3401
        %3435 = vst [vmem:[%s3421 + $0x68] sm:$0xff] %v3402
        %3436 = vst [vmem:[%s3421 + $0x70] sm:$0xff] %v3403
        %3437 = vst [vmem:[%s3421 + $0x78] sm:$0xff] %v3404
        %v3438 = vld [vmem:[#allocation5] sm:$0xff]
        %v3439 = vld [vmem:[#allocation5 + $0x8] sm:$0xff]
        %v3440 = vld [vmem:[#allocation5 + $0x10] sm:$0xff]
        %v3441 = vld [vmem:[#allocation5 + $0x18] sm:$0xff]
        %v3442 = vld [vmem:[#allocation5 + $0x20] sm:$0xff]
        %v3443 = vld [vmem:[#allocation5 + $0x28] sm:$0xff]
        %v3444 = vld [vmem:[#allocation5 + $0x30] sm:$0xff]
        %v3445 = vld [vmem:[#allocation5 + $0x38] sm:$0xff]
        %v3446 = vld [vmem:[#allocation5 + $0x40] sm:$0xff]
        %v3447 = vld [vmem:[#allocation5 + $0x48] sm:$0xff]
        %v3448 = vld [vmem:[#allocation5 + $0x50] sm:$0xff]
        %v3449 = vld [vmem:[#allocation5 + $0x58] sm:$0xff]
        %v3450 = vld [vmem:[#allocation5 + $0x60] sm:$0xff]
        %v3451 = vld [vmem:[#allocation5 + $0x68] sm:$0xff]
        %v3452 = vld [vmem:[#allocation5 + $0x70] sm:$0xff]
        %v3453 = vld [vmem:[#allocation5 + $0x78] sm:$0xff]
        %v3454 = vld [vmem:[#allocation14] sm:$0xff]
        %v3455 = vld [vmem:[#allocation14 + $0x8] sm:$0xff]
        %v3456 = vld [vmem:[#allocation14 + $0x10] sm:$0xff]
        %v3457 = vld [vmem:[#allocation14 + $0x18] sm:$0xff]
        %v3458 = vld [vmem:[#allocation14 + $0x20] sm:$0xff]
        %v3459 = vld [vmem:[#allocation14 + $0x28] sm:$0xff]
        %v3460 = vld [vmem:[#allocation14 + $0x30] sm:$0xff]
        %v3461 = vld [vmem:[#allocation14 + $0x38] sm:$0xff]
        %v3462 = vld [vmem:[#allocation14 + $0x40] sm:$0xff]
        %v3463 = vld [vmem:[#allocation14 + $0x48] sm:$0xff]
        %v3464 = vld [vmem:[#allocation14 + $0x50] sm:$0xff]
        %v3465 = vld [vmem:[#allocation14 + $0x58] sm:$0xff]
        %v3466 = vld [vmem:[#allocation14 + $0x60] sm:$0xff]
        %v3467 = vld [vmem:[#allocation14 + $0x68] sm:$0xff]
        %v3468 = vld [vmem:[#allocation14 + $0x70] sm:$0xff]
        %v3469 = vld [vmem:[#allocation14 + $0x78] sm:$0xff]
        %v3470 = vld [vmem:[#allocation14 + $0x80] sm:$0xff]
        %v3471 = vld [vmem:[#allocation14 + $0x88] sm:$0xff]
        %v3472 = vld [vmem:[#allocation14 + $0x90] sm:$0xff]
        %v3473 = vld [vmem:[#allocation14 + $0x98] sm:$0xff]
        %v3474 = vld [vmem:[#allocation14 + $0xa0] sm:$0xff]
        %v3475 = vld [vmem:[#allocation14 + $0xa8] sm:$0xff]
        %v3476 = vld [vmem:[#allocation14 + $0xb0] sm:$0xff]
        %v3477 = vld [vmem:[#allocation14 + $0xb8] sm:$0xff]
        %v3478 = vld [vmem:[#allocation14 + $0xc0] sm:$0xff]
        %v3479 = vld [vmem:[#allocation14 + $0xc8] sm:$0xff]
        %v3480 = vld [vmem:[#allocation14 + $0xd0] sm:$0xff]
        %v3481 = vld [vmem:[#allocation14 + $0xd8] sm:$0xff]
        %v3482 = vld [vmem:[#allocation14 + $0xe0] sm:$0xff]
        %v3483 = vld [vmem:[#allocation14 + $0xe8] sm:$0xff]
        %v3484 = vld [vmem:[#allocation14 + $0xf0] sm:$0xff]
        %v3485 = vld [vmem:[#allocation14 + $0xf8] sm:$0xff]
        %v3486 = vld [vmem:[%s3421] sm:$0xff]
        %v3487 = vld [vmem:[%s3421 + $0x8] sm:$0xff]
        %v3488 = vld [vmem:[%s3421 + $0x10] sm:$0xff]
        %v3489 = vld [vmem:[%s3421 + $0x18] sm:$0xff]
        %v3490 = vld [vmem:[%s3421 + $0x20] sm:$0xff]
        %v3491 = vld [vmem:[%s3421 + $0x28] sm:$0xff]
        %v3492 = vld [vmem:[%s3421 + $0x30] sm:$0xff]
        %v3493 = vld [vmem:[%s3421 + $0x38] sm:$0xff]
        %v3494 = vld [vmem:[%s3421 + $0x40] sm:$0xff]
        %v3495 = vld [vmem:[%s3421 + $0x48] sm:$0xff]
        %v3496 = vld [vmem:[%s3421 + $0x50] sm:$0xff]
        %v3497 = vld [vmem:[%s3421 + $0x58] sm:$0xff]
        %v3498 = vld [vmem:[%s3421 + $0x60] sm:$0xff]
        %v3499 = vld [vmem:[%s3421 + $0x68] sm:$0xff]
        %v3500 = vld [vmem:[%s3421 + $0x70] sm:$0xff]
        %v3501 = vld [vmem:[%s3421 + $0x78] sm:$0xff]
        %s3502 = scalar_lea.vmem [#allocation14], 256
        %v3503 = vld [vmem:[%s3502] sm:$0xff]
        %v3504 = vld [vmem:[%s3502 + $0x8] sm:$0xff]
        %v3505 = vld [vmem:[%s3502 + $0x10] sm:$0xff]
        %v3506 = vld [vmem:[%s3502 + $0x18] sm:$0xff]
        %v3507 = vld [vmem:[%s3502 + $0x20] sm:$0xff]
        %v3508 = vld [vmem:[%s3502 + $0x28] sm:$0xff]
        %v3509 = vld [vmem:[%s3502 + $0x30] sm:$0xff]
        %v3510 = vld [vmem:[%s3502 + $0x38] sm:$0xff]
        %v3511 = vld [vmem:[%s3502 + $0x40] sm:$0xff]
        %v3512 = vld [vmem:[%s3502 + $0x48] sm:$0xff]
        %v3513 = vld [vmem:[%s3502 + $0x50] sm:$0xff]
        %v3514 = vld [vmem:[%s3502 + $0x58] sm:$0xff]
        %v3515 = vld [vmem:[%s3502 + $0x60] sm:$0xff]
        %v3516 = vld [vmem:[%s3502 + $0x68] sm:$0xff]
        %v3517 = vld [vmem:[%s3502 + $0x70] sm:$0xff]
        %v3518 = vld [vmem:[%s3502 + $0x78] sm:$0xff]
        %v3519 = vld [vmem:[%s3502 + $0x80] sm:$0xff]
        %v3520 = vld [vmem:[%s3502 + $0x88] sm:$0xff]
        %v3521 = vld [vmem:[%s3502 + $0x90] sm:$0xff]
        %v3522 = vld [vmem:[%s3502 + $0x98] sm:$0xff]
        %v3523 = vld [vmem:[%s3502 + $0xa0] sm:$0xff]
        %v3524 = vld [vmem:[%s3502 + $0xa8] sm:$0xff]
        %v3525 = vld [vmem:[%s3502 + $0xb0] sm:$0xff]
        %v3526 = vld [vmem:[%s3502 + $0xb8] sm:$0xff]
        %v3527 = vld [vmem:[%s3502 + $0xc0] sm:$0xff]
        %v3528 = vld [vmem:[%s3502 + $0xc8] sm:$0xff]
        %v3529 = vld [vmem:[%s3502 + $0xd0] sm:$0xff]
        %v3530 = vld [vmem:[%s3502 + $0xd8] sm:$0xff]
        %v3531 = vld [vmem:[%s3502 + $0xe0] sm:$0xff]
        %v3532 = vld [vmem:[%s3502 + $0xe8] sm:$0xff]
        %v3533 = vld [vmem:[%s3502 + $0xf0] sm:$0xff]
        %v3534 = vld [vmem:[%s3502 + $0xf8] sm:$0xff]
        %v3551 = vunpack.c.l.b16 %v3486
        %v3552 = vunpack.c.h.b16 %v3486
        %v3553 = vunpack.c.l.b16 %v3487
        %v3554 = vunpack.c.h.b16 %v3487
        %v3555 = vunpack.c.l.b16 %v3488
        %v3556 = vunpack.c.h.b16 %v3488
        %v3557 = vunpack.c.l.b16 %v3489
        %v3558 = vunpack.c.h.b16 %v3489
        %v3559 = vunpack.c.l.b16 %v3490
        %v3560 = vunpack.c.h.b16 %v3490
        %v3561 = vunpack.c.l.b16 %v3491
        %v3562 = vunpack.c.h.b16 %v3491
        %v3563 = vunpack.c.l.b16 %v3492
        %v3564 = vunpack.c.h.b16 %v3492
        %v3565 = vunpack.c.l.b16 %v3493
        %v3566 = vunpack.c.h.b16 %v3493
        %v3567 = vunpack.c.l.b16 %v3494
        %v3568 = vunpack.c.h.b16 %v3494
        %v3569 = vunpack.c.l.b16 %v3495
        %v3570 = vunpack.c.h.b16 %v3495
        %v3571 = vunpack.c.l.b16 %v3496
        %v3572 = vunpack.c.h.b16 %v3496
        %v3573 = vunpack.c.l.b16 %v3497
        %v3574 = vunpack.c.h.b16 %v3497
        %v3575 = vunpack.c.l.b16 %v3498
        %v3576 = vunpack.c.h.b16 %v3498
        %v3577 = vunpack.c.l.b16 %v3499
        %v3578 = vunpack.c.h.b16 %v3499
        %v3579 = vunpack.c.l.b16 %v3500
        %v3580 = vunpack.c.h.b16 %v3500
        %v3581 = vunpack.c.l.b16 %v3501
        %v3582 = vunpack.c.h.b16 %v3501
        %v3583 = vpack.c.b16 %v3553, %v3551
        %v3584 = vpack.c.b16 %v3554, %v3552
        %v3585 = vpack.c.b16 %v3557, %v3555
        %v3586 = vpack.c.b16 %v3558, %v3556
        %v3587 = vpack.c.b16 %v3561, %v3559
        %v3588 = vpack.c.b16 %v3562, %v3560
        %v3589 = vpack.c.b16 %v3565, %v3563
        %v3590 = vpack.c.b16 %v3566, %v3564
        %v3591 = vpack.c.b16 %v3569, %v3567
        %v3592 = vpack.c.b16 %v3570, %v3568
        %v3593 = vpack.c.b16 %v3573, %v3571
        %v3594 = vpack.c.b16 %v3574, %v3572
        %v3595 = vpack.c.b16 %v3577, %v3575
        %v3596 = vpack.c.b16 %v3578, %v3576
        %v3597 = vpack.c.b16 %v3581, %v3579
        %v3598 = vpack.c.b16 %v3582, %v3580
        %v3647 = vunpack.c.l.b16 %v3503
        %v3648 = vunpack.c.h.b16 %v3503
        %v3649 = vunpack.c.l.b16 %v3504
        %v3650 = vunpack.c.h.b16 %v3504
        %v3651 = vunpack.c.l.b16 %v3505
        %v3652 = vunpack.c.h.b16 %v3505
        %v3653 = vunpack.c.l.b16 %v3506
        %v3654 = vunpack.c.h.b16 %v3506
        %v3655 = vunpack.c.l.b16 %v3507
        %v3656 = vunpack.c.h.b16 %v3507
        %v3657 = vunpack.c.l.b16 %v3508
        %v3658 = vunpack.c.h.b16 %v3508
        %v3659 = vunpack.c.l.b16 %v3509
        %v3660 = vunpack.c.h.b16 %v3509
        %v3661 = vunpack.c.l.b16 %v3510
        %v3662 = vunpack.c.h.b16 %v3510
        %v3663 = vunpack.c.l.b16 %v3511
        %v3664 = vunpack.c.h.b16 %v3511
        %v3665 = vunpack.c.l.b16 %v3512
        %v3666 = vunpack.c.h.b16 %v3512
        %v3667 = vunpack.c.l.b16 %v3513
        %v3668 = vunpack.c.h.b16 %v3513
        %v3669 = vunpack.c.l.b16 %v3514
        %v3670 = vunpack.c.h.b16 %v3514
        %v3671 = vunpack.c.l.b16 %v3515
        %v3672 = vunpack.c.h.b16 %v3515
        %v3673 = vunpack.c.l.b16 %v3516
        %v3674 = vunpack.c.h.b16 %v3516
        %v3675 = vunpack.c.l.b16 %v3517
        %v3676 = vunpack.c.h.b16 %v3517
        %v3677 = vunpack.c.l.b16 %v3518
        %v3678 = vunpack.c.h.b16 %v3518
        %v3679 = vunpack.c.l.b16 %v3519
        %v3680 = vunpack.c.h.b16 %v3519
        %v3681 = vunpack.c.l.b16 %v3520
        %v3682 = vunpack.c.h.b16 %v3520
        %v3683 = vunpack.c.l.b16 %v3521
        %v3684 = vunpack.c.h.b16 %v3521
        %v3685 = vunpack.c.l.b16 %v3522
        %v3686 = vunpack.c.h.b16 %v3522
        %v3687 = vunpack.c.l.b16 %v3523
        %v3688 = vunpack.c.h.b16 %v3523
        %v3689 = vunpack.c.l.b16 %v3524
        %v3690 = vunpack.c.h.b16 %v3524
        %v3691 = vunpack.c.l.b16 %v3525
        %v3692 = vunpack.c.h.b16 %v3525
        %v3693 = vunpack.c.l.b16 %v3526
        %v3694 = vunpack.c.h.b16 %v3526
        %v3695 = vunpack.c.l.b16 %v3527
        %v3696 = vunpack.c.h.b16 %v3527
        %v3697 = vunpack.c.l.b16 %v3528
        %v3698 = vunpack.c.h.b16 %v3528
        %v3699 = vunpack.c.l.b16 %v3529
        %v3700 = vunpack.c.h.b16 %v3529
        %v3701 = vunpack.c.l.b16 %v3530
        %v3702 = vunpack.c.h.b16 %v3530
        %v3703 = vunpack.c.l.b16 %v3531
        %v3704 = vunpack.c.h.b16 %v3531
        %v3705 = vunpack.c.l.b16 %v3532
        %v3706 = vunpack.c.h.b16 %v3532
        %v3707 = vunpack.c.l.b16 %v3533
        %v3708 = vunpack.c.h.b16 %v3533
        %v3709 = vunpack.c.l.b16 %v3534
        %v3710 = vunpack.c.h.b16 %v3534
        %v3711 = vpack.c.b16 %v3649, %v3647
        %v3712 = vpack.c.b16 %v3650, %v3648
        %v3713 = vpack.c.b16 %v3653, %v3651
        %v3714 = vpack.c.b16 %v3654, %v3652
        %v3715 = vpack.c.b16 %v3657, %v3655
        %v3716 = vpack.c.b16 %v3658, %v3656
        %v3717 = vpack.c.b16 %v3661, %v3659
        %v3718 = vpack.c.b16 %v3662, %v3660
        %v3719 = vpack.c.b16 %v3665, %v3663
        %v3720 = vpack.c.b16 %v3666, %v3664
        %v3721 = vpack.c.b16 %v3669, %v3667
        %v3722 = vpack.c.b16 %v3670, %v3668
        %v3723 = vpack.c.b16 %v3673, %v3671
        %v3724 = vpack.c.b16 %v3674, %v3672
        %v3725 = vpack.c.b16 %v3677, %v3675
        %v3726 = vpack.c.b16 %v3678, %v3676
        %v3727 = vpack.c.b16 %v3681, %v3679
        %v3728 = vpack.c.b16 %v3682, %v3680
        %v3729 = vpack.c.b16 %v3685, %v3683
        %v3730 = vpack.c.b16 %v3686, %v3684
        %v3731 = vpack.c.b16 %v3689, %v3687
        %v3732 = vpack.c.b16 %v3690, %v3688
        %v3733 = vpack.c.b16 %v3693, %v3691
        %v3734 = vpack.c.b16 %v3694, %v3692
        %v3735 = vpack.c.b16 %v3697, %v3695
        %v3736 = vpack.c.b16 %v3698, %v3696
        %v3737 = vpack.c.b16 %v3701, %v3699
        %v3738 = vpack.c.b16 %v3702, %v3700
        %v3739 = vpack.c.b16 %v3705, %v3703
        %v3740 = vpack.c.b16 %v3706, %v3704
        %v3741 = vpack.c.b16 %v3709, %v3707
        %v3742 = vpack.c.b16 %v3710, %v3708
        %3775 = vmatprep.subr.bf16.mxu0 %v3726
        %3776 = vmatpush1.bf16.msra.mxu0 %v3725
        %3777 = vmatprep.subr.bf16.mxu0 %v3724
        %3778 = vmatpush1.bf16.msra.mxu0 %v3723
        %3779 = vmatprep.subr.bf16.mxu0 %v3722
        %3780 = vmatpush1.bf16.msra.mxu0 %v3721
        %3781 = vmatprep.subr.bf16.mxu0 %v3720
        %3782 = vmatpush1.bf16.msra.mxu0 %v3719
        %3783 = vmatprep.subr.bf16.mxu0 %v3718
        %3784 = vmatpush1.bf16.msra.mxu0 %v3717
        %3785 = vmatprep.subr.bf16.mxu0 %v3716
        %3786 = vmatpush1.bf16.msra.mxu0 %v3715
        %3787 = vmatprep.subr.bf16.mxu0 %v3714
        %3788 = vmatpush1.bf16.msra.mxu0 %v3713
        %3789 = vmatprep.subr.bf16.mxu0 %v3712
        %3790 = vmatpush1.bf16.msra.mxu0 %v3711
        %3791 = vmatprep.subr.bf16.mxu0 %v3742
        %3792 = vmatpush2.bf16.msra.mxu0 %v3741
        %3793 = vmatprep.subr.bf16.mxu0 %v3740
        %3794 = vmatpush2.bf16.msra.mxu0 %v3739
        %3795 = vmatprep.subr.bf16.mxu0 %v3738
        %3796 = vmatpush2.bf16.msra.mxu0 %v3737
        %3797 = vmatprep.subr.bf16.mxu0 %v3736
        %3798 = vmatpush2.bf16.msra.mxu0 %v3735
        %3799 = vmatprep.subr.bf16.mxu0 %v3734
        %3800 = vmatpush2.bf16.msra.mxu0 %v3733
        %3801 = vmatprep.subr.bf16.mxu0 %v3732
        %3802 = vmatpush2.bf16.msra.mxu0 %v3731
        %3803 = vmatprep.subr.bf16.mxu0 %v3730
        %3804 = vmatpush2.bf16.msra.mxu0 %v3729
        %3805 = vmatprep.subr.bf16.mxu0 %v3728
        %3806 = vmatpush2.bf16.msra.mxu0 %v3727
        %3807 = vmatprep.mubr.bf16.mxu0 %v3584
        %3808 = vmatmul.mubr.bf16.gmra.mxu0 %v3583
        %v3809 = vpop.f32.mrf.mxu0
        %v3810 = vadd.f32 0.0, %v3809
        %v3811 = vpop.f32.mrf.mxu0
        %v3812 = vadd.f32 0.0, %v3811
        %v3813 = vpop.f32.mrf.mxu0
        %v3814 = vadd.f32 0.0, %v3813
        %v3815 = vpop.f32.mrf.mxu0
        %v3816 = vadd.f32 0.0, %v3815
        %3817 = vmatprep.mubr.bf16.mxu0 %v3586
        %3818 = vmatmul.mubr.bf16.gmra.mxu0 %v3585
        %v3819 = vpop.f32.mrf.mxu0
        %v3820 = vadd.f32 0.0, %v3819
        %v3821 = vpop.f32.mrf.mxu0
        %v3822 = vadd.f32 0.0, %v3821
        %v3823 = vpop.f32.mrf.mxu0
        %v3824 = vadd.f32 0.0, %v3823
        %v3825 = vpop.f32.mrf.mxu0
        %v3826 = vadd.f32 0.0, %v3825
        %3827 = vmatprep.mubr.bf16.mxu0 %v3588
        %3828 = vmatmul.mubr.bf16.gmra.mxu0 %v3587
        %v3829 = vpop.f32.mrf.mxu0
        %v3830 = vadd.f32 0.0, %v3829
        %v3831 = vpop.f32.mrf.mxu0
        %v3832 = vadd.f32 0.0, %v3831
        %v3833 = vpop.f32.mrf.mxu0
        %v3834 = vadd.f32 0.0, %v3833
        %v3835 = vpop.f32.mrf.mxu0
        %v3836 = vadd.f32 0.0, %v3835
        %3837 = vmatprep.mubr.bf16.mxu0 %v3590
        %3838 = vmatmul.mubr.bf16.gmra.mxu0 %v3589
        %v3839 = vpop.f32.mrf.mxu0
        %v3840 = vadd.f32 0.0, %v3839
        %v3841 = vpop.f32.mrf.mxu0
        %v3842 = vadd.f32 0.0, %v3841
        %v3843 = vpop.f32.mrf.mxu0
        %v3844 = vadd.f32 0.0, %v3843
        %v3845 = vpop.f32.mrf.mxu0
        %v3846 = vadd.f32 0.0, %v3845
        %3847 = vmatprep.mubr.bf16.mxu0 %v3592
        %3848 = vmatmul.mubr.bf16.gmra.mxu0 %v3591
        %v3849 = vpop.f32.mrf.mxu0
        %v3850 = vadd.f32 0.0, %v3849
        %v3851 = vpop.f32.mrf.mxu0
        %v3852 = vadd.f32 0.0, %v3851
        %v3853 = vpop.f32.mrf.mxu0
        %v3854 = vadd.f32 0.0, %v3853
        %v3855 = vpop.f32.mrf.mxu0
        %v3856 = vadd.f32 0.0, %v3855
        %3857 = vmatprep.mubr.bf16.mxu0 %v3594
        %3858 = vmatmul.mubr.bf16.gmra.mxu0 %v3593
        %v3859 = vpop.f32.mrf.mxu0
        %v3860 = vadd.f32 0.0, %v3859
        %v3861 = vpop.f32.mrf.mxu0
        %v3862 = vadd.f32 0.0, %v3861
        %v3863 = vpop.f32.mrf.mxu0
        %v3864 = vadd.f32 0.0, %v3863
        %v3865 = vpop.f32.mrf.mxu0
        %v3866 = vadd.f32 0.0, %v3865
        %3867 = vmatprep.mubr.bf16.mxu0 %v3596
        %3868 = vmatmul.mubr.bf16.gmra.mxu0 %v3595
        %v3869 = vpop.f32.mrf.mxu0
        %v3870 = vadd.f32 0.0, %v3869
        %v3871 = vpop.f32.mrf.mxu0
        %v3872 = vadd.f32 0.0, %v3871
        %v3873 = vpop.f32.mrf.mxu0
        %v3874 = vadd.f32 0.0, %v3873
        %v3875 = vpop.f32.mrf.mxu0
        %v3876 = vadd.f32 0.0, %v3875
        %3877 = vmatprep.mubr.bf16.mxu0 %v3598
        %3878 = vmatmul.mubr.bf16.gmra.mxu0 %v3597
        %v3879 = vpop.f32.mrf.mxu0
        %v3880 = vadd.f32 0.0, %v3879
        %v3881 = vpop.f32.mrf.mxu0
        %v3882 = vadd.f32 0.0, %v3881
        %v3883 = vpop.f32.mrf.mxu0
        %v3884 = vadd.f32 0.0, %v3883
        %v3885 = vpop.f32.mrf.mxu0
        %v3886 = vadd.f32 0.0, %v3885
        %3887 = vdwg.mxu0
        %v3904 = vunpack.c.l.b16 %v3438
        %v3905 = vunpack.c.h.b16 %v3438
        %v3906 = vunpack.c.l.b16 %v3439
        %v3907 = vunpack.c.h.b16 %v3439
        %v3908 = vunpack.c.l.b16 %v3440
        %v3909 = vunpack.c.h.b16 %v3440
        %v3910 = vunpack.c.l.b16 %v3441
        %v3911 = vunpack.c.h.b16 %v3441
        %v3912 = vunpack.c.l.b16 %v3442
        %v3913 = vunpack.c.h.b16 %v3442
        %v3914 = vunpack.c.l.b16 %v3443
        %v3915 = vunpack.c.h.b16 %v3443
        %v3916 = vunpack.c.l.b16 %v3444
        %v3917 = vunpack.c.h.b16 %v3444
        %v3918 = vunpack.c.l.b16 %v3445
        %v3919 = vunpack.c.h.b16 %v3445
        %v3920 = vunpack.c.l.b16 %v3446
        %v3921 = vunpack.c.h.b16 %v3446
        %v3922 = vunpack.c.l.b16 %v3447
        %v3923 = vunpack.c.h.b16 %v3447
        %v3924 = vunpack.c.l.b16 %v3448
        %v3925 = vunpack.c.h.b16 %v3448
        %v3926 = vunpack.c.l.b16 %v3449
        %v3927 = vunpack.c.h.b16 %v3449
        %v3928 = vunpack.c.l.b16 %v3450
        %v3929 = vunpack.c.h.b16 %v3450
        %v3930 = vunpack.c.l.b16 %v3451
        %v3931 = vunpack.c.h.b16 %v3451
        %v3932 = vunpack.c.l.b16 %v3452
        %v3933 = vunpack.c.h.b16 %v3452
        %v3934 = vunpack.c.l.b16 %v3453
        %v3935 = vunpack.c.h.b16 %v3453
        %v3936 = vpack.c.b16 %v3906, %v3904
        %v3937 = vpack.c.b16 %v3907, %v3905
        %v3938 = vpack.c.b16 %v3910, %v3908
        %v3939 = vpack.c.b16 %v3911, %v3909
        %v3940 = vpack.c.b16 %v3914, %v3912
        %v3941 = vpack.c.b16 %v3915, %v3913
        %v3942 = vpack.c.b16 %v3918, %v3916
        %v3943 = vpack.c.b16 %v3919, %v3917
        %v3944 = vpack.c.b16 %v3922, %v3920
        %v3945 = vpack.c.b16 %v3923, %v3921
        %v3946 = vpack.c.b16 %v3926, %v3924
        %v3947 = vpack.c.b16 %v3927, %v3925
        %v3948 = vpack.c.b16 %v3930, %v3928
        %v3949 = vpack.c.b16 %v3931, %v3929
        %v3950 = vpack.c.b16 %v3934, %v3932
        %v3951 = vpack.c.b16 %v3935, %v3933
        %v4000 = vunpack.c.l.b16 %v3454
        %v4001 = vunpack.c.h.b16 %v3454
        %v4002 = vunpack.c.l.b16 %v3455
        %v4003 = vunpack.c.h.b16 %v3455
        %v4004 = vunpack.c.l.b16 %v3456
        %v4005 = vunpack.c.h.b16 %v3456
        %v4006 = vunpack.c.l.b16 %v3457
        %v4007 = vunpack.c.h.b16 %v3457
        %v4008 = vunpack.c.l.b16 %v3458
        %v4009 = vunpack.c.h.b16 %v3458
        %v4010 = vunpack.c.l.b16 %v3459
        %v4011 = vunpack.c.h.b16 %v3459
        %v4012 = vunpack.c.l.b16 %v3460
        %v4013 = vunpack.c.h.b16 %v3460
        %v4014 = vunpack.c.l.b16 %v3461
        %v4015 = vunpack.c.h.b16 %v3461
        %v4016 = vunpack.c.l.b16 %v3462
        %v4017 = vunpack.c.h.b16 %v3462
        %v4018 = vunpack.c.l.b16 %v3463
        %v4019 = vunpack.c.h.b16 %v3463
        %v4020 = vunpack.c.l.b16 %v3464
        %v4021 = vunpack.c.h.b16 %v3464
        %v4022 = vunpack.c.l.b16 %v3465
        %v4023 = vunpack.c.h.b16 %v3465
        %v4024 = vunpack.c.l.b16 %v3466
        %v4025 = vunpack.c.h.b16 %v3466
        %v4026 = vunpack.c.l.b16 %v3467
        %v4027 = vunpack.c.h.b16 %v3467
        %v4028 = vunpack.c.l.b16 %v3468
        %v4029 = vunpack.c.h.b16 %v3468
        %v4030 = vunpack.c.l.b16 %v3469
        %v4031 = vunpack.c.h.b16 %v3469
        %v4032 = vunpack.c.l.b16 %v3470
        %v4033 = vunpack.c.h.b16 %v3470
        %v4034 = vunpack.c.l.b16 %v3471
        %v4035 = vunpack.c.h.b16 %v3471
        %v4036 = vunpack.c.l.b16 %v3472
        %v4037 = vunpack.c.h.b16 %v3472
        %v4038 = vunpack.c.l.b16 %v3473
        %v4039 = vunpack.c.h.b16 %v3473
        %v4040 = vunpack.c.l.b16 %v3474
        %v4041 = vunpack.c.h.b16 %v3474
        %v4042 = vunpack.c.l.b16 %v3475
        %v4043 = vunpack.c.h.b16 %v3475
        %v4044 = vunpack.c.l.b16 %v3476
        %v4045 = vunpack.c.h.b16 %v3476
        %v4046 = vunpack.c.l.b16 %v3477
        %v4047 = vunpack.c.h.b16 %v3477
        %v4048 = vunpack.c.l.b16 %v3478
        %v4049 = vunpack.c.h.b16 %v3478
        %v4050 = vunpack.c.l.b16 %v3479
        %v4051 = vunpack.c.h.b16 %v3479
        %v4052 = vunpack.c.l.b16 %v3480
        %v4053 = vunpack.c.h.b16 %v3480
        %v4054 = vunpack.c.l.b16 %v3481
        %v4055 = vunpack.c.h.b16 %v3481
        %v4056 = vunpack.c.l.b16 %v3482
        %v4057 = vunpack.c.h.b16 %v3482
        %v4058 = vunpack.c.l.b16 %v3483
        %v4059 = vunpack.c.h.b16 %v3483
        %v4060 = vunpack.c.l.b16 %v3484
        %v4061 = vunpack.c.h.b16 %v3484
        %v4062 = vunpack.c.l.b16 %v3485
        %v4063 = vunpack.c.h.b16 %v3485
        %v4064 = vpack.c.b16 %v4002, %v4000
        %v4065 = vpack.c.b16 %v4003, %v4001
        %v4066 = vpack.c.b16 %v4006, %v4004
        %v4067 = vpack.c.b16 %v4007, %v4005
        %v4068 = vpack.c.b16 %v4010, %v4008
        %v4069 = vpack.c.b16 %v4011, %v4009
        %v4070 = vpack.c.b16 %v4014, %v4012
        %v4071 = vpack.c.b16 %v4015, %v4013
        %v4072 = vpack.c.b16 %v4018, %v4016
        %v4073 = vpack.c.b16 %v4019, %v4017
        %v4074 = vpack.c.b16 %v4022, %v4020
        %v4075 = vpack.c.b16 %v4023, %v4021
        %v4076 = vpack.c.b16 %v4026, %v4024
        %v4077 = vpack.c.b16 %v4027, %v4025
        %v4078 = vpack.c.b16 %v4030, %v4028
        %v4079 = vpack.c.b16 %v4031, %v4029
        %v4080 = vpack.c.b16 %v4034, %v4032
        %v4081 = vpack.c.b16 %v4035, %v4033
        %v4082 = vpack.c.b16 %v4038, %v4036
        %v4083 = vpack.c.b16 %v4039, %v4037
        %v4084 = vpack.c.b16 %v4042, %v4040
        %v4085 = vpack.c.b16 %v4043, %v4041
        %v4086 = vpack.c.b16 %v4046, %v4044
        %v4087 = vpack.c.b16 %v4047, %v4045
        %v4088 = vpack.c.b16 %v4050, %v4048
        %v4089 = vpack.c.b16 %v4051, %v4049
        %v4090 = vpack.c.b16 %v4054, %v4052
        %v4091 = vpack.c.b16 %v4055, %v4053
        %v4092 = vpack.c.b16 %v4058, %v4056
        %v4093 = vpack.c.b16 %v4059, %v4057
        %v4094 = vpack.c.b16 %v4062, %v4060
        %v4095 = vpack.c.b16 %v4063, %v4061
        %4128 = vmatprep.subr.bf16.mxu0 %v4079
        %4129 = vmatpush1.bf16.msra.mxu0 %v4078
        %4130 = vmatprep.subr.bf16.mxu0 %v4077
        %4131 = vmatpush1.bf16.msra.mxu0 %v4076
        %4132 = vmatprep.subr.bf16.mxu0 %v4075
        %4133 = vmatpush1.bf16.msra.mxu0 %v4074
        %4134 = vmatprep.subr.bf16.mxu0 %v4073
        %4135 = vmatpush1.bf16.msra.mxu0 %v4072
        %4136 = vmatprep.subr.bf16.mxu0 %v4071
        %4137 = vmatpush1.bf16.msra.mxu0 %v4070
        %4138 = vmatprep.subr.bf16.mxu0 %v4069
        %4139 = vmatpush1.bf16.msra.mxu0 %v4068
        %4140 = vmatprep.subr.bf16.mxu0 %v4067
        %4141 = vmatpush1.bf16.msra.mxu0 %v4066
        %4142 = vmatprep.subr.bf16.mxu0 %v4065
        %4143 = vmatpush1.bf16.msra.mxu0 %v4064
        %4144 = vmatprep.subr.bf16.mxu0 %v4095
        %4145 = vmatpush2.bf16.msra.mxu0 %v4094
        %4146 = vmatprep.subr.bf16.mxu0 %v4093
        %4147 = vmatpush2.bf16.msra.mxu0 %v4092
        %4148 = vmatprep.subr.bf16.mxu0 %v4091
        %4149 = vmatpush2.bf16.msra.mxu0 %v4090
        %4150 = vmatprep.subr.bf16.mxu0 %v4089
        %4151 = vmatpush2.bf16.msra.mxu0 %v4088
        %4152 = vmatprep.subr.bf16.mxu0 %v4087
        %4153 = vmatpush2.bf16.msra.mxu0 %v4086
        %4154 = vmatprep.subr.bf16.mxu0 %v4085
        %4155 = vmatpush2.bf16.msra.mxu0 %v4084
        %4156 = vmatprep.subr.bf16.mxu0 %v4083
        %4157 = vmatpush2.bf16.msra.mxu0 %v4082
        %4158 = vmatprep.subr.bf16.mxu0 %v4081
        %4159 = vmatpush2.bf16.msra.mxu0 %v4080
        %4160 = vmatprep.mubr.bf16.mxu0 %v3937
        %4161 = vmatmul.mubr.bf16.gmra.mxu0 %v3936
        %v4162 = vpop.f32.mrf.mxu0
        %v4163 = vadd.f32 %v3810, %v4162
        %v4164 = vpop.f32.mrf.mxu0
        %v4165 = vadd.f32 %v3812, %v4164
        %v4166 = vpop.f32.mrf.mxu0
        %v4167 = vadd.f32 %v3814, %v4166
        %v4168 = vpop.f32.mrf.mxu0
        %v4169 = vadd.f32 %v3816, %v4168
        %4170 = vmatprep.mubr.bf16.mxu0 %v3939
        %4171 = vmatmul.mubr.bf16.gmra.mxu0 %v3938
        %v4172 = vpop.f32.mrf.mxu0
        %v4173 = vadd.f32 %v3820, %v4172
        %v4174 = vpop.f32.mrf.mxu0
        %v4175 = vadd.f32 %v3822, %v4174
        %v4176 = vpop.f32.mrf.mxu0
        %v4177 = vadd.f32 %v3824, %v4176
        %v4178 = vpop.f32.mrf.mxu0
        %v4179 = vadd.f32 %v3826, %v4178
        %4180 = vmatprep.mubr.bf16.mxu0 %v3941
        %4181 = vmatmul.mubr.bf16.gmra.mxu0 %v3940
        %v4182 = vpop.f32.mrf.mxu0
        %v4183 = vadd.f32 %v3830, %v4182
        %v4184 = vpop.f32.mrf.mxu0
        %v4185 = vadd.f32 %v3832, %v4184
        %v4186 = vpop.f32.mrf.mxu0
        %v4187 = vadd.f32 %v3834, %v4186
        %v4188 = vpop.f32.mrf.mxu0
        %v4189 = vadd.f32 %v3836, %v4188
        %4190 = vmatprep.mubr.bf16.mxu0 %v3943
        %4191 = vmatmul.mubr.bf16.gmra.mxu0 %v3942
        %v4192 = vpop.f32.mrf.mxu0
        %v4193 = vadd.f32 %v3840, %v4192
        %v4194 = vpop.f32.mrf.mxu0
        %v4195 = vadd.f32 %v3842, %v4194
        %v4196 = vpop.f32.mrf.mxu0
        %v4197 = vadd.f32 %v3844, %v4196
        %v4198 = vpop.f32.mrf.mxu0
        %v4199 = vadd.f32 %v3846, %v4198
        %4200 = vmatprep.mubr.bf16.mxu0 %v3945
        %4201 = vmatmul.mubr.bf16.gmra.mxu0 %v3944
        %v4202 = vpop.f32.mrf.mxu0
        %v4203 = vadd.f32 %v3850, %v4202
        %v4204 = vpop.f32.mrf.mxu0
        %v4205 = vadd.f32 %v3852, %v4204
        %v4206 = vpop.f32.mrf.mxu0
        %v4207 = vadd.f32 %v3854, %v4206
        %v4208 = vpop.f32.mrf.mxu0
        %v4209 = vadd.f32 %v3856, %v4208
        %4210 = vmatprep.mubr.bf16.mxu0 %v3947
        %4211 = vmatmul.mubr.bf16.gmra.mxu0 %v3946
        %v4212 = vpop.f32.mrf.mxu0
        %v4213 = vadd.f32 %v3860, %v4212
        %v4214 = vpop.f32.mrf.mxu0
        %v4215 = vadd.f32 %v3862, %v4214
        %v4216 = vpop.f32.mrf.mxu0
        %v4217 = vadd.f32 %v3864, %v4216
        %v4218 = vpop.f32.mrf.mxu0
        %v4219 = vadd.f32 %v3866, %v4218
        %4220 = vmatprep.mubr.bf16.mxu0 %v3949
        %4221 = vmatmul.mubr.bf16.gmra.mxu0 %v3948
        %v4222 = vpop.f32.mrf.mxu0
        %v4223 = vadd.f32 %v3870, %v4222
        %v4224 = vpop.f32.mrf.mxu0
        %v4225 = vadd.f32 %v3872, %v4224
        %v4226 = vpop.f32.mrf.mxu0
        %v4227 = vadd.f32 %v3874, %v4226
        %v4228 = vpop.f32.mrf.mxu0
        %v4229 = vadd.f32 %v3876, %v4228
        %4230 = vmatprep.mubr.bf16.mxu0 %v3951
        %4231 = vmatmul.mubr.bf16.gmra.mxu0 %v3950
        %v4232 = vpop.f32.mrf.mxu0
        %v4233 = vadd.f32 %v3880, %v4232
        %v4234 = vpop.f32.mrf.mxu0
        %v4235 = vadd.f32 %v3882, %v4234
        %v4236 = vpop.f32.mrf.mxu0
        %v4237 = vadd.f32 %v3884, %v4236
        %v4238 = vpop.f32.mrf.mxu0
        %v4239 = vadd.f32 %v3886, %v4238
        %4240 = vdwg.mxu0
        %s4241 = scalar_lea.vmem [#allocation5], 32
        %v4242 = vld [vmem:[%s4241] sm:$0xff]
        %v4243 = vld [vmem:[%s4241 + $0x8] sm:$0xff]
        %v4244 = vld [vmem:[%s4241 + $0x10] sm:$0xff]
        %v4245 = vld [vmem:[%s4241 + $0x18] sm:$0xff]
        %v4246 = vld [vmem:[%s4241 + $0x20] sm:$0xff]
        %v4247 = vld [vmem:[%s4241 + $0x28] sm:$0xff]
        %v4248 = vld [vmem:[%s4241 + $0x30] sm:$0xff]
        %v4249 = vld [vmem:[%s4241 + $0x38] sm:$0xff]
        %v4250 = vld [vmem:[%s4241 + $0x40] sm:$0xff]
        %v4251 = vld [vmem:[%s4241 + $0x48] sm:$0xff]
        %v4252 = vld [vmem:[%s4241 + $0x50] sm:$0xff]
        %v4253 = vld [vmem:[%s4241 + $0x58] sm:$0xff]
        %v4254 = vld [vmem:[%s4241 + $0x60] sm:$0xff]
        %v4255 = vld [vmem:[%s4241 + $0x68] sm:$0xff]
        %v4256 = vld [vmem:[%s4241 + $0x70] sm:$0xff]
        %v4257 = vld [vmem:[%s4241 + $0x78] sm:$0xff]
        %s4258 = scalar_lea.vmem [#allocation14], 512
        %v4259 = vld [vmem:[%s4258] sm:$0xff]
        %v4260 = vld [vmem:[%s4258 + $0x8] sm:$0xff]
        %v4261 = vld [vmem:[%s4258 + $0x10] sm:$0xff]
        %v4262 = vld [vmem:[%s4258 + $0x18] sm:$0xff]
        %v4263 = vld [vmem:[%s4258 + $0x20] sm:$0xff]
        %v4264 = vld [vmem:[%s4258 + $0x28] sm:$0xff]
        %v4265 = vld [vmem:[%s4258 + $0x30] sm:$0xff]
        %v4266 = vld [vmem:[%s4258 + $0x38] sm:$0xff]
        %v4267 = vld [vmem:[%s4258 + $0x40] sm:$0xff]
        %v4268 = vld [vmem:[%s4258 + $0x48] sm:$0xff]
        %v4269 = vld [vmem:[%s4258 + $0x50] sm:$0xff]
        %v4270 = vld [vmem:[%s4258 + $0x58] sm:$0xff]
        %v4271 = vld [vmem:[%s4258 + $0x60] sm:$0xff]
        %v4272 = vld [vmem:[%s4258 + $0x68] sm:$0xff]
        %v4273 = vld [vmem:[%s4258 + $0x70] sm:$0xff]
        %v4274 = vld [vmem:[%s4258 + $0x78] sm:$0xff]
        %v4275 = vld [vmem:[%s4258 + $0x80] sm:$0xff]
        %v4276 = vld [vmem:[%s4258 + $0x88] sm:$0xff]
        %v4277 = vld [vmem:[%s4258 + $0x90] sm:$0xff]
        %v4278 = vld [vmem:[%s4258 + $0x98] sm:$0xff]
        %v4279 = vld [vmem:[%s4258 + $0xa0] sm:$0xff]
        %v4280 = vld [vmem:[%s4258 + $0xa8] sm:$0xff]
        %v4281 = vld [vmem:[%s4258 + $0xb0] sm:$0xff]
        %v4282 = vld [vmem:[%s4258 + $0xb8] sm:$0xff]
        %v4283 = vld [vmem:[%s4258 + $0xc0] sm:$0xff]
        %v4284 = vld [vmem:[%s4258 + $0xc8] sm:$0xff]
        %v4285 = vld [vmem:[%s4258 + $0xd0] sm:$0xff]
        %v4286 = vld [vmem:[%s4258 + $0xd8] sm:$0xff]
        %v4287 = vld [vmem:[%s4258 + $0xe0] sm:$0xff]
        %v4288 = vld [vmem:[%s4258 + $0xe8] sm:$0xff]
        %v4289 = vld [vmem:[%s4258 + $0xf0] sm:$0xff]
        %v4290 = vld [vmem:[%s4258 + $0xf8] sm:$0xff]
        %v4307 = vunpack.c.l.b16 %v4242
        %v4308 = vunpack.c.h.b16 %v4242
        %v4309 = vunpack.c.l.b16 %v4243
        %v4310 = vunpack.c.h.b16 %v4243
        %v4311 = vunpack.c.l.b16 %v4244
        %v4312 = vunpack.c.h.b16 %v4244
        %v4313 = vunpack.c.l.b16 %v4245
        %v4314 = vunpack.c.h.b16 %v4245
        %v4315 = vunpack.c.l.b16 %v4246
        %v4316 = vunpack.c.h.b16 %v4246
        %v4317 = vunpack.c.l.b16 %v4247
        %v4318 = vunpack.c.h.b16 %v4247
        %v4319 = vunpack.c.l.b16 %v4248
        %v4320 = vunpack.c.h.b16 %v4248
        %v4321 = vunpack.c.l.b16 %v4249
        %v4322 = vunpack.c.h.b16 %v4249
        %v4323 = vunpack.c.l.b16 %v4250
        %v4324 = vunpack.c.h.b16 %v4250
        %v4325 = vunpack.c.l.b16 %v4251
        %v4326 = vunpack.c.h.b16 %v4251
        %v4327 = vunpack.c.l.b16 %v4252
        %v4328 = vunpack.c.h.b16 %v4252
        %v4329 = vunpack.c.l.b16 %v4253
        %v4330 = vunpack.c.h.b16 %v4253
        %v4331 = vunpack.c.l.b16 %v4254
        %v4332 = vunpack.c.h.b16 %v4254
        %v4333 = vunpack.c.l.b16 %v4255
        %v4334 = vunpack.c.h.b16 %v4255
        %v4335 = vunpack.c.l.b16 %v4256
        %v4336 = vunpack.c.h.b16 %v4256
        %v4337 = vunpack.c.l.b16 %v4257
        %v4338 = vunpack.c.h.b16 %v4257
        %v4339 = vpack.c.b16 %v4309, %v4307
        %v4340 = vpack.c.b16 %v4310, %v4308
        %v4341 = vpack.c.b16 %v4313, %v4311
        %v4342 = vpack.c.b16 %v4314, %v4312
        %v4343 = vpack.c.b16 %v4317, %v4315
        %v4344 = vpack.c.b16 %v4318, %v4316
        %v4345 = vpack.c.b16 %v4321, %v4319
        %v4346 = vpack.c.b16 %v4322, %v4320
        %v4347 = vpack.c.b16 %v4325, %v4323
        %v4348 = vpack.c.b16 %v4326, %v4324
        %v4349 = vpack.c.b16 %v4329, %v4327
        %v4350 = vpack.c.b16 %v4330, %v4328
        %v4351 = vpack.c.b16 %v4333, %v4331
        %v4352 = vpack.c.b16 %v4334, %v4332
        %v4353 = vpack.c.b16 %v4337, %v4335
        %v4354 = vpack.c.b16 %v4338, %v4336
        %v4403 = vunpack.c.l.b16 %v4259
        %v4404 = vunpack.c.h.b16 %v4259
        %v4405 = vunpack.c.l.b16 %v4260
        %v4406 = vunpack.c.h.b16 %v4260
        %v4407 = vunpack.c.l.b16 %v4261
        %v4408 = vunpack.c.h.b16 %v4261
        %v4409 = vunpack.c.l.b16 %v4262
        %v4410 = vunpack.c.h.b16 %v4262
        %v4411 = vunpack.c.l.b16 %v4263
        %v4412 = vunpack.c.h.b16 %v4263
        %v4413 = vunpack.c.l.b16 %v4264
        %v4414 = vunpack.c.h.b16 %v4264
        %v4415 = vunpack.c.l.b16 %v4265
        %v4416 = vunpack.c.h.b16 %v4265
        %v4417 = vunpack.c.l.b16 %v4266
        %v4418 = vunpack.c.h.b16 %v4266
        %v4419 = vunpack.c.l.b16 %v4267
        %v4420 = vunpack.c.h.b16 %v4267
        %v4421 = vunpack.c.l.b16 %v4268
        %v4422 = vunpack.c.h.b16 %v4268
        %v4423 = vunpack.c.l.b16 %v4269
        %v4424 = vunpack.c.h.b16 %v4269
        %v4425 = vunpack.c.l.b16 %v4270
        %v4426 = vunpack.c.h.b16 %v4270
        %v4427 = vunpack.c.l.b16 %v4271
        %v4428 = vunpack.c.h.b16 %v4271
        %v4429 = vunpack.c.l.b16 %v4272
        %v4430 = vunpack.c.h.b16 %v4272
        %v4431 = vunpack.c.l.b16 %v4273
        %v4432 = vunpack.c.h.b16 %v4273
        %v4433 = vunpack.c.l.b16 %v4274
        %v4434 = vunpack.c.h.b16 %v4274
        %v4435 = vunpack.c.l.b16 %v4275
        %v4436 = vunpack.c.h.b16 %v4275
        %v4437 = vunpack.c.l.b16 %v4276
        %v4438 = vunpack.c.h.b16 %v4276
        %v4439 = vunpack.c.l.b16 %v4277
        %v4440 = vunpack.c.h.b16 %v4277
        %v4441 = vunpack.c.l.b16 %v4278
        %v4442 = vunpack.c.h.b16 %v4278
        %v4443 = vunpack.c.l.b16 %v4279
        %v4444 = vunpack.c.h.b16 %v4279
        %v4445 = vunpack.c.l.b16 %v4280
        %v4446 = vunpack.c.h.b16 %v4280
        %v4447 = vunpack.c.l.b16 %v4281
        %v4448 = vunpack.c.h.b16 %v4281
        %v4449 = vunpack.c.l.b16 %v4282
        %v4450 = vunpack.c.h.b16 %v4282
        %v4451 = vunpack.c.l.b16 %v4283
        %v4452 = vunpack.c.h.b16 %v4283
        %v4453 = vunpack.c.l.b16 %v4284
        %v4454 = vunpack.c.h.b16 %v4284
        %v4455 = vunpack.c.l.b16 %v4285
        %v4456 = vunpack.c.h.b16 %v4285
        %v4457 = vunpack.c.l.b16 %v4286
        %v4458 = vunpack.c.h.b16 %v4286
        %v4459 = vunpack.c.l.b16 %v4287
        %v4460 = vunpack.c.h.b16 %v4287
        %v4461 = vunpack.c.l.b16 %v4288
        %v4462 = vunpack.c.h.b16 %v4288
        %v4463 = vunpack.c.l.b16 %v4289
        %v4464 = vunpack.c.h.b16 %v4289
        %v4465 = vunpack.c.l.b16 %v4290
        %v4466 = vunpack.c.h.b16 %v4290
        %v4467 = vpack.c.b16 %v4405, %v4403
        %v4468 = vpack.c.b16 %v4406, %v4404
        %v4469 = vpack.c.b16 %v4409, %v4407
        %v4470 = vpack.c.b16 %v4410, %v4408
        %v4471 = vpack.c.b16 %v4413, %v4411
        %v4472 = vpack.c.b16 %v4414, %v4412
        %v4473 = vpack.c.b16 %v4417, %v4415
        %v4474 = vpack.c.b16 %v4418, %v4416
        %v4475 = vpack.c.b16 %v4421, %v4419
        %v4476 = vpack.c.b16 %v4422, %v4420
        %v4477 = vpack.c.b16 %v4425, %v4423
        %v4478 = vpack.c.b16 %v4426, %v4424
        %v4479 = vpack.c.b16 %v4429, %v4427
        %v4480 = vpack.c.b16 %v4430, %v4428
        %v4481 = vpack.c.b16 %v4433, %v4431
        %v4482 = vpack.c.b16 %v4434, %v4432
        %v4483 = vpack.c.b16 %v4437, %v4435
        %v4484 = vpack.c.b16 %v4438, %v4436
        %v4485 = vpack.c.b16 %v4441, %v4439
        %v4486 = vpack.c.b16 %v4442, %v4440
        %v4487 = vpack.c.b16 %v4445, %v4443
        %v4488 = vpack.c.b16 %v4446, %v4444
        %v4489 = vpack.c.b16 %v4449, %v4447
        %v4490 = vpack.c.b16 %v4450, %v4448
        %v4491 = vpack.c.b16 %v4453, %v4451
        %v4492 = vpack.c.b16 %v4454, %v4452
        %v4493 = vpack.c.b16 %v4457, %v4455
        %v4494 = vpack.c.b16 %v4458, %v4456
        %v4495 = vpack.c.b16 %v4461, %v4459
        %v4496 = vpack.c.b16 %v4462, %v4460
        %v4497 = vpack.c.b16 %v4465, %v4463
        %v4498 = vpack.c.b16 %v4466, %v4464
        %4531 = vmatprep.subr.bf16.mxu0 %v4482
        %4532 = vmatpush1.bf16.msra.mxu0 %v4481
        %4533 = vmatprep.subr.bf16.mxu0 %v4480
        %4534 = vmatpush1.bf16.msra.mxu0 %v4479
        %4535 = vmatprep.subr.bf16.mxu0 %v4478
        %4536 = vmatpush1.bf16.msra.mxu0 %v4477
        %4537 = vmatprep.subr.bf16.mxu0 %v4476
        %4538 = vmatpush1.bf16.msra.mxu0 %v4475
        %4539 = vmatprep.subr.bf16.mxu0 %v4474
        %4540 = vmatpush1.bf16.msra.mxu0 %v4473
        %4541 = vmatprep.subr.bf16.mxu0 %v4472
        %4542 = vmatpush1.bf16.msra.mxu0 %v4471
        %4543 = vmatprep.subr.bf16.mxu0 %v4470
        %4544 = vmatpush1.bf16.msra.mxu0 %v4469
        %4545 = vmatprep.subr.bf16.mxu0 %v4468
        %4546 = vmatpush1.bf16.msra.mxu0 %v4467
        %4547 = vmatprep.subr.bf16.mxu0 %v4498
        %4548 = vmatpush2.bf16.msra.mxu0 %v4497
        %4549 = vmatprep.subr.bf16.mxu0 %v4496
        %4550 = vmatpush2.bf16.msra.mxu0 %v4495
        %4551 = vmatprep.subr.bf16.mxu0 %v4494
        %4552 = vmatpush2.bf16.msra.mxu0 %v4493
        %4553 = vmatprep.subr.bf16.mxu0 %v4492
        %4554 = vmatpush2.bf16.msra.mxu0 %v4491
        %4555 = vmatprep.subr.bf16.mxu0 %v4490
        %4556 = vmatpush2.bf16.msra.mxu0 %v4489
        %4557 = vmatprep.subr.bf16.mxu0 %v4488
        %4558 = vmatpush2.bf16.msra.mxu0 %v4487
        %4559 = vmatprep.subr.bf16.mxu0 %v4486
        %4560 = vmatpush2.bf16.msra.mxu0 %v4485
        %4561 = vmatprep.subr.bf16.mxu0 %v4484
        %4562 = vmatpush2.bf16.msra.mxu0 %v4483
        %4563 = vmatprep.mubr.bf16.mxu0 %v4340
        %4564 = vmatmul.mubr.bf16.gmra.mxu0 %v4339
        %v4565 = vpop.f32.mrf.mxu0
        %v4566 = vadd.f32 0.0, %v4565
        %v4567 = vpop.f32.mrf.mxu0
        %v4568 = vadd.f32 0.0, %v4567
        %v4569 = vpop.f32.mrf.mxu0
        %v4570 = vadd.f32 0.0, %v4569
        %v4571 = vpop.f32.mrf.mxu0
        %v4572 = vadd.f32 0.0, %v4571
        %4573 = vmatprep.mubr.bf16.mxu0 %v4342
        %4574 = vmatmul.mubr.bf16.gmra.mxu0 %v4341
        %v4575 = vpop.f32.mrf.mxu0
        %v4576 = vadd.f32 0.0, %v4575
        %v4577 = vpop.f32.mrf.mxu0
        %v4578 = vadd.f32 0.0, %v4577
        %v4579 = vpop.f32.mrf.mxu0
        %v4580 = vadd.f32 0.0, %v4579
        %v4581 = vpop.f32.mrf.mxu0
        %v4582 = vadd.f32 0.0, %v4581
        %4583 = vmatprep.mubr.bf16.mxu0 %v4344
        %4584 = vmatmul.mubr.bf16.gmra.mxu0 %v4343
        %v4585 = vpop.f32.mrf.mxu0
        %v4586 = vadd.f32 0.0, %v4585
        %v4587 = vpop.f32.mrf.mxu0
        %v4588 = vadd.f32 0.0, %v4587
        %v4589 = vpop.f32.mrf.mxu0
        %v4590 = vadd.f32 0.0, %v4589
        %v4591 = vpop.f32.mrf.mxu0
        %v4592 = vadd.f32 0.0, %v4591
        %4593 = vmatprep.mubr.bf16.mxu0 %v4346
        %4594 = vmatmul.mubr.bf16.gmra.mxu0 %v4345
        %v4595 = vpop.f32.mrf.mxu0
        %v4596 = vadd.f32 0.0, %v4595
        %v4597 = vpop.f32.mrf.mxu0
        %v4598 = vadd.f32 0.0, %v4597
        %v4599 = vpop.f32.mrf.mxu0
        %v4600 = vadd.f32 0.0, %v4599
        %v4601 = vpop.f32.mrf.mxu0
        %v4602 = vadd.f32 0.0, %v4601
        %4603 = vmatprep.mubr.bf16.mxu0 %v4348
        %4604 = vmatmul.mubr.bf16.gmra.mxu0 %v4347
        %v4605 = vpop.f32.mrf.mxu0
        %v4606 = vadd.f32 0.0, %v4605
        %v4607 = vpop.f32.mrf.mxu0
        %v4608 = vadd.f32 0.0, %v4607
        %v4609 = vpop.f32.mrf.mxu0
        %v4610 = vadd.f32 0.0, %v4609
        %v4611 = vpop.f32.mrf.mxu0
        %v4612 = vadd.f32 0.0, %v4611
        %4613 = vmatprep.mubr.bf16.mxu0 %v4350
        %4614 = vmatmul.mubr.bf16.gmra.mxu0 %v4349
        %v4615 = vpop.f32.mrf.mxu0
        %v4616 = vadd.f32 0.0, %v4615
        %v4617 = vpop.f32.mrf.mxu0
        %v4618 = vadd.f32 0.0, %v4617
        %v4619 = vpop.f32.mrf.mxu0
        %v4620 = vadd.f32 0.0, %v4619
        %v4621 = vpop.f32.mrf.mxu0
        %v4622 = vadd.f32 0.0, %v4621
        %4623 = vmatprep.mubr.bf16.mxu0 %v4352
        %4624 = vmatmul.mubr.bf16.gmra.mxu0 %v4351
        %v4625 = vpop.f32.mrf.mxu0
        %v4626 = vadd.f32 0.0, %v4625
        %v4627 = vpop.f32.mrf.mxu0
        %v4628 = vadd.f32 0.0, %v4627
        %v4629 = vpop.f32.mrf.mxu0
        %v4630 = vadd.f32 0.0, %v4629
        %v4631 = vpop.f32.mrf.mxu0
        %v4632 = vadd.f32 0.0, %v4631
        %4633 = vmatprep.mubr.bf16.mxu0 %v4354
        %4634 = vmatmul.mubr.bf16.gmra.mxu0 %v4353
        %v4635 = vpop.f32.mrf.mxu0
        %v4636 = vadd.f32 0.0, %v4635
        %v4637 = vpop.f32.mrf.mxu0
        %v4638 = vadd.f32 0.0, %v4637
        %v4639 = vpop.f32.mrf.mxu0
        %v4640 = vadd.f32 0.0, %v4639
        %v4641 = vpop.f32.mrf.mxu0
        %v4642 = vadd.f32 0.0, %v4641
        %4643 = vdwg.mxu0
        %v4644 = vadd.f32 %v4163, %v4566
        %v4645 = vadd.f32 %v4165, %v4568
        %v4646 = vadd.f32 %v4167, %v4570
        %v4647 = vadd.f32 %v4169, %v4572
        %v4648 = vadd.f32 %v4173, %v4576
        %v4649 = vadd.f32 %v4175, %v4578
        %v4650 = vadd.f32 %v4177, %v4580
        %v4651 = vadd.f32 %v4179, %v4582
        %v4652 = vadd.f32 %v4183, %v4586
        %v4653 = vadd.f32 %v4185, %v4588
        %v4654 = vadd.f32 %v4187, %v4590
        %v4655 = vadd.f32 %v4189, %v4592
        %v4656 = vadd.f32 %v4193, %v4596
        %v4657 = vadd.f32 %v4195, %v4598
        %v4658 = vadd.f32 %v4197, %v4600
        %v4659 = vadd.f32 %v4199, %v4602
        %v4660 = vadd.f32 %v4203, %v4606
        %v4661 = vadd.f32 %v4205, %v4608
        %v4662 = vadd.f32 %v4207, %v4610
        %v4663 = vadd.f32 %v4209, %v4612
        %v4664 = vadd.f32 %v4213, %v4616
        %v4665 = vadd.f32 %v4215, %v4618
        %v4666 = vadd.f32 %v4217, %v4620
        %v4667 = vadd.f32 %v4219, %v4622
        %v4668 = vadd.f32 %v4223, %v4626
        %v4669 = vadd.f32 %v4225, %v4628
        %v4670 = vadd.f32 %v4227, %v4630
        %v4671 = vadd.f32 %v4229, %v4632
        %v4672 = vadd.f32 %v4233, %v4636
        %v4673 = vadd.f32 %v4235, %v4638
        %v4674 = vadd.f32 %v4237, %v4640
        %v4675 = vadd.f32 %v4239, %v4642
        %v4676 = vld [vmem:[%s8] sm:$0x3]
        %v4678 = vlaneseq
        %v4679 = vshrl.u32 %v4678, 7
        %v4680 = vsub.s32 0, %v4679
        %v4681 = vrot.slane %v4676, %v4680
        %v4682 = vlaneseq
        %v4683 = vshrl.u32 %v4682, 7
        %v4684 = vsub.s32 1, %v4683
        %v4685 = vrot.slane %v4676, %v4684
        %v4688 = vadd.f32 %v4644, %v4681
        %v4689 = vadd.f32 %v4645, %v4685
        %v4690 = vadd.f32 %v4646, %v4681
        %v4691 = vadd.f32 %v4647, %v4685
        %v4692 = vadd.f32 %v4648, %v4681
        %v4693 = vadd.f32 %v4649, %v4685
        %v4694 = vadd.f32 %v4650, %v4681
        %v4695 = vadd.f32 %v4651, %v4685
        %v4696 = vadd.f32 %v4652, %v4681
        %v4697 = vadd.f32 %v4653, %v4685
        %v4698 = vadd.f32 %v4654, %v4681
        %v4699 = vadd.f32 %v4655, %v4685
        %v4700 = vadd.f32 %v4656, %v4681
        %v4701 = vadd.f32 %v4657, %v4685
        %v4702 = vadd.f32 %v4658, %v4681
        %v4703 = vadd.f32 %v4659, %v4685
        %v4704 = vadd.f32 %v4660, %v4681
        %v4705 = vadd.f32 %v4661, %v4685
        %v4706 = vadd.f32 %v4662, %v4681
        %v4707 = vadd.f32 %v4663, %v4685
        %v4708 = vadd.f32 %v4664, %v4681
        %v4709 = vadd.f32 %v4665, %v4685
        %v4710 = vadd.f32 %v4666, %v4681
        %v4711 = vadd.f32 %v4667, %v4685
        %v4712 = vadd.f32 %v4668, %v4681
        %v4713 = vadd.f32 %v4669, %v4685
        %v4714 = vadd.f32 %v4670, %v4681
        %v4715 = vadd.f32 %v4671, %v4685
        %v4716 = vadd.f32 %v4672, %v4681
        %v4717 = vadd.f32 %v4673, %v4685
        %v4718 = vadd.f32 %v4674, %v4681
        %v4719 = vadd.f32 %v4675, %v4685
        %v4720 = vmax.f32 %v4688, 0.0
        %v4721 = vmax.f32 %v4689, 0.0
        %v4722 = vmax.f32 %v4690, 0.0
        %v4723 = vmax.f32 %v4691, 0.0
        %v4724 = vmax.f32 %v4692, 0.0
        %v4725 = vmax.f32 %v4693, 0.0
        %v4726 = vmax.f32 %v4694, 0.0
        %v4727 = vmax.f32 %v4695, 0.0
        %v4728 = vmax.f32 %v4696, 0.0
        %v4729 = vmax.f32 %v4697, 0.0
        %v4730 = vmax.f32 %v4698, 0.0
        %v4731 = vmax.f32 %v4699, 0.0
        %v4732 = vmax.f32 %v4700, 0.0
        %v4733 = vmax.f32 %v4701, 0.0
        %v4734 = vmax.f32 %v4702, 0.0
        %v4735 = vmax.f32 %v4703, 0.0
        %v4736 = vmax.f32 %v4704, 0.0
        %v4737 = vmax.f32 %v4705, 0.0
        %v4738 = vmax.f32 %v4706, 0.0
        %v4739 = vmax.f32 %v4707, 0.0
        %v4740 = vmax.f32 %v4708, 0.0
        %v4741 = vmax.f32 %v4709, 0.0
        %v4742 = vmax.f32 %v4710, 0.0
        %v4743 = vmax.f32 %v4711, 0.0
        %v4744 = vmax.f32 %v4712, 0.0
        %v4745 = vmax.f32 %v4713, 0.0
        %v4746 = vmax.f32 %v4714, 0.0
        %v4747 = vmax.f32 %v4715, 0.0
        %v4748 = vmax.f32 %v4716, 0.0
        %v4749 = vmax.f32 %v4717, 0.0
        %v4750 = vmax.f32 %v4718, 0.0
        %v4751 = vmax.f32 %v4719, 0.0
        %4752 = vst [vmem:[%s408] sm:$0xff] %v4720
        %4753 = vst [vmem:[%s408 + $0x8] sm:$0xff] %v4721
        %4754 = vst [vmem:[%s408 + $0x10] sm:$0xff] %v4722
        %4755 = vst [vmem:[%s408 + $0x18] sm:$0xff] %v4723
        %4756 = vst [vmem:[%s408 + $0x20] sm:$0xff] %v4724
        %4757 = vst [vmem:[%s408 + $0x28] sm:$0xff] %v4725
        %4758 = vst [vmem:[%s408 + $0x30] sm:$0xff] %v4726
        %4759 = vst [vmem:[%s408 + $0x38] sm:$0xff] %v4727
        %4760 = vst [vmem:[%s408 + $0x40] sm:$0xff] %v4728
        %4761 = vst [vmem:[%s408 + $0x48] sm:$0xff] %v4729
        %4762 = vst [vmem:[%s408 + $0x50] sm:$0xff] %v4730
        %4763 = vst [vmem:[%s408 + $0x58] sm:$0xff] %v4731
        %4764 = vst [vmem:[%s408 + $0x60] sm:$0xff] %v4732
        %4765 = vst [vmem:[%s408 + $0x68] sm:$0xff] %v4733
        %4766 = vst [vmem:[%s408 + $0x70] sm:$0xff] %v4734
        %4767 = vst [vmem:[%s408 + $0x78] sm:$0xff] %v4735
        %4768 = vst [vmem:[%s408 + $0x80] sm:$0xff] %v4736
        %4769 = vst [vmem:[%s408 + $0x88] sm:$0xff] %v4737
        %4770 = vst [vmem:[%s408 + $0x90] sm:$0xff] %v4738
        %4771 = vst [vmem:[%s408 + $0x98] sm:$0xff] %v4739
        %4772 = vst [vmem:[%s408 + $0xa0] sm:$0xff] %v4740
        %4773 = vst [vmem:[%s408 + $0xa8] sm:$0xff] %v4741
        %4774 = vst [vmem:[%s408 + $0xb0] sm:$0xff] %v4742
        %4775 = vst [vmem:[%s408 + $0xb8] sm:$0xff] %v4743
        %4776 = vst [vmem:[%s408 + $0xc0] sm:$0xff] %v4744
        %4777 = vst [vmem:[%s408 + $0xc8] sm:$0xff] %v4745
        %4778 = vst [vmem:[%s408 + $0xd0] sm:$0xff] %v4746
        %4779 = vst [vmem:[%s408 + $0xd8] sm:$0xff] %v4747
        %4780 = vst [vmem:[%s408 + $0xe0] sm:$0xff] %v4748
        %4781 = vst [vmem:[%s408 + $0xe8] sm:$0xff] %v4749
        %4782 = vst [vmem:[%s408 + $0xf0] sm:$0xff] %v4750
        %4783 = vst [vmem:[%s408 + $0xf8] sm:$0xff] %v4751
        %s4784 = sand.u32 %s230, 1
        %s4785 = scalar_lea.sflag [#allocation8], %s4784
        %s4786 = sand.u32 %s230, 1
        %s4787 = smul.addr %s4786, 256
        %s4788 = scalar_lea.vmem [#allocation15], %s4787
        // Predicated region
        $region77: #{tpu_custom_call.1} parent=55 // pred_check
          %p4789 = pneg %p240
        $region78: #{tpu_custom_call.1} parent=55 // pred_check_branch
          %4791 = sbr.rel (%p4789) target = $region80
        $region79: #{tpu_custom_call.1} parent=55 // pred_region
          %s4793 = ssub.s32 4096, 4096
          %4794 = vsyncadd %s4785, %s4793
          %s4795 = smul.addr %s28, 32
          %s4796 = smul.addr %s4795, 128
          %s4797 = scalar_lea.hbm %s9, %s4796
          %s4798 = sshll.u32 %s4788, 4
          %s4799 = int_to_ptr.vmem [resolvable:$true] %s4798
          %4804 = dma.vmem_to_hbm [thread:$0]  %s4799, 4096, %s4797, %s4785, 256, 256, 16
        $region80: #{tpu_custom_call.1} parent=55 // pred_fallthru
          _
      $region56: #{tpu_custom_call.1} parent=5 // pred_fallthru
        _
      %p4805 = scmp.le.s32.totalorder 2, %s23
      // Predicated region
      $region81: #{tpu_custom_call.1} parent=5 // pred_check
        %p4806 = pneg %p4805
      $region82: #{tpu_custom_call.1} parent=5 // pred_check_branch
        %4808 = sbr.rel (%p4806) target = $region84
      $region83: #{tpu_custom_call.1} parent=5 // pred_region
        %s4809 = ssub.s32 %s23, 2
        // Predicated region
        $region85: #{tpu_custom_call.1} parent=83 // pred_check
          %p4810 = pneg %p246
        $region86: #{tpu_custom_call.1} parent=83 // pred_check_branch
          %4812 = sbr.rel (%p4810) target = $region88
        $region87: #{tpu_custom_call.1} parent=83 // pred_region
          %s4813 = sand.u32 %s231, 1
          %s4814 = scalar_lea.sflag [#allocation8], %s4813
          %s4815 = sand.u32 %s231, 1
          %s4816 = smul.addr %s4815, 256
          %s4817 = scalar_lea.vmem [#allocation15], %s4816
          %4818 = dma.done %s4814, 4096
        $region88: #{tpu_custom_call.1} parent=83 // pred_fallthru
          _
      $region84: #{tpu_custom_call.1} parent=5 // pred_fallthru
        _
    $region6: #{tpu_custom_call.1} parent=1 // loop_footer
      %s27 = sadd.s32 1, %s23
    $region7: #{tpu_custom_call.1} parent=1 // loop_footer_branch
      %22 = sbr.rel target = $region3
    $region8: #{tpu_custom_call.1} parent=1 // loop_exit
      _
    %4819 = vsyncpa [#allocation7], 1
    %s4820 = scalar_lea.sflag [#allocation7], 1
    %4821 = vsyncpa %s4820, 1
    %4822 = vsyncpa [#allocation10], 1
    %4823 = vsyncpa [#allocation13], 1
    %4824 = vsyncpa [#allocation8], 1
    %s4825 = scalar_lea.sflag [#allocation8], 1
    %4826 = vsyncpa %s4825, 1

</llo_original>
